<compile_context>
chip_gen: v7x
topology: tpu7x:2x2x1
jax: 0.10.0
libtpu: 0.0.40
codegen_flags: <defaults>
</compile_context>

<pallas_src>
import functools

import jax
import jax.numpy as jnp
import numpy as np
from jax.experimental import pallas as pl
from jax.experimental.pallas import tpu as pltpu

H = 56          # spatial m
W_SP = 56       # spatial n
C_IN = 48       # input channels
C_OUT = 192     # output channels
J = 18          # inner feature dim of both weights
ROWS = H * W_SP            # 3136 flattened spatial positions (r = n*56 + m)


def _fused_matmul_kernel(a_nr_ref, a_r_ref, x_ref, xr_ref, y_ref):
    # a_nr_ref / a_r_ref: (tm, 48) bf16 fused weights (no-roll / rolled term)
    # x_ref / xr_ref:     (48, 3136) bf16 data slabs (un-rolled / rolled)
    # y_ref:              (tm, 3136) f32 — lane-dense output, f32 MXU accumulation.
    y_ref[...] = (
        jnp.dot(a_nr_ref[...], x_ref[...], preferred_element_type=jnp.float32)
        + jnp.dot(a_r_ref[...], xr_ref[...], preferred_element_type=jnp.float32)
    )


def _default_tm() -> int:
    """Output-row tile: 192 (grid=1) on single-TensorCore devices, 96 (grid=2,
    'parallel') on multi-TensorCore-per-device parts (v4/v5p megacore, v7x)."""
    try:
        kind = jax.devices()[0].device_kind.lower()
    except Exception:
        return 96
    if any(s in kind for s in ("v2", "v3", "v5 lite", "v5e", "v6 lite", "v6e")):
        return 192
    return 96


@functools.partial(jax.jit, static_argnames=("shift", "tm"))
def kernel_generated_2_forward(x, w0, w1, shift=1, tm=None):
    assert shift in (1, -1)
    if tm is None:
        tm = _default_tm()
    assert C_OUT % tm == 0 and tm % 16 == 0  # bf16 sublane-tile friendly

    # ---- fused weights (tiny f32 matmuls in XLA, then cast to bf16) --------
    # Each fused weight is (192, 48) = w0-half combined with a w1 slice over j.
    if shift == 1:
        a_nr_t = w0[:, 1, :] @ w1[0].T      # (W1[0] @ W0b)^T — un-rolled term
        a_r_t = w0[:, 0, :] @ w1[1].T       # (W1[1] @ W0a)^T — rolled term
    else:
        a_nr_t = w0[:, 0, :] @ w1[1].T      # (W1[1] @ W0a)^T — un-rolled term
        a_r_t = w0[:, 1, :] @ w1[0].T       # (W1[0] @ W0b)^T — rolled term
    a_nr_t = a_nr_t.astype(jnp.bfloat16)
    a_r_t = a_r_t.astype(jnp.bfloat16)

    # ---- data slabs: cast to bf16 FIRST, then transpose / flatten / roll ---
    # XR^T[c, r=n*56+m] = x[0, c, m, n]
    xb = x[0].astype(jnp.bfloat16)                                   # (48, 56, 56)
    xrt = jnp.transpose(xb, (0, 2, 1)).reshape(C_IN, ROWS)           # (48, 3136)
    xrt_rolled = jnp.roll(xrt, W_SP * shift, axis=1)                 # +-56-row roll

    # ---- fused Pallas matmuls, tiled over the 192 output rows --------------
    flops = 2 * C_OUT * (2 * C_IN) * ROWS                            # ~115.6 MFLOP
    bytes_accessed = (2 * C_IN * ROWS * 2                            # two bf16 slabs
                      + 2 * C_OUT * C_IN * 2                         # bf16 weights
                      + C_OUT * ROWS * 4)                            # f32 output

    yt = pl.pallas_call(
        _fused_matmul_kernel,
        out_shape=jax.ShapeDtypeStruct((C_OUT, ROWS), jnp.float32),
        grid=(C_OUT // tm,),
        in_specs=[
            pl.BlockSpec((tm, C_IN), lambda i: (i, 0)),    # no-roll weights block
            pl.BlockSpec((tm, C_IN), lambda i: (i, 0)),    # rolled weights block
            pl.BlockSpec((C_IN, ROWS), lambda i: (0, 0)),  # data slab (resident)
            pl.BlockSpec((C_IN, ROWS), lambda i: (0, 0)),  # rolled slab (resident)
        ],
        out_specs=pl.BlockSpec((tm, ROWS), lambda i: (i, 0)),
        compiler_params=pltpu.CompilerParams(
            dimension_semantics=("parallel",)),            # core split on 2-TC parts
        cost_estimate=pl.CostEstimate(flops=flops, transcendentals=0,
                                      bytes_accessed=bytes_accessed),
    )(a_nr_t, a_r_t, xrt, xrt_rolled)

    # Y^T[i, a*56+m] == y[0, i, a, m]  -> free reshape, no output transpose.
    return yt.reshape(1, C_OUT, H, W_SP)


if __name__ == "__main__":
    key = jax.random.PRNGKey(0)
    kx, k0, k1 = jax.random.split(key, 3)
    # Shapes are pinned by the module's hard-coded reshape(1, 112, 56, 18).
    x = jax.random.normal(kx, (1, 48, 56, 56), dtype=jnp.float32)
    w0 = jax.random.normal(k0, (192, 2, 18), dtype=jnp.float32)
    w1 = jax.random.normal(k1, (2, 48, 18), dtype=jnp.float32)

    for shift in (1, -1):  # module's shift_direction is a random +-1; test both
        y = jax.block_until_ready(kernel_generated_2_forward(x, w0, w1, shift=shift))

        # Pure-JAX f32 reference reproducing the torch ops exactly.
        t3 = jnp.einsum('limn,kij->lnkmj', x, w1)
        t4 = jnp.roll(t3.reshape(1, 112, 56, 18), shift, axis=1).reshape(1, 56, 2, 56, 18)
        y_ref = jnp.einsum('lmjnk,ijk->limn', t4, w0)

        assert y.shape == (1, 192, 56, 56) and y.dtype == jnp.float32
        y_np, yref_np = np.asarray(y), np.asarray(y_ref)
        # bf16 operands over a 96-term contraction of N(0,1)*N(0,18) values:
        # expected abs-error std ~0.07 on outputs with std ~41, so use
        # scale-aware bounds (loose max-error + tight relative-RMS) instead of
        # elementwise rtol/atol which mis-handles near-zero outputs.
        scale = np.max(np.abs(yref_np))
        max_err = np.max(np.abs(y_np - yref_np))
        rel_rms = np.sqrt(np.mean((y_np - yref_np) ** 2)) / np.std(yref_np)
        assert max_err < 2e-2 * scale, (shift, max_err, scale)
        assert rel_rms < 5e-3, (shift, rel_rms)

    print("KERNEL_OK")
</pallas_src>

<mosaic_0001>
module attributes {stable_mosaic.version = 11 : i64} {
  func.func @_fused_matmul_kernel(%arg0: i32, %arg1: memref<96x48xbf16, #tpu.memory_space<vmem>>, %arg2: memref<96x48xbf16, #tpu.memory_space<vmem>>, %arg3: memref<48x3136xbf16, #tpu.memory_space<vmem>>, %arg4: memref<48x3136xbf16, #tpu.memory_space<vmem>>, %arg5: memref<96x3136xf32, #tpu.memory_space<vmem>>) attributes {dimension_semantics = [#tpu.dimension_semantics<parallel>], iteration_bounds = array<i64: 2>, scalar_prefetch = 0 : i64, scratch_operands = 0 : i64, tpu.core_type = #tpu.core_type<tc>, window_params = [{transform_indices = @transform_0, window_bounds = array<i64: 96, 48>}, {transform_indices = @transform_1, window_bounds = array<i64: 96, 48>}, {pipeline_mode = #tpu.pipeline_mode<synchronous>, transform_indices = @transform_2, window_bounds = array<i64: 48, 3136>}, {pipeline_mode = #tpu.pipeline_mode<synchronous>, transform_indices = @transform_3, window_bounds = array<i64: 48, 3136>}, {transform_indices = @transform_4, window_bounds = array<i64: 96, 3136>}]} {
    %c0 = arith.constant 0 : index
    %c0_0 = arith.constant 0 : index
    %0 = vector.load %arg1[%c0, %c0_0] : memref<96x48xbf16, #tpu.memory_space<vmem>>, vector<96x48xbf16>
    %c0_1 = arith.constant 0 : index
    %c0_2 = arith.constant 0 : index
    %1 = vector.load %arg3[%c0_1, %c0_2] : memref<48x3136xbf16, #tpu.memory_space<vmem>>, vector<48x3136xbf16>
    %cst = arith.constant dense<0.000000e+00> : vector<96x3136xf32>
    %2 = tpu.matmul %0, %1, %cst {dimension_numbers = #tpu.dot_dimension_numbers<[1], [0], [0], [1], [0, 0, 1, 1], [], []>} : vector<96x48xbf16>, vector<48x3136xbf16>, vector<96x3136xf32> -> vector<96x3136xf32>
    %c0_3 = arith.constant 0 : index
    %c0_4 = arith.constant 0 : index
    %3 = vector.load %arg2[%c0_3, %c0_4] : memref<96x48xbf16, #tpu.memory_space<vmem>>, vector<96x48xbf16>
    %c0_5 = arith.constant 0 : index
    %c0_6 = arith.constant 0 : index
    %4 = vector.load %arg4[%c0_5, %c0_6] : memref<48x3136xbf16, #tpu.memory_space<vmem>>, vector<48x3136xbf16>
    %cst_7 = arith.constant dense<0.000000e+00> : vector<96x3136xf32>
    %5 = tpu.matmul %3, %4, %cst_7 {dimension_numbers = #tpu.dot_dimension_numbers<[1], [0], [0], [1], [0, 0, 1, 1], [], []>} : vector<96x48xbf16>, vector<48x3136xbf16>, vector<96x3136xf32> -> vector<96x3136xf32>
    %6 = arith.addf %2, %5 : vector<96x3136xf32>
    %c0_8 = arith.constant 0 : index
    %c0_9 = arith.constant 0 : index
    %7 = vector.load %arg5[%c0_8, %c0_9] : memref<96x3136xf32, #tpu.memory_space<vmem>>, vector<96x3136xf32>
    tpu.vector_store %arg5[%c0_8, %c0_9], %6 {strides = array<i32>} : memref<96x3136xf32, #tpu.memory_space<vmem>>, vector<96x3136xf32>,
    return
  }
  func.func @transform_0(%arg0: i32) -> (i32, i32) {
    %c0_i32 = arith.constant 0 : i32
    %c0_i32_0 = arith.constant 0 : i32
    return %arg0, %c0_i32 : i32, i32
  }
  func.func @transform_1(%arg0: i32) -> (i32, i32) {
    %c0_i32 = arith.constant 0 : i32
    %c0_i32_0 = arith.constant 0 : i32
    return %arg0, %c0_i32 : i32, i32
  }
  func.func @transform_2(%arg0: i32) -> (i32, i32) {
    %c0_i32 = arith.constant 0 : i32
    %c0_i32_0 = arith.constant 0 : i32
    %c0_i32_1 = arith.constant 0 : i32
    return %c0_i32, %c0_i32_0 : i32, i32
  }
  func.func @transform_3(%arg0: i32) -> (i32, i32) {
    %c0_i32 = arith.constant 0 : i32
    %c0_i32_0 = arith.constant 0 : i32
    %c0_i32_1 = arith.constant 0 : i32
    return %c0_i32, %c0_i32_0 : i32, i32
  }
  func.func @transform_4(%arg0: i32) -> (i32, i32) {
    %c0_i32 = arith.constant 0 : i32
    %c0_i32_0 = arith.constant 0 : i32
    return %arg0, %c0_i32 : i32, i32
  }
}

</mosaic_0001>

<llo_original>
// kernel: kernel_generated_2_forward.1
$region0: #{kernel_generated_2_forward.1}
  #allocation0 [shape = 'u32[]', space=smem, size = 0x4, offset = 0x4, fixed_abs, tag = 'smem constant byte address 0x4 - core index']
  #allocation1 [shape = 'u32[144,128]{1,0:T(1,128)}', space=vmem, size = 0x12000, scoped, tag = 'internal scratch']
  %s0 = inlined_call_operand.vmem [shape: bf16[192,48], index: 0, kind: input, shape index: {}]
  %s1 = inlined_call_operand.vmem [shape: bf16[192,48], index: 1, kind: input, shape index: {}]
  %s2 = inlined_call_operand.vmem [shape: bf16[48,3136], index: 2, kind: input, shape index: {}]
  %s3 = inlined_call_operand.vmem [shape: bf16[48,3136], index: 3, kind: input, shape index: {}]
  %s4 = inlined_call_operand.vmem [shape: f32[192,3136], index: 4, kind: output, shape index: {}]
  %s5 = sld [smem:[#allocation0]]
  $region49: #{kernel_generated_2_forward.1} parent=0
    _
  %s7 = ssub.s32 1, %s5
  %s8 = scalar_select 0, %s7, %s5
  loop: start=0, step=1, limit=4
  $region2: #{kernel_generated_2_forward.1} parent=0 // loop_pre_header
    _
  $region3: #{kernel_generated_2_forward.1} parent=0 // loop_header
    %s10 = sphi 0, %s14
    %p11 = scmp.ge.s32.totalorder %s10, 4
    %s20 = sphi 0, %s22
    %s23 = sphi 0, %s20
    %s24 = sphi 0, %s23
    %s40 = sphi 0, %s24
    %s46 = sphi 0, %s48
    %s49 = sphi 0, %s46
    %s50 = sphi 0, %s49
    %s66 = sphi 0, %s50
    %s70 = sphi 0, %s70
    %s72 = sphi 0, %s70
    %s73 = sphi 0, %s72
    %s87 = sphi 0, %s73
    %s91 = sphi 0, %s91
    %s93 = sphi 0, %s91
    %s94 = sphi 0, %s93
    %s108 = sphi 0, %s94
    %s114 = sphi 0, %s116
    %s117 = sphi 0, %s114
    %s118 = sphi 0, %s117
    %s134 = sphi 0, %s118
  $region4: #{kernel_generated_2_forward.1} parent=0 // loop_header_branch
    %13 = sbr.rel (%p11) target = $region8
  $region5: #{kernel_generated_2_forward.1} parent=0 // loop_body
    %s15 = ssub.s32 %s10, 1
    %s16 = ssub.s32 %s10, 2
    %s17 = sadd.s32 %s10, 1
    %s18 = ssub.s32 %s10, %s17
    %p19 = scmp.eq.s32.totalorder %s18, 0
    %s21 = sadd.s32 %s20, 1
    %s22 = scalar_select %p19, %s20, %s21
    %p25 = pneg %p19
    %p26 = scmp.eq.s32.totalorder %s10, 1
    %p27 = por %p25, %p26
    %p28 = scmp.ne.s32.totalorder %s20, %s23
    %p29 = scmp.eq.s32.totalorder %s10, 0
    %p30 = por %p28, %p29
    %p31 = scmp.ne.s32.totalorder %s20, %s23
    %p32 = scmp.eq.s32.totalorder %s15, 1
    %p33 = por %p31, %p32
    %p34 = scmp.ne.s32.totalorder %s23, %s24
    %p35 = scmp.eq.s32.totalorder %s15, 0
    %p36 = por %p34, %p35
    %p37 = scmp.ne.s32.totalorder %s23, %s24
    %p38 = scmp.eq.s32.totalorder %s16, 1
    %p39 = por %p37, %p38
    %p41 = scmp.ne.s32.totalorder %s24, %s40
    %p42 = scmp.eq.s32.totalorder %s16, 0
    %p43 = por %p41, %p42
    %s44 = ssub.s32 %s10, %s17
    %p45 = scmp.eq.s32.totalorder %s44, 0
    %s47 = sadd.s32 %s46, 1
    %s48 = scalar_select %p45, %s46, %s47
    %p51 = pneg %p45
    %p52 = scmp.eq.s32.totalorder %s10, 1
    %p53 = por %p51, %p52
    %p54 = scmp.ne.s32.totalorder %s46, %s49
    %p55 = scmp.eq.s32.totalorder %s10, 0
    %p56 = por %p54, %p55
    %p57 = scmp.ne.s32.totalorder %s46, %s49
    %p58 = scmp.eq.s32.totalorder %s15, 1
    %p59 = por %p57, %p58
    %p60 = scmp.ne.s32.totalorder %s49, %s50
    %p61 = scmp.eq.s32.totalorder %s15, 0
    %p62 = por %p60, %p61
    %p63 = scmp.ne.s32.totalorder %s49, %s50
    %p64 = scmp.eq.s32.totalorder %s16, 1
    %p65 = por %p63, %p64
    %p67 = scmp.ne.s32.totalorder %s50, %s66
    %p68 = scmp.eq.s32.totalorder %s16, 0
    %p69 = por %p67, %p68
    %s71 = sadd.s32 %s70, 1
    %p74 = scmp.eq.s32.totalorder %s10, 1
    %p75 = scmp.ne.s32.totalorder %s70, %s72
    %p76 = scmp.eq.s32.totalorder %s10, 0
    %p77 = por %p75, %p76
    %p78 = scmp.ne.s32.totalorder %s70, %s72
    %p79 = scmp.eq.s32.totalorder %s15, 1
    %p80 = por %p78, %p79
    %p81 = scmp.ne.s32.totalorder %s72, %s73
    %p82 = scmp.eq.s32.totalorder %s15, 0
    %p83 = por %p81, %p82
    %p84 = scmp.ne.s32.totalorder %s72, %s73
    %p85 = scmp.eq.s32.totalorder %s16, 1
    %p86 = por %p84, %p85
    %p88 = scmp.ne.s32.totalorder %s73, %s87
    %p89 = scmp.eq.s32.totalorder %s16, 0
    %p90 = por %p88, %p89
    %s92 = sadd.s32 %s91, 1
    %p95 = scmp.eq.s32.totalorder %s10, 1
    %p96 = scmp.ne.s32.totalorder %s91, %s93
    %p97 = scmp.eq.s32.totalorder %s10, 0
    %p98 = por %p96, %p97
    %p99 = scmp.ne.s32.totalorder %s91, %s93
    %p100 = scmp.eq.s32.totalorder %s15, 1
    %p101 = por %p99, %p100
    %p102 = scmp.ne.s32.totalorder %s93, %s94
    %p103 = scmp.eq.s32.totalorder %s15, 0
    %p104 = por %p102, %p103
    %p105 = scmp.ne.s32.totalorder %s93, %s94
    %p106 = scmp.eq.s32.totalorder %s16, 1
    %p107 = por %p105, %p106
    %p109 = scmp.ne.s32.totalorder %s94, %s108
    %p110 = scmp.eq.s32.totalorder %s16, 0
    %p111 = por %p109, %p110
    %s112 = ssub.s32 %s10, %s17
    %p113 = scmp.eq.s32.totalorder %s112, 0
    %s115 = sadd.s32 %s114, 1
    %s116 = scalar_select %p113, %s114, %s115
    %p119 = pneg %p113
    %p120 = scmp.eq.s32.totalorder %s10, 1
    %p121 = por %p119, %p120
    %p122 = scmp.ne.s32.totalorder %s114, %s117
    %p123 = scmp.eq.s32.totalorder %s10, 0
    %p124 = por %p122, %p123
    %p125 = scmp.ne.s32.totalorder %s114, %s117
    %p126 = scmp.eq.s32.totalorder %s15, 1
    %p127 = por %p125, %p126
    %p128 = scmp.ne.s32.totalorder %s117, %s118
    %p129 = scmp.eq.s32.totalorder %s15, 0
    %p130 = por %p128, %p129
    %p131 = scmp.ne.s32.totalorder %s117, %s118
    %p132 = scmp.eq.s32.totalorder %s16, 1
    %p133 = por %p131, %p132
    %p135 = scmp.ne.s32.totalorder %s118, %s134
    %p136 = scmp.eq.s32.totalorder %s16, 0
    %p137 = por %p135, %p136
    %p138 = scmp.le.s32.totalorder 1, %s10
    %p139 = scmp.lt.s32.totalorder %s10, 3
    %p140 = pnand %p138, %p139
    %p141 = pneg %p140
    // Predicated region
    $region9: #{kernel_generated_2_forward.1} parent=5 // pred_check
      _
    $region10: #{kernel_generated_2_forward.1} parent=5 // pred_check_branch
      %143 = sbr.rel (%p140) target = $region12
    $region11: #{kernel_generated_2_forward.1} parent=5 // pred_region
      %s144 = ssub.s32 %s10, 1
      // Predicated region
      $region13: #{kernel_generated_2_forward.1} parent=11 // pred_check
        %p145 = pneg %p83
      $region14: #{kernel_generated_2_forward.1} parent=11 // pred_check_branch
        %147 = sbr.rel (%p145) target = $region16
      $region15: #{kernel_generated_2_forward.1} parent=11 // pred_region
        _
      $region16: #{kernel_generated_2_forward.1} parent=11 // pred_fallthru
        _
      // Predicated region
      $region17: #{kernel_generated_2_forward.1} parent=11 // pred_check
        %p148 = pneg %p104
      $region18: #{kernel_generated_2_forward.1} parent=11 // pred_check_branch
        %150 = sbr.rel (%p148) target = $region20
      $region19: #{kernel_generated_2_forward.1} parent=11 // pred_region
        _
      $region20: #{kernel_generated_2_forward.1} parent=11 // pred_fallthru
        _
    $region12: #{kernel_generated_2_forward.1} parent=5 // pred_fallthru
      _
    %p151 = scmp.lt.s32.totalorder %s10, 2
    // Predicated region
    $region21: #{kernel_generated_2_forward.1} parent=5 // pred_check
      %p152 = pneg %p151
    $region22: #{kernel_generated_2_forward.1} parent=5 // pred_check_branch
      %154 = sbr.rel (%p152) target = $region24
    $region23: #{kernel_generated_2_forward.1} parent=5 // pred_region
      // Predicated region
      $region25: #{kernel_generated_2_forward.1} parent=23 // pred_check
        %p155 = pneg %p30
      $region26: #{kernel_generated_2_forward.1} parent=23 // pred_check_branch
        %157 = sbr.rel (%p155) target = $region28
      $region27: #{kernel_generated_2_forward.1} parent=23 // pred_region
        %s158 = smul.u32 12, %s10
        %p159 = scmp.lt.s32.totalorder %s158, 23
        %s160 = scalar_select %p159, %s158, 23
        %s161 = smul.addr %s160, 4
        %s162 = scalar_lea.vmem %s0, %s161
        %s163 = smul.u32 12, %s10
      $region28: #{kernel_generated_2_forward.1} parent=23 // pred_fallthru
        _
      // Predicated region
      $region29: #{kernel_generated_2_forward.1} parent=23 // pred_check
        %p164 = pneg %p56
      $region30: #{kernel_generated_2_forward.1} parent=23 // pred_check_branch
        %166 = sbr.rel (%p164) target = $region32
      $region31: #{kernel_generated_2_forward.1} parent=23 // pred_region
        %s167 = smul.u32 12, %s10
        %p168 = scmp.lt.s32.totalorder %s167, 23
        %s169 = scalar_select %p168, %s167, 23
        %s170 = smul.addr %s169, 4
        %s171 = scalar_lea.vmem %s1, %s170
        %s172 = smul.u32 12, %s10
      $region32: #{kernel_generated_2_forward.1} parent=23 // pred_fallthru
        _
    $region24: #{kernel_generated_2_forward.1} parent=5 // pred_fallthru
      _
    %p173 = scmp.le.s32.totalorder 1, %s10
    %p174 = scmp.lt.s32.totalorder %s10, 3
    %p175 = pnand %p173, %p174
    %p176 = pneg %p175
    // Predicated region
    $region33: #{kernel_generated_2_forward.1} parent=5 // pred_check
      _
    $region34: #{kernel_generated_2_forward.1} parent=5 // pred_check_branch
      %178 = sbr.rel (%p175) target = $region36
    $region35: #{kernel_generated_2_forward.1} parent=5 // pred_region
      %s179 = ssub.s32 %s10, 1
      %s180 = smul.u32 12, %s15
      %p181 = scmp.lt.s32.totalorder %s180, 23
      %s182 = scalar_select %p181, %s180, 23
      %s183 = smul.addr %s182, 4
      %s184 = scalar_lea.vmem %s0, %s183
      %p185 = pneg %p36
      %p186 = pneg %p33
      %s187 = smul.u32 12, %s15
      %p188 = scmp.lt.s32.totalorder %s187, 23
      %s189 = scalar_select %p188, %s187, 23
      %s190 = smul.addr %s189, 4
      %s191 = scalar_lea.vmem %s1, %s190
      %p192 = pneg %p62
      %p193 = pneg %p59
      %p194 = pneg %p83
      %p195 = pneg %p80
      %p196 = pneg %p104
      %p197 = pneg %p101
      %p198 = pneg %p130
      %p199 = pneg %p127
      %s200 = smul.u32 12, %s15
      %p201 = scmp.lt.s32.totalorder %s200, 23
      %s202 = scalar_select %p201, %s200, 23
      %s203 = smul.addr %s202, 25
      %s204 = smul.addr %s203, 8
      %s205 = scalar_lea.vmem %s4, %s204
      %s206 = smul.u32 12, %s15
      %p207 = scmp.lt.s32.totalorder %s206, 23
      %s208 = scalar_select %p207, %s206, 23
      %s209 = smul.addr %s208, 4
      %s210 = scalar_lea.vmem %s0, %s209
      %s211 = smul.u32 12, %s15
      %s212 = smul.u32 12, %s15
      %p213 = scmp.lt.s32.totalorder %s212, 23
      %s214 = scalar_select %p213, %s212, 23
      %s215 = smul.addr %s214, 4
      %s216 = scalar_lea.vmem %s1, %s215
      %s217 = smul.u32 12, %s15
      %s218 = smul.u32 12, %s15
      %p219 = scmp.lt.s32.totalorder %s218, 23
      %s220 = scalar_select %p219, %s218, 23
      %s221 = smul.addr %s220, 25
      %s222 = smul.addr %s221, 8
      %s223 = scalar_lea.vmem %s4, %s222
      %s224 = smul.u32 12, %s15
      %v226 = vld [vmem:[%s210] sm:$0xf]
      %v227 = vld [vmem:[%s210 + $0x4] sm:$0xf]
      %v228 = vld [vmem:[%s210 + $0x8] sm:$0xf]
      %v229 = vld [vmem:[%s210 + $0xc] sm:$0xf]
      %v230 = vld [vmem:[%s210 + $0x10] sm:$0xf]
      %v231 = vld [vmem:[%s210 + $0x14] sm:$0xf]
      %v232 = vld [vmem:[%s210 + $0x18] sm:$0xf]
      %v233 = vld [vmem:[%s210 + $0x1c] sm:$0xf]
      %v234 = vld [vmem:[%s210 + $0x20] sm:$0xf]
      %v235 = vld [vmem:[%s210 + $0x24] sm:$0xf]
      %v236 = vld [vmem:[%s210 + $0x28] sm:$0xf]
      %v237 = vld [vmem:[%s210 + $0x2c] sm:$0xf]
      %v238 = vld [vmem:[%s2] sm:$0xff]
      %v239 = vld [vmem:[%s2 + $0x8] sm:$0xff]
      %v240 = vld [vmem:[%s2 + $0x10] sm:$0xff]
      %v241 = vld [vmem:[%s2 + $0x18] sm:$0xff]
      %v242 = vld [vmem:[%s2 + $0x20] sm:$0xff]
      %v243 = vld [vmem:[%s2 + $0x28] sm:$0xff]
      %v244 = vld [vmem:[%s2 + $0x30] sm:$0xff]
      %v245 = vld [vmem:[%s2 + $0x38] sm:$0xff]
      %v246 = vld [vmem:[%s2 + $0x40] sm:$0xff]
      %v247 = vld [vmem:[%s2 + $0x48] sm:$0xff]
      %v248 = vld [vmem:[%s2 + $0x50] sm:$0xff]
      %v249 = vld [vmem:[%s2 + $0x58] sm:$0xff]
      %v250 = vld [vmem:[%s2 + $0x60] sm:$0xf]
      %v251 = vld [vmem:[%s2 + $0x64] sm:$0xff]
      %v252 = vld [vmem:[%s2 + $0x6c] sm:$0xff]
      %v253 = vld [vmem:[%s2 + $0x74] sm:$0xff]
      %v254 = vld [vmem:[%s2 + $0x7c] sm:$0xff]
      %v255 = vld [vmem:[%s2 + $0x84] sm:$0xff]
      %v256 = vld [vmem:[%s2 + $0x8c] sm:$0xff]
      %v257 = vld [vmem:[%s2 + $0x94] sm:$0xff]
      %v258 = vld [vmem:[%s2 + $0x9c] sm:$0xff]
      %v259 = vld [vmem:[%s2 + $0xa4] sm:$0xff]
      %v260 = vld [vmem:[%s2 + $0xac] sm:$0xff]
      %v261 = vld [vmem:[%s2 + $0xb4] sm:$0xff]
      %v262 = vld [vmem:[%s2 + $0xbc] sm:$0xff]
      %v263 = vld [vmem:[%s2 + $0xc4] sm:$0xf]
      %v264 = vld [vmem:[%s2 + $0xc8] sm:$0xff]
      %v265 = vld [vmem:[%s2 + $0xd0] sm:$0xff]
      %v266 = vld [vmem:[%s2 + $0xd8] sm:$0xff]
      %v267 = vld [vmem:[%s2 + $0xe0] sm:$0xff]
      %v268 = vld [vmem:[%s2 + $0xe8] sm:$0xff]
      %v269 = vld [vmem:[%s2 + $0xf0] sm:$0xff]
      %v270 = vld [vmem:[%s2 + $0xf8] sm:$0xff]
      %v271 = vld [vmem:[%s2 + $0x100] sm:$0xff]
      %v272 = vld [vmem:[%s2 + $0x108] sm:$0xff]
      %v273 = vld [vmem:[%s2 + $0x110] sm:$0xff]
      %v274 = vld [vmem:[%s2 + $0x118] sm:$0xff]
      %v275 = vld [vmem:[%s2 + $0x120] sm:$0xff]
      %v276 = vld [vmem:[%s2 + $0x128] sm:$0xf]
      %v277 = vld [vmem:[%s2 + $0x12c] sm:$0xff]
      %v278 = vld [vmem:[%s2 + $0x134] sm:$0xff]
      %v279 = vld [vmem:[%s2 + $0x13c] sm:$0xff]
      %v280 = vld [vmem:[%s2 + $0x144] sm:$0xff]
      %v281 = vld [vmem:[%s2 + $0x14c] sm:$0xff]
      %v282 = vld [vmem:[%s2 + $0x154] sm:$0xff]
      %v283 = vld [vmem:[%s2 + $0x15c] sm:$0xff]
      %v284 = vld [vmem:[%s2 + $0x164] sm:$0xff]
      %v285 = vld [vmem:[%s2 + $0x16c] sm:$0xff]
      %v286 = vld [vmem:[%s2 + $0x174] sm:$0xff]
      %v287 = vld [vmem:[%s2 + $0x17c] sm:$0xff]
      %v288 = vld [vmem:[%s2 + $0x184] sm:$0xff]
      %v289 = vld [vmem:[%s2 + $0x18c] sm:$0xf]
      %v290 = vld [vmem:[%s2 + $0x190] sm:$0xff]
      %v291 = vld [vmem:[%s2 + $0x198] sm:$0xff]
      %v292 = vld [vmem:[%s2 + $0x1a0] sm:$0xff]
      %v293 = vld [vmem:[%s2 + $0x1a8] sm:$0xff]
      %v294 = vld [vmem:[%s2 + $0x1b0] sm:$0xff]
      %v295 = vld [vmem:[%s2 + $0x1b8] sm:$0xff]
      %v296 = vld [vmem:[%s2 + $0x1c0] sm:$0xff]
      %v297 = vld [vmem:[%s2 + $0x1c8] sm:$0xff]
      %v298 = vld [vmem:[%s2 + $0x1d0] sm:$0xff]
      %v299 = vld [vmem:[%s2 + $0x1d8] sm:$0xff]
      %v300 = vld [vmem:[%s2 + $0x1e0] sm:$0xff]
      %v301 = vld [vmem:[%s2 + $0x1e8] sm:$0xff]
      %v302 = vld [vmem:[%s2 + $0x1f0] sm:$0xf]
      %v303 = vld [vmem:[%s2 + $0x1f4] sm:$0xff]
      %v304 = vld [vmem:[%s2 + $0x1fc] sm:$0xff]
      %v305 = vld [vmem:[%s2 + $0x204] sm:$0xff]
      %v306 = vld [vmem:[%s2 + $0x20c] sm:$0xff]
      %v307 = vld [vmem:[%s2 + $0x214] sm:$0xff]
      %v308 = vld [vmem:[%s2 + $0x21c] sm:$0xff]
      %v309 = vld [vmem:[%s2 + $0x224] sm:$0xff]
      %v310 = vld [vmem:[%s2 + $0x22c] sm:$0xff]
      %v311 = vld [vmem:[%s2 + $0x234] sm:$0xff]
      %v312 = vld [vmem:[%s2 + $0x23c] sm:$0xff]
      %v313 = vld [vmem:[%s2 + $0x244] sm:$0xff]
      %v314 = vld [vmem:[%s2 + $0x24c] sm:$0xff]
      %v315 = vld [vmem:[%s2 + $0x254] sm:$0xf]
      %v316 = vld [vmem:[%s216] sm:$0xf]
      %v317 = vld [vmem:[%s216 + $0x4] sm:$0xf]
      %v318 = vld [vmem:[%s216 + $0x8] sm:$0xf]
      %v319 = vld [vmem:[%s216 + $0xc] sm:$0xf]
      %v320 = vld [vmem:[%s216 + $0x10] sm:$0xf]
      %v321 = vld [vmem:[%s216 + $0x14] sm:$0xf]
      %v322 = vld [vmem:[%s216 + $0x18] sm:$0xf]
      %v323 = vld [vmem:[%s216 + $0x1c] sm:$0xf]
      %v324 = vld [vmem:[%s216 + $0x20] sm:$0xf]
      %v325 = vld [vmem:[%s216 + $0x24] sm:$0xf]
      %v326 = vld [vmem:[%s216 + $0x28] sm:$0xf]
      %v327 = vld [vmem:[%s216 + $0x2c] sm:$0xf]
      %v328 = vld [vmem:[%s3] sm:$0xff]
      %v329 = vld [vmem:[%s3 + $0x8] sm:$0xff]
      %v330 = vld [vmem:[%s3 + $0x10] sm:$0xff]
      %v331 = vld [vmem:[%s3 + $0x18] sm:$0xff]
      %v332 = vld [vmem:[%s3 + $0x20] sm:$0xff]
      %v333 = vld [vmem:[%s3 + $0x28] sm:$0xff]
      %v334 = vld [vmem:[%s3 + $0x30] sm:$0xff]
      %v335 = vld [vmem:[%s3 + $0x38] sm:$0xff]
      %v336 = vld [vmem:[%s3 + $0x40] sm:$0xff]
      %v337 = vld [vmem:[%s3 + $0x48] sm:$0xff]
      %v338 = vld [vmem:[%s3 + $0x50] sm:$0xff]
      %v339 = vld [vmem:[%s3 + $0x58] sm:$0xff]
      %v340 = vld [vmem:[%s3 + $0x60] sm:$0xf]
      %v341 = vld [vmem:[%s3 + $0x64] sm:$0xff]
      %v342 = vld [vmem:[%s3 + $0x6c] sm:$0xff]
      %v343 = vld [vmem:[%s3 + $0x74] sm:$0xff]
      %v344 = vld [vmem:[%s3 + $0x7c] sm:$0xff]
      %v345 = vld [vmem:[%s3 + $0x84] sm:$0xff]
      %v346 = vld [vmem:[%s3 + $0x8c] sm:$0xff]
      %v347 = vld [vmem:[%s3 + $0x94] sm:$0xff]
      %v348 = vld [vmem:[%s3 + $0x9c] sm:$0xff]
      %v349 = vld [vmem:[%s3 + $0xa4] sm:$0xff]
      %v350 = vld [vmem:[%s3 + $0xac] sm:$0xff]
      %v351 = vld [vmem:[%s3 + $0xb4] sm:$0xff]
      %v352 = vld [vmem:[%s3 + $0xbc] sm:$0xff]
      %v353 = vld [vmem:[%s3 + $0xc4] sm:$0xf]
      %v354 = vld [vmem:[%s3 + $0xc8] sm:$0xff]
      %v355 = vld [vmem:[%s3 + $0xd0] sm:$0xff]
      %v356 = vld [vmem:[%s3 + $0xd8] sm:$0xff]
      %v357 = vld [vmem:[%s3 + $0xe0] sm:$0xff]
      %v358 = vld [vmem:[%s3 + $0xe8] sm:$0xff]
      %v359 = vld [vmem:[%s3 + $0xf0] sm:$0xff]
      %v360 = vld [vmem:[%s3 + $0xf8] sm:$0xff]
      %v361 = vld [vmem:[%s3 + $0x100] sm:$0xff]
      %v362 = vld [vmem:[%s3 + $0x108] sm:$0xff]
      %v363 = vld [vmem:[%s3 + $0x110] sm:$0xff]
      %v364 = vld [vmem:[%s3 + $0x118] sm:$0xff]
      %v365 = vld [vmem:[%s3 + $0x120] sm:$0xff]
      %v366 = vld [vmem:[%s3 + $0x128] sm:$0xf]
      %v367 = vld [vmem:[%s3 + $0x12c] sm:$0xff]
      %v368 = vld [vmem:[%s3 + $0x134] sm:$0xff]
      %v369 = vld [vmem:[%s3 + $0x13c] sm:$0xff]
      %v370 = vld [vmem:[%s3 + $0x144] sm:$0xff]
      %v371 = vld [vmem:[%s3 + $0x14c] sm:$0xff]
      %v372 = vld [vmem:[%s3 + $0x154] sm:$0xff]
      %v373 = vld [vmem:[%s3 + $0x15c] sm:$0xff]
      %v374 = vld [vmem:[%s3 + $0x164] sm:$0xff]
      %v375 = vld [vmem:[%s3 + $0x16c] sm:$0xff]
      %v376 = vld [vmem:[%s3 + $0x174] sm:$0xff]
      %v377 = vld [vmem:[%s3 + $0x17c] sm:$0xff]
      %v378 = vld [vmem:[%s3 + $0x184] sm:$0xff]
      %v379 = vld [vmem:[%s3 + $0x18c] sm:$0xf]
      %v380 = vld [vmem:[%s3 + $0x190] sm:$0xff]
      %v381 = vld [vmem:[%s3 + $0x198] sm:$0xff]
      %v382 = vld [vmem:[%s3 + $0x1a0] sm:$0xff]
      %v383 = vld [vmem:[%s3 + $0x1a8] sm:$0xff]
      %v384 = vld [vmem:[%s3 + $0x1b0] sm:$0xff]
      %v385 = vld [vmem:[%s3 + $0x1b8] sm:$0xff]
      %v386 = vld [vmem:[%s3 + $0x1c0] sm:$0xff]
      %v387 = vld [vmem:[%s3 + $0x1c8] sm:$0xff]
      %v388 = vld [vmem:[%s3 + $0x1d0] sm:$0xff]
      %v389 = vld [vmem:[%s3 + $0x1d8] sm:$0xff]
      %v390 = vld [vmem:[%s3 + $0x1e0] sm:$0xff]
      %v391 = vld [vmem:[%s3 + $0x1e8] sm:$0xff]
      %v392 = vld [vmem:[%s3 + $0x1f0] sm:$0xf]
      %v393 = vld [vmem:[%s3 + $0x1f4] sm:$0xff]
      %v394 = vld [vmem:[%s3 + $0x1fc] sm:$0xff]
      %v395 = vld [vmem:[%s3 + $0x204] sm:$0xff]
      %v396 = vld [vmem:[%s3 + $0x20c] sm:$0xff]
      %v397 = vld [vmem:[%s3 + $0x214] sm:$0xff]
      %v398 = vld [vmem:[%s3 + $0x21c] sm:$0xff]
      %v399 = vld [vmem:[%s3 + $0x224] sm:$0xff]
      %v400 = vld [vmem:[%s3 + $0x22c] sm:$0xff]
      %v401 = vld [vmem:[%s3 + $0x234] sm:$0xff]
      %v402 = vld [vmem:[%s3 + $0x23c] sm:$0xff]
      %v403 = vld [vmem:[%s3 + $0x244] sm:$0xff]
      %v404 = vld [vmem:[%s3 + $0x24c] sm:$0xff]
      %v405 = vld [vmem:[%s3 + $0x254] sm:$0xf]
      %v418 = vunpack.c.l.b16 %v316
      %v419 = vunpack.c.l.b16 %v317
      %v420 = vunpack.c.l.b16 %v318
      %v421 = vunpack.c.l.b16 %v319
      %v422 = vunpack.c.l.b16 %v320
      %v423 = vunpack.c.l.b16 %v321
      %v424 = vunpack.c.l.b16 %v322
      %v425 = vunpack.c.l.b16 %v323
      %v426 = vunpack.c.l.b16 %v324
      %v427 = vunpack.c.l.b16 %v325
      %v428 = vunpack.c.l.b16 %v326
      %v429 = vunpack.c.l.b16 %v327
      %v430 = vpack.c.b16 %v419, %v418
      %v431 = vpack.c.b16 %v421, %v420
      %v432 = vpack.c.b16 %v423, %v422
      %v433 = vpack.c.b16 %v425, %v424
      %v434 = vpack.c.b16 %v427, %v426
      %v435 = vpack.c.b16 %v429, %v428
      %v514 = vunpack.c.l.b16 %v328
      %v515 = vunpack.c.h.b16 %v328
      %v516 = vunpack.c.l.b16 %v329
      %v517 = vunpack.c.h.b16 %v329
      %v518 = vunpack.c.l.b16 %v330
      %v519 = vunpack.c.h.b16 %v330
      %v520 = vunpack.c.l.b16 %v331
      %v521 = vunpack.c.h.b16 %v331
      %v522 = vunpack.c.l.b16 %v332
      %v523 = vunpack.c.h.b16 %v332
      %v524 = vunpack.c.l.b16 %v333
      %v525 = vunpack.c.h.b16 %v333
      %v526 = vunpack.c.l.b16 %v334
      %v527 = vunpack.c.h.b16 %v334
      %v528 = vunpack.c.l.b16 %v335
      %v529 = vunpack.c.h.b16 %v335
      %v530 = vunpack.c.l.b16 %v336
      %v531 = vunpack.c.h.b16 %v336
      %v532 = vunpack.c.l.b16 %v337
      %v533 = vunpack.c.h.b16 %v337
      %v534 = vunpack.c.l.b16 %v338
      %v535 = vunpack.c.h.b16 %v338
      %v536 = vunpack.c.l.b16 %v339
      %v537 = vunpack.c.h.b16 %v339
      %v538 = vunpack.c.l.b16 %v340
      %v539 = vunpack.c.l.b16 %v341
      %v540 = vunpack.c.h.b16 %v341
      %v541 = vunpack.c.l.b16 %v342
      %v542 = vunpack.c.h.b16 %v342
      %v543 = vunpack.c.l.b16 %v343
      %v544 = vunpack.c.h.b16 %v343
      %v545 = vunpack.c.l.b16 %v344
      %v546 = vunpack.c.h.b16 %v344
      %v547 = vunpack.c.l.b16 %v345
      %v548 = vunpack.c.h.b16 %v345
      %v549 = vunpack.c.l.b16 %v346
      %v550 = vunpack.c.h.b16 %v346
      %v551 = vunpack.c.l.b16 %v347
      %v552 = vunpack.c.h.b16 %v347
      %v553 = vunpack.c.l.b16 %v348
      %v554 = vunpack.c.h.b16 %v348
      %v555 = vunpack.c.l.b16 %v349
      %v556 = vunpack.c.h.b16 %v349
      %v557 = vunpack.c.l.b16 %v350
      %v558 = vunpack.c.h.b16 %v350
      %v559 = vunpack.c.l.b16 %v351
      %v560 = vunpack.c.h.b16 %v351
      %v561 = vunpack.c.l.b16 %v352
      %v562 = vunpack.c.h.b16 %v352
      %v563 = vunpack.c.l.b16 %v353
      %v564 = vunpack.c.l.b16 %v354
      %v565 = vunpack.c.h.b16 %v354
      %v566 = vunpack.c.l.b16 %v355
      %v567 = vunpack.c.h.b16 %v355
      %v568 = vunpack.c.l.b16 %v356
      %v569 = vunpack.c.h.b16 %v356
      %v570 = vunpack.c.l.b16 %v357
      %v571 = vunpack.c.h.b16 %v357
      %v572 = vunpack.c.l.b16 %v358
      %v573 = vunpack.c.h.b16 %v358
      %v574 = vunpack.c.l.b16 %v359
      %v575 = vunpack.c.h.b16 %v359
      %v576 = vunpack.c.l.b16 %v360
      %v577 = vunpack.c.h.b16 %v360
      %v578 = vunpack.c.l.b16 %v361
      %v579 = vunpack.c.h.b16 %v361
      %v580 = vunpack.c.l.b16 %v362
      %v581 = vunpack.c.h.b16 %v362
      %v582 = vunpack.c.l.b16 %v363
      %v583 = vunpack.c.h.b16 %v363
      %v584 = vunpack.c.l.b16 %v364
      %v585 = vunpack.c.h.b16 %v364
      %v586 = vunpack.c.l.b16 %v365
      %v587 = vunpack.c.h.b16 %v365
      %v588 = vunpack.c.l.b16 %v366
      %v589 = vunpack.c.l.b16 %v367
      %v590 = vunpack.c.h.b16 %v367
      %v591 = vunpack.c.l.b16 %v368
      %v592 = vunpack.c.h.b16 %v368
      %v593 = vunpack.c.l.b16 %v369
      %v594 = vunpack.c.h.b16 %v369
      %v595 = vunpack.c.l.b16 %v370
      %v596 = vunpack.c.h.b16 %v370
      %v597 = vunpack.c.l.b16 %v371
      %v598 = vunpack.c.h.b16 %v371
      %v599 = vunpack.c.l.b16 %v372
      %v600 = vunpack.c.h.b16 %v372
      %v601 = vunpack.c.l.b16 %v373
      %v602 = vunpack.c.h.b16 %v373
      %v603 = vunpack.c.l.b16 %v374
      %v604 = vunpack.c.h.b16 %v374
      %v605 = vunpack.c.l.b16 %v375
      %v606 = vunpack.c.h.b16 %v375
      %v607 = vunpack.c.l.b16 %v376
      %v608 = vunpack.c.h.b16 %v376
      %v609 = vunpack.c.l.b16 %v377
      %v610 = vunpack.c.h.b16 %v377
      %v611 = vunpack.c.l.b16 %v378
      %v612 = vunpack.c.h.b16 %v378
      %v613 = vunpack.c.l.b16 %v379
      %v614 = vunpack.c.l.b16 %v380
      %v615 = vunpack.c.h.b16 %v380
      %v616 = vunpack.c.l.b16 %v381
      %v617 = vunpack.c.h.b16 %v381
      %v618 = vunpack.c.l.b16 %v382
      %v619 = vunpack.c.h.b16 %v382
      %v620 = vunpack.c.l.b16 %v383
      %v621 = vunpack.c.h.b16 %v383
      %v622 = vunpack.c.l.b16 %v384
      %v623 = vunpack.c.h.b16 %v384
      %v624 = vunpack.c.l.b16 %v385
      %v625 = vunpack.c.h.b16 %v385
      %v626 = vunpack.c.l.b16 %v386
      %v627 = vunpack.c.h.b16 %v386
      %v628 = vunpack.c.l.b16 %v387
      %v629 = vunpack.c.h.b16 %v387
      %v630 = vunpack.c.l.b16 %v388
      %v631 = vunpack.c.h.b16 %v388
      %v632 = vunpack.c.l.b16 %v389
      %v633 = vunpack.c.h.b16 %v389
      %v634 = vunpack.c.l.b16 %v390
      %v635 = vunpack.c.h.b16 %v390
      %v636 = vunpack.c.l.b16 %v391
      %v637 = vunpack.c.h.b16 %v391
      %v638 = vunpack.c.l.b16 %v392
      %v639 = vunpack.c.l.b16 %v393
      %v640 = vunpack.c.h.b16 %v393
      %v641 = vunpack.c.l.b16 %v394
      %v642 = vunpack.c.h.b16 %v394
      %v643 = vunpack.c.l.b16 %v395
      %v644 = vunpack.c.h.b16 %v395
      %v645 = vunpack.c.l.b16 %v396
      %v646 = vunpack.c.h.b16 %v396
      %v647 = vunpack.c.l.b16 %v397
      %v648 = vunpack.c.h.b16 %v397
      %v649 = vunpack.c.l.b16 %v398
      %v650 = vunpack.c.h.b16 %v398
      %v651 = vunpack.c.l.b16 %v399
      %v652 = vunpack.c.h.b16 %v399
      %v653 = vunpack.c.l.b16 %v400
      %v654 = vunpack.c.h.b16 %v400
      %v655 = vunpack.c.l.b16 %v401
      %v656 = vunpack.c.h.b16 %v401
      %v657 = vunpack.c.l.b16 %v402
      %v658 = vunpack.c.h.b16 %v402
      %v659 = vunpack.c.l.b16 %v403
      %v660 = vunpack.c.h.b16 %v403
      %v661 = vunpack.c.l.b16 %v404
      %v662 = vunpack.c.h.b16 %v404
      %v663 = vunpack.c.l.b16 %v405
      %v664 = vpack.c.b16 %v539, %v514
      %v665 = vpack.c.b16 %v540, %v515
      %v666 = vpack.c.b16 %v541, %v516
      %v667 = vpack.c.b16 %v542, %v517
      %v668 = vpack.c.b16 %v543, %v518
      %v669 = vpack.c.b16 %v544, %v519
      %v670 = vpack.c.b16 %v545, %v520
      %v671 = vpack.c.b16 %v546, %v521
      %v672 = vpack.c.b16 %v547, %v522
      %v673 = vpack.c.b16 %v548, %v523
      %v674 = vpack.c.b16 %v549, %v524
      %v675 = vpack.c.b16 %v550, %v525
      %v676 = vpack.c.b16 %v551, %v526
      %v677 = vpack.c.b16 %v552, %v527
      %v678 = vpack.c.b16 %v553, %v528
      %v679 = vpack.c.b16 %v554, %v529
      %v680 = vpack.c.b16 %v555, %v530
      %v681 = vpack.c.b16 %v556, %v531
      %v682 = vpack.c.b16 %v557, %v532
      %v683 = vpack.c.b16 %v558, %v533
      %v684 = vpack.c.b16 %v559, %v534
      %v685 = vpack.c.b16 %v560, %v535
      %v686 = vpack.c.b16 %v561, %v536
      %v687 = vpack.c.b16 %v562, %v537
      %v688 = vpack.c.b16 %v563, %v538
      %v689 = vpack.c.b16 %v589, %v564
      %v690 = vpack.c.b16 %v590, %v565
      %v691 = vpack.c.b16 %v591, %v566
      %v692 = vpack.c.b16 %v592, %v567
      %v693 = vpack.c.b16 %v593, %v568
      %v694 = vpack.c.b16 %v594, %v569
      %v695 = vpack.c.b16 %v595, %v570
      %v696 = vpack.c.b16 %v596, %v571
      %v697 = vpack.c.b16 %v597, %v572
      %v698 = vpack.c.b16 %v598, %v573
      %v699 = vpack.c.b16 %v599, %v574
      %v700 = vpack.c.b16 %v600, %v575
      %v701 = vpack.c.b16 %v601, %v576
      %v702 = vpack.c.b16 %v602, %v577
      %v703 = vpack.c.b16 %v603, %v578
      %v704 = vpack.c.b16 %v604, %v579
      %v705 = vpack.c.b16 %v605, %v580
      %v706 = vpack.c.b16 %v606, %v581
      %v707 = vpack.c.b16 %v607, %v582
      %v708 = vpack.c.b16 %v608, %v583
      %v709 = vpack.c.b16 %v609, %v584
      %v710 = vpack.c.b16 %v610, %v585
      %v711 = vpack.c.b16 %v611, %v586
      %v712 = vpack.c.b16 %v612, %v587
      %v713 = vpack.c.b16 %v613, %v588
      %v714 = vpack.c.b16 %v639, %v614
      %v715 = vpack.c.b16 %v640, %v615
      %v716 = vpack.c.b16 %v641, %v616
      %v717 = vpack.c.b16 %v642, %v617
      %v718 = vpack.c.b16 %v643, %v618
      %v719 = vpack.c.b16 %v644, %v619
      %v720 = vpack.c.b16 %v645, %v620
      %v721 = vpack.c.b16 %v646, %v621
      %v722 = vpack.c.b16 %v647, %v622
      %v723 = vpack.c.b16 %v648, %v623
      %v724 = vpack.c.b16 %v649, %v624
      %v725 = vpack.c.b16 %v650, %v625
      %v726 = vpack.c.b16 %v651, %v626
      %v727 = vpack.c.b16 %v652, %v627
      %v728 = vpack.c.b16 %v653, %v628
      %v729 = vpack.c.b16 %v654, %v629
      %v730 = vpack.c.b16 %v655, %v630
      %v731 = vpack.c.b16 %v656, %v631
      %v732 = vpack.c.b16 %v657, %v632
      %v733 = vpack.c.b16 %v658, %v633
      %v734 = vpack.c.b16 %v659, %v634
      %v735 = vpack.c.b16 %v660, %v635
      %v736 = vpack.c.b16 %v661, %v636
      %v737 = vpack.c.b16 %v662, %v637
      %v738 = vpack.c.b16 %v663, %v638
      %vm814 = vcmask 392192
      %v816 = vsel %vm814, %v430, 0
      %v819 = vsel %vm814, %v431, 0
      %v822 = vsel %vm814, %v432, 0
      %v825 = vsel %vm814, %v433, 0
      %v828 = vsel %vm814, %v434, 0
      %v831 = vsel %vm814, %v435, 0
      %833 = vmatprep.subr.bf16.mxu0 %v665
      %834 = vmatpush1.bf16.msra.mxu0 %v664
      %835 = vmatprep.subr.bf16.mxu0 %v690
      %836 = vmatpush1.bf16.msra.mxu0 %v689
      %837 = vmatprep.subr.bf16.mxu0 %v715
      %838 = vmatpush1.bf16.msra.mxu0 %v714
      %839 = vmatprep.subr.bf16.mxu0 0
      %840 = vmatpush1.bf16.msra.mxu0 0
      %841 = vmatprep.subr.bf16.mxu0 0
      %842 = vmatpush1.bf16.msra.mxu0 0
      %843 = vmatprep.subr.bf16.mxu0 0
      %844 = vmatpush1.bf16.msra.mxu0 0
      %845 = vmatprep.subr.bf16.mxu0 0
      %846 = vmatpush1.bf16.msra.mxu0 0
      %847 = vmatprep.subr.bf16.mxu0 0
      %848 = vmatpush1.bf16.msra.mxu0 0
      %849 = vmatprep.subr.bf16.mxu0 0
      %850 = vmatpush1.bf16.msra.mxu0 0
      %851 = vmatprep.subr.bf16.mxu0 0
      %852 = vmatpush1.bf16.msra.mxu0 0
      %853 = vmatprep.subr.bf16.mxu0 0
      %854 = vmatpush1.bf16.msra.mxu0 0
      %855 = vmatprep.subr.bf16.mxu0 0
      %856 = vmatpush1.bf16.msra.mxu0 0
      %857 = vmatprep.subr.bf16.mxu0 0
      %858 = vmatpush1.bf16.msra.mxu0 0
      %859 = vmatprep.subr.bf16.mxu0 0
      %860 = vmatpush1.bf16.msra.mxu0 0
      %861 = vmatprep.subr.bf16.mxu0 0
      %862 = vmatpush1.bf16.msra.mxu0 0
      %863 = vmatprep.subr.bf16.mxu0 0
      %864 = vmatpush1.bf16.msra.mxu0 0
      %865 = vmatprep.mubr.bf16.mxu0 0
      %866 = vmatmul.mubr.bf16.gmra.mrb[0].mxu0 %v816
      %v867 = vpop.f32.mrb[0].mxu0
      %v868 = vadd.f32 0.0, %v867
      %v869 = vpop.f32.mrb[0].mxu0
      %v870 = vadd.f32 0.0, %v869
      %v871 = vpop.f32.mrb[0].mxu0
      %v872 = vadd.f32 0.0, %v871
      %v873 = vpop.f32.mrb[0].mxu0
      %v874 = vadd.f32 0.0, %v873
      %875 = vmatprep.mubr.bf16.mxu0 0
      %876 = vmatmul.mubr.bf16.gmra.mrb[0].mxu0 %v819
      %v877 = vpop.f32.mrb[0].mxu0
      %v878 = vadd.f32 0.0, %v877
      %v879 = vpop.f32.mrb[0].mxu0
      %v880 = vadd.f32 0.0, %v879
      %v881 = vpop.f32.mrb[0].mxu0
      %v882 = vadd.f32 0.0, %v881
      %v883 = vpop.f32.mrb[0].mxu0
      %v884 = vadd.f32 0.0, %v883
      %885 = vmatprep.mubr.bf16.mxu0 0
      %886 = vmatmul.mubr.bf16.gmra.mrb[0].mxu0 %v822
      %v887 = vpop.f32.mrb[0].mxu0
      %v888 = vadd.f32 0.0, %v887
      %v889 = vpop.f32.mrb[0].mxu0
      %v890 = vadd.f32 0.0, %v889
      %v891 = vpop.f32.mrb[0].mxu0
      %v892 = vadd.f32 0.0, %v891
      %v893 = vpop.f32.mrb[0].mxu0
      %v894 = vadd.f32 0.0, %v893
      %895 = vmatprep.mubr.bf16.mxu0 0
      %896 = vmatmul.mubr.bf16.gmra.mrb[0].mxu0 %v825
      %v897 = vpop.f32.mrb[0].mxu0
      %v898 = vadd.f32 0.0, %v897
      %v899 = vpop.f32.mrb[0].mxu0
      %v900 = vadd.f32 0.0, %v899
      %v901 = vpop.f32.mrb[0].mxu0
      %v902 = vadd.f32 0.0, %v901
      %v903 = vpop.f32.mrb[0].mxu0
      %v904 = vadd.f32 0.0, %v903
      %905 = vmatprep.mubr.bf16.mxu0 0
      %906 = vmatmul.mubr.bf16.gmra.mrb[0].mxu0 %v828
      %v907 = vpop.f32.mrb[0].mxu0
      %v908 = vadd.f32 0.0, %v907
      %v909 = vpop.f32.mrb[0].mxu0
      %v910 = vadd.f32 0.0, %v909
      %v911 = vpop.f32.mrb[0].mxu0
      %v912 = vadd.f32 0.0, %v911
      %v913 = vpop.f32.mrb[0].mxu0
      %v914 = vadd.f32 0.0, %v913
      %915 = vmatprep.mubr.bf16.mxu0 0
      %916 = vmatmul.mubr.bf16.gmra.mrb[0].mxu0 %v831
      %v917 = vpop.f32.mrb[0].mxu0
      %v918 = vadd.f32 0.0, %v917
      %v919 = vpop.f32.mrb[0].mxu0
      %v920 = vadd.f32 0.0, %v919
      %v921 = vpop.f32.mrb[0].mxu0
      %v922 = vadd.f32 0.0, %v921
      %v923 = vpop.f32.mrb[0].mxu0
      %v924 = vadd.f32 0.0, %v923
      %925 = vdwg.mxu0
      %926 = vmatprep.subr.bf16.mxu0 %v667
      %927 = vmatpush1.bf16.msra.mxu0 %v666
      %928 = vmatprep.subr.bf16.mxu0 %v692
      %929 = vmatpush1.bf16.msra.mxu0 %v691
      %930 = vmatprep.subr.bf16.mxu0 %v717
      %931 = vmatpush1.bf16.msra.mxu0 %v716
      %932 = vmatprep.subr.bf16.mxu0 0
      %933 = vmatpush1.bf16.msra.mxu0 0
      %934 = vmatprep.subr.bf16.mxu0 0
      %935 = vmatpush1.bf16.msra.mxu0 0
      %936 = vmatprep.subr.bf16.mxu0 0
      %937 = vmatpush1.bf16.msra.mxu0 0
      %938 = vmatprep.subr.bf16.mxu0 0
      %939 = vmatpush1.bf16.msra.mxu0 0
      %940 = vmatprep.subr.bf16.mxu0 0
      %941 = vmatpush1.bf16.msra.mxu0 0
      %942 = vmatprep.subr.bf16.mxu0 0
      %943 = vmatpush1.bf16.msra.mxu0 0
      %944 = vmatprep.subr.bf16.mxu0 0
      %945 = vmatpush1.bf16.msra.mxu0 0
      %946 = vmatprep.subr.bf16.mxu0 0
      %947 = vmatpush1.bf16.msra.mxu0 0
      %948 = vmatprep.subr.bf16.mxu0 0
      %949 = vmatpush1.bf16.msra.mxu0 0
      %950 = vmatprep.subr.bf16.mxu0 0
      %951 = vmatpush1.bf16.msra.mxu0 0
      %952 = vmatprep.subr.bf16.mxu0 0
      %953 = vmatpush1.bf16.msra.mxu0 0
      %954 = vmatprep.subr.bf16.mxu0 0
      %955 = vmatpush1.bf16.msra.mxu0 0
      %956 = vmatprep.subr.bf16.mxu0 0
      %957 = vmatpush1.bf16.msra.mxu0 0
      %958 = vmatprep.mubr.bf16.mxu0 0
      %959 = vmatmul.mubr.bf16.gmra.mrb[0].mxu0 %v816
      %v960 = vpop.f32.mrb[0].mxu0
      %v961 = vadd.f32 0.0, %v960
      %v962 = vpop.f32.mrb[0].mxu0
      %v963 = vadd.f32 0.0, %v962
      %v964 = vpop.f32.mrb[0].mxu0
      %v965 = vadd.f32 0.0, %v964
      %v966 = vpop.f32.mrb[0].mxu0
      %v967 = vadd.f32 0.0, %v966
      %968 = vmatprep.mubr.bf16.mxu0 0
      %969 = vmatmul.mubr.bf16.gmra.mrb[0].mxu0 %v819
      %v970 = vpop.f32.mrb[0].mxu0
      %v971 = vadd.f32 0.0, %v970
      %v972 = vpop.f32.mrb[0].mxu0
      %v973 = vadd.f32 0.0, %v972
      %v974 = vpop.f32.mrb[0].mxu0
      %v975 = vadd.f32 0.0, %v974
      %v976 = vpop.f32.mrb[0].mxu0
      %v977 = vadd.f32 0.0, %v976
      %978 = vmatprep.mubr.bf16.mxu0 0
      %979 = vmatmul.mubr.bf16.gmra.mrb[0].mxu0 %v822
      %v980 = vpop.f32.mrb[0].mxu0
      %v981 = vadd.f32 0.0, %v980
      %v982 = vpop.f32.mrb[0].mxu0
      %v983 = vadd.f32 0.0, %v982
      %v984 = vpop.f32.mrb[0].mxu0
      %v985 = vadd.f32 0.0, %v984
      %v986 = vpop.f32.mrb[0].mxu0
      %v987 = vadd.f32 0.0, %v986
      %988 = vmatprep.mubr.bf16.mxu0 0
      %989 = vmatmul.mubr.bf16.gmra.mrb[0].mxu0 %v825
      %v990 = vpop.f32.mrb[0].mxu0
      %v991 = vadd.f32 0.0, %v990
      %v992 = vpop.f32.mrb[0].mxu0
      %v993 = vadd.f32 0.0, %v992
      %v994 = vpop.f32.mrb[0].mxu0
      %v995 = vadd.f32 0.0, %v994
      %v996 = vpop.f32.mrb[0].mxu0
      %v997 = vadd.f32 0.0, %v996
      %998 = vmatprep.mubr.bf16.mxu0 0
      %999 = vmatmul.mubr.bf16.gmra.mrb[0].mxu0 %v828
      %v1000 = vpop.f32.mrb[0].mxu0
      %v1001 = vadd.f32 0.0, %v1000
      %v1002 = vpop.f32.mrb[0].mxu0
      %v1003 = vadd.f32 0.0, %v1002
      %v1004 = vpop.f32.mrb[0].mxu0
      %v1005 = vadd.f32 0.0, %v1004
      %v1006 = vpop.f32.mrb[0].mxu0
      %v1007 = vadd.f32 0.0, %v1006
      %1008 = vmatprep.mubr.bf16.mxu0 0
      %1009 = vmatmul.mubr.bf16.gmra.mrb[0].mxu0 %v831
      %v1010 = vpop.f32.mrb[0].mxu0
      %v1011 = vadd.f32 0.0, %v1010
      %v1012 = vpop.f32.mrb[0].mxu0
      %v1013 = vadd.f32 0.0, %v1012
      %v1014 = vpop.f32.mrb[0].mxu0
      %v1015 = vadd.f32 0.0, %v1014
      %v1016 = vpop.f32.mrb[0].mxu0
      %v1017 = vadd.f32 0.0, %v1016
      %1018 = vdwg.mxu0
      %1019 = vmatprep.subr.bf16.mxu0 %v669
      %1020 = vmatpush1.bf16.msra.mxu0 %v668
      %1021 = vmatprep.subr.bf16.mxu0 %v694
      %1022 = vmatpush1.bf16.msra.mxu0 %v693
      %1023 = vmatprep.subr.bf16.mxu0 %v719
      %1024 = vmatpush1.bf16.msra.mxu0 %v718
      %1025 = vmatprep.subr.bf16.mxu0 0
      %1026 = vmatpush1.bf16.msra.mxu0 0
      %1027 = vmatprep.subr.bf16.mxu0 0
      %1028 = vmatpush1.bf16.msra.mxu0 0
      %1029 = vmatprep.subr.bf16.mxu0 0
      %1030 = vmatpush1.bf16.msra.mxu0 0
      %1031 = vmatprep.subr.bf16.mxu0 0
      %1032 = vmatpush1.bf16.msra.mxu0 0
      %1033 = vmatprep.subr.bf16.mxu0 0
      %1034 = vmatpush1.bf16.msra.mxu0 0
      %1035 = vmatprep.subr.bf16.mxu0 0
      %1036 = vmatpush1.bf16.msra.mxu0 0
      %1037 = vmatprep.subr.bf16.mxu0 0
      %1038 = vmatpush1.bf16.msra.mxu0 0
      %1039 = vmatprep.subr.bf16.mxu0 0
      %1040 = vmatpush1.bf16.msra.mxu0 0
      %1041 = vmatprep.subr.bf16.mxu0 0
      %1042 = vmatpush1.bf16.msra.mxu0 0
      %1043 = vmatprep.subr.bf16.mxu0 0
      %1044 = vmatpush1.bf16.msra.mxu0 0
      %1045 = vmatprep.subr.bf16.mxu0 0
      %1046 = vmatpush1.bf16.msra.mxu0 0
      %1047 = vmatprep.subr.bf16.mxu0 0
      %1048 = vmatpush1.bf16.msra.mxu0 0
      %1049 = vmatprep.subr.bf16.mxu0 0
      %1050 = vmatpush1.bf16.msra.mxu0 0
      %1051 = vmatprep.mubr.bf16.mxu0 0
      %1052 = vmatmul.mubr.bf16.gmra.mrb[0].mxu0 %v816
      %v1053 = vpop.f32.mrb[0].mxu0
      %v1054 = vadd.f32 0.0, %v1053
      %v1055 = vpop.f32.mrb[0].mxu0
      %v1056 = vadd.f32 0.0, %v1055
      %v1057 = vpop.f32.mrb[0].mxu0
      %v1058 = vadd.f32 0.0, %v1057
      %v1059 = vpop.f32.mrb[0].mxu0
      %v1060 = vadd.f32 0.0, %v1059
      %1061 = vmatprep.mubr.bf16.mxu0 0
      %1062 = vmatmul.mubr.bf16.gmra.mrb[0].mxu0 %v819
      %v1063 = vpop.f32.mrb[0].mxu0
      %v1064 = vadd.f32 0.0, %v1063
      %v1065 = vpop.f32.mrb[0].mxu0
      %v1066 = vadd.f32 0.0, %v1065
      %v1067 = vpop.f32.mrb[0].mxu0
      %v1068 = vadd.f32 0.0, %v1067
      %v1069 = vpop.f32.mrb[0].mxu0
      %v1070 = vadd.f32 0.0, %v1069
      %1071 = vmatprep.mubr.bf16.mxu0 0
      %1072 = vmatmul.mubr.bf16.gmra.mrb[0].mxu0 %v822
      %v1073 = vpop.f32.mrb[0].mxu0
      %v1074 = vadd.f32 0.0, %v1073
      %v1075 = vpop.f32.mrb[0].mxu0
      %v1076 = vadd.f32 0.0, %v1075
      %v1077 = vpop.f32.mrb[0].mxu0
      %v1078 = vadd.f32 0.0, %v1077
      %v1079 = vpop.f32.mrb[0].mxu0
      %v1080 = vadd.f32 0.0, %v1079
      %1081 = vmatprep.mubr.bf16.mxu0 0
      %1082 = vmatmul.mubr.bf16.gmra.mrb[0].mxu0 %v825
      %v1083 = vpop.f32.mrb[0].mxu0
      %v1084 = vadd.f32 0.0, %v1083
      %v1085 = vpop.f32.mrb[0].mxu0
      %v1086 = vadd.f32 0.0, %v1085
      %v1087 = vpop.f32.mrb[0].mxu0
      %v1088 = vadd.f32 0.0, %v1087
      %v1089 = vpop.f32.mrb[0].mxu0
      %v1090 = vadd.f32 0.0, %v1089
      %1091 = vmatprep.mubr.bf16.mxu0 0
      %1092 = vmatmul.mubr.bf16.gmra.mrb[0].mxu0 %v828
      %v1093 = vpop.f32.mrb[0].mxu0
      %v1094 = vadd.f32 0.0, %v1093
      %v1095 = vpop.f32.mrb[0].mxu0
      %v1096 = vadd.f32 0.0, %v1095
      %v1097 = vpop.f32.mrb[0].mxu0
      %v1098 = vadd.f32 0.0, %v1097
      %v1099 = vpop.f32.mrb[0].mxu0
      %v1100 = vadd.f32 0.0, %v1099
      %1101 = vmatprep.mubr.bf16.mxu0 0
      %1102 = vmatmul.mubr.bf16.gmra.mrb[0].mxu0 %v831
      %v1103 = vpop.f32.mrb[0].mxu0
      %v1104 = vadd.f32 0.0, %v1103
      %v1105 = vpop.f32.mrb[0].mxu0
      %v1106 = vadd.f32 0.0, %v1105
      %v1107 = vpop.f32.mrb[0].mxu0
      %v1108 = vadd.f32 0.0, %v1107
      %v1109 = vpop.f32.mrb[0].mxu0
      %v1110 = vadd.f32 0.0, %v1109
      %1111 = vdwg.mxu0
      %1112 = vmatprep.subr.bf16.mxu0 %v671
      %1113 = vmatpush1.bf16.msra.mxu0 %v670
      %1114 = vmatprep.subr.bf16.mxu0 %v696
      %1115 = vmatpush1.bf16.msra.mxu0 %v695
      %1116 = vmatprep.subr.bf16.mxu0 %v721
      %1117 = vmatpush1.bf16.msra.mxu0 %v720
      %1118 = vmatprep.subr.bf16.mxu0 0
      %1119 = vmatpush1.bf16.msra.mxu0 0
      %1120 = vmatprep.subr.bf16.mxu0 0
      %1121 = vmatpush1.bf16.msra.mxu0 0
      %1122 = vmatprep.subr.bf16.mxu0 0
      %1123 = vmatpush1.bf16.msra.mxu0 0
      %1124 = vmatprep.subr.bf16.mxu0 0
      %1125 = vmatpush1.bf16.msra.mxu0 0
      %1126 = vmatprep.subr.bf16.mxu0 0
      %1127 = vmatpush1.bf16.msra.mxu0 0
      %1128 = vmatprep.subr.bf16.mxu0 0
      %1129 = vmatpush1.bf16.msra.mxu0 0
      %1130 = vmatprep.subr.bf16.mxu0 0
      %1131 = vmatpush1.bf16.msra.mxu0 0
      %1132 = vmatprep.subr.bf16.mxu0 0
      %1133 = vmatpush1.bf16.msra.mxu0 0
      %1134 = vmatprep.subr.bf16.mxu0 0
      %1135 = vmatpush1.bf16.msra.mxu0 0
      %1136 = vmatprep.subr.bf16.mxu0 0
      %1137 = vmatpush1.bf16.msra.mxu0 0
      %1138 = vmatprep.subr.bf16.mxu0 0
      %1139 = vmatpush1.bf16.msra.mxu0 0
      %1140 = vmatprep.subr.bf16.mxu0 0
      %1141 = vmatpush1.bf16.msra.mxu0 0
      %1142 = vmatprep.subr.bf16.mxu0 0
      %1143 = vmatpush1.bf16.msra.mxu0 0
      %1144 = vmatprep.mubr.bf16.mxu0 0
      %1145 = vmatmul.mubr.bf16.gmra.mrb[0].mxu0 %v816
      %v1146 = vpop.f32.mrb[0].mxu0
      %v1147 = vadd.f32 0.0, %v1146
      %v1148 = vpop.f32.mrb[0].mxu0
      %v1149 = vadd.f32 0.0, %v1148
      %v1150 = vpop.f32.mrb[0].mxu0
      %v1151 = vadd.f32 0.0, %v1150
      %v1152 = vpop.f32.mrb[0].mxu0
      %v1153 = vadd.f32 0.0, %v1152
      %1154 = vmatprep.mubr.bf16.mxu0 0
      %1155 = vmatmul.mubr.bf16.gmra.mrb[0].mxu0 %v819
      %v1156 = vpop.f32.mrb[0].mxu0
      %v1157 = vadd.f32 0.0, %v1156
      %v1158 = vpop.f32.mrb[0].mxu0
      %v1159 = vadd.f32 0.0, %v1158
      %v1160 = vpop.f32.mrb[0].mxu0
      %v1161 = vadd.f32 0.0, %v1160
      %v1162 = vpop.f32.mrb[0].mxu0
      %v1163 = vadd.f32 0.0, %v1162
      %1164 = vmatprep.mubr.bf16.mxu0 0
      %1165 = vmatmul.mubr.bf16.gmra.mrb[0].mxu0 %v822
      %v1166 = vpop.f32.mrb[0].mxu0
      %v1167 = vadd.f32 0.0, %v1166
      %v1168 = vpop.f32.mrb[0].mxu0
      %v1169 = vadd.f32 0.0, %v1168
      %v1170 = vpop.f32.mrb[0].mxu0
      %v1171 = vadd.f32 0.0, %v1170
      %v1172 = vpop.f32.mrb[0].mxu0
      %v1173 = vadd.f32 0.0, %v1172
      %1174 = vmatprep.mubr.bf16.mxu0 0
      %1175 = vmatmul.mubr.bf16.gmra.mrb[0].mxu0 %v825
      %v1176 = vpop.f32.mrb[0].mxu0
      %v1177 = vadd.f32 0.0, %v1176
      %v1178 = vpop.f32.mrb[0].mxu0
      %v1179 = vadd.f32 0.0, %v1178
      %v1180 = vpop.f32.mrb[0].mxu0
      %v1181 = vadd.f32 0.0, %v1180
      %v1182 = vpop.f32.mrb[0].mxu0
      %v1183 = vadd.f32 0.0, %v1182
      %1184 = vmatprep.mubr.bf16.mxu0 0
      %1185 = vmatmul.mubr.bf16.gmra.mrb[0].mxu0 %v828
      %v1186 = vpop.f32.mrb[0].mxu0
      %v1187 = vadd.f32 0.0, %v1186
      %v1188 = vpop.f32.mrb[0].mxu0
      %v1189 = vadd.f32 0.0, %v1188
      %v1190 = vpop.f32.mrb[0].mxu0
      %v1191 = vadd.f32 0.0, %v1190
      %v1192 = vpop.f32.mrb[0].mxu0
      %v1193 = vadd.f32 0.0, %v1192
      %1194 = vmatprep.mubr.bf16.mxu0 0
      %1195 = vmatmul.mubr.bf16.gmra.mrb[0].mxu0 %v831
      %v1196 = vpop.f32.mrb[0].mxu0
      %v1197 = vadd.f32 0.0, %v1196
      %v1198 = vpop.f32.mrb[0].mxu0
      %v1199 = vadd.f32 0.0, %v1198
      %v1200 = vpop.f32.mrb[0].mxu0
      %v1201 = vadd.f32 0.0, %v1200
      %v1202 = vpop.f32.mrb[0].mxu0
      %v1203 = vadd.f32 0.0, %v1202
      %1204 = vdwg.mxu0
      %1205 = vmatprep.subr.bf16.mxu0 %v673
      %1206 = vmatpush1.bf16.msra.mxu0 %v672
      %1207 = vmatprep.subr.bf16.mxu0 %v698
      %1208 = vmatpush1.bf16.msra.mxu0 %v697
      %1209 = vmatprep.subr.bf16.mxu0 %v723
      %1210 = vmatpush1.bf16.msra.mxu0 %v722
      %1211 = vmatprep.subr.bf16.mxu0 0
      %1212 = vmatpush1.bf16.msra.mxu0 0
      %1213 = vmatprep.subr.bf16.mxu0 0
      %1214 = vmatpush1.bf16.msra.mxu0 0
      %1215 = vmatprep.subr.bf16.mxu0 0
      %1216 = vmatpush1.bf16.msra.mxu0 0
      %1217 = vmatprep.subr.bf16.mxu0 0
      %1218 = vmatpush1.bf16.msra.mxu0 0
      %1219 = vmatprep.subr.bf16.mxu0 0
      %1220 = vmatpush1.bf16.msra.mxu0 0
      %1221 = vmatprep.subr.bf16.mxu0 0
      %1222 = vmatpush1.bf16.msra.mxu0 0
      %1223 = vmatprep.subr.bf16.mxu0 0
      %1224 = vmatpush1.bf16.msra.mxu0 0
      %1225 = vmatprep.subr.bf16.mxu0 0
      %1226 = vmatpush1.bf16.msra.mxu0 0
      %1227 = vmatprep.subr.bf16.mxu0 0
      %1228 = vmatpush1.bf16.msra.mxu0 0
      %1229 = vmatprep.subr.bf16.mxu0 0
      %1230 = vmatpush1.bf16.msra.mxu0 0
      %1231 = vmatprep.subr.bf16.mxu0 0
      %1232 = vmatpush1.bf16.msra.mxu0 0
      %1233 = vmatprep.subr.bf16.mxu0 0
      %1234 = vmatpush1.bf16.msra.mxu0 0
      %1235 = vmatprep.subr.bf16.mxu0 0
      %1236 = vmatpush1.bf16.msra.mxu0 0
      %1237 = vmatprep.mubr.bf16.mxu0 0
      %1238 = vmatmul.mubr.bf16.gmra.mrb[0].mxu0 %v816
      %v1239 = vpop.f32.mrb[0].mxu0
      %v1240 = vadd.f32 0.0, %v1239
      %v1241 = vpop.f32.mrb[0].mxu0
      %v1242 = vadd.f32 0.0, %v1241
      %v1243 = vpop.f32.mrb[0].mxu0
      %v1244 = vadd.f32 0.0, %v1243
      %v1245 = vpop.f32.mrb[0].mxu0
      %v1246 = vadd.f32 0.0, %v1245
      %1247 = vmatprep.mubr.bf16.mxu0 0
      %1248 = vmatmul.mubr.bf16.gmra.mrb[0].mxu0 %v819
      %v1249 = vpop.f32.mrb[0].mxu0
      %v1250 = vadd.f32 0.0, %v1249
      %v1251 = vpop.f32.mrb[0].mxu0
      %v1252 = vadd.f32 0.0, %v1251
      %v1253 = vpop.f32.mrb[0].mxu0
      %v1254 = vadd.f32 0.0, %v1253
      %v1255 = vpop.f32.mrb[0].mxu0
      %v1256 = vadd.f32 0.0, %v1255
      %1257 = vmatprep.mubr.bf16.mxu0 0
      %1258 = vmatmul.mubr.bf16.gmra.mrb[0].mxu0 %v822
      %v1259 = vpop.f32.mrb[0].mxu0
      %v1260 = vadd.f32 0.0, %v1259
      %v1261 = vpop.f32.mrb[0].mxu0
      %v1262 = vadd.f32 0.0, %v1261
      %v1263 = vpop.f32.mrb[0].mxu0
      %v1264 = vadd.f32 0.0, %v1263
      %v1265 = vpop.f32.mrb[0].mxu0
      %v1266 = vadd.f32 0.0, %v1265
      %1267 = vmatprep.mubr.bf16.mxu0 0
      %1268 = vmatmul.mubr.bf16.gmra.mrb[0].mxu0 %v825
      %v1269 = vpop.f32.mrb[0].mxu0
      %v1270 = vadd.f32 0.0, %v1269
      %v1271 = vpop.f32.mrb[0].mxu0
      %v1272 = vadd.f32 0.0, %v1271
      %v1273 = vpop.f32.mrb[0].mxu0
      %v1274 = vadd.f32 0.0, %v1273
      %v1275 = vpop.f32.mrb[0].mxu0
      %v1276 = vadd.f32 0.0, %v1275
      %1277 = vmatprep.mubr.bf16.mxu0 0
      %1278 = vmatmul.mubr.bf16.gmra.mrb[0].mxu0 %v828
      %v1279 = vpop.f32.mrb[0].mxu0
      %v1280 = vadd.f32 0.0, %v1279
      %v1281 = vpop.f32.mrb[0].mxu0
      %v1282 = vadd.f32 0.0, %v1281
      %v1283 = vpop.f32.mrb[0].mxu0
      %v1284 = vadd.f32 0.0, %v1283
      %v1285 = vpop.f32.mrb[0].mxu0
      %v1286 = vadd.f32 0.0, %v1285
      %1287 = vmatprep.mubr.bf16.mxu0 0
      %1288 = vmatmul.mubr.bf16.gmra.mrb[0].mxu0 %v831
      %v1289 = vpop.f32.mrb[0].mxu0
      %v1290 = vadd.f32 0.0, %v1289
      %v1291 = vpop.f32.mrb[0].mxu0
      %v1292 = vadd.f32 0.0, %v1291
      %v1293 = vpop.f32.mrb[0].mxu0
      %v1294 = vadd.f32 0.0, %v1293
      %v1295 = vpop.f32.mrb[0].mxu0
      %v1296 = vadd.f32 0.0, %v1295
      %1297 = vdwg.mxu0
      %1298 = vmatprep.subr.bf16.mxu0 %v675
      %1299 = vmatpush1.bf16.msra.mxu0 %v674
      %1300 = vmatprep.subr.bf16.mxu0 %v700
      %1301 = vmatpush1.bf16.msra.mxu0 %v699
      %1302 = vmatprep.subr.bf16.mxu0 %v725
      %1303 = vmatpush1.bf16.msra.mxu0 %v724
      %1304 = vmatprep.subr.bf16.mxu0 0
      %1305 = vmatpush1.bf16.msra.mxu0 0
      %1306 = vmatprep.subr.bf16.mxu0 0
      %1307 = vmatpush1.bf16.msra.mxu0 0
      %1308 = vmatprep.subr.bf16.mxu0 0
      %1309 = vmatpush1.bf16.msra.mxu0 0
      %1310 = vmatprep.subr.bf16.mxu0 0
      %1311 = vmatpush1.bf16.msra.mxu0 0
      %1312 = vmatprep.subr.bf16.mxu0 0
      %1313 = vmatpush1.bf16.msra.mxu0 0
      %1314 = vmatprep.subr.bf16.mxu0 0
      %1315 = vmatpush1.bf16.msra.mxu0 0
      %1316 = vmatprep.subr.bf16.mxu0 0
      %1317 = vmatpush1.bf16.msra.mxu0 0
      %1318 = vmatprep.subr.bf16.mxu0 0
      %1319 = vmatpush1.bf16.msra.mxu0 0
      %1320 = vmatprep.subr.bf16.mxu0 0
      %1321 = vmatpush1.bf16.msra.mxu0 0
      %1322 = vmatprep.subr.bf16.mxu0 0
      %1323 = vmatpush1.bf16.msra.mxu0 0
      %1324 = vmatprep.subr.bf16.mxu0 0
      %1325 = vmatpush1.bf16.msra.mxu0 0
      %1326 = vmatprep.subr.bf16.mxu0 0
      %1327 = vmatpush1.bf16.msra.mxu0 0
      %1328 = vmatprep.subr.bf16.mxu0 0
      %1329 = vmatpush1.bf16.msra.mxu0 0
      %1330 = vmatprep.mubr.bf16.mxu0 0
      %1331 = vmatmul.mubr.bf16.gmra.mrb[0].mxu0 %v816
      %v1332 = vpop.f32.mrb[0].mxu0
      %v1333 = vadd.f32 0.0, %v1332
      %v1334 = vpop.f32.mrb[0].mxu0
      %v1335 = vadd.f32 0.0, %v1334
      %v1336 = vpop.f32.mrb[0].mxu0
      %v1337 = vadd.f32 0.0, %v1336
      %v1338 = vpop.f32.mrb[0].mxu0
      %v1339 = vadd.f32 0.0, %v1338
      %1340 = vmatprep.mubr.bf16.mxu0 0
      %1341 = vmatmul.mubr.bf16.gmra.mrb[0].mxu0 %v819
      %v1342 = vpop.f32.mrb[0].mxu0
      %v1343 = vadd.f32 0.0, %v1342
      %v1344 = vpop.f32.mrb[0].mxu0
      %v1345 = vadd.f32 0.0, %v1344
      %v1346 = vpop.f32.mrb[0].mxu0
      %v1347 = vadd.f32 0.0, %v1346
      %v1348 = vpop.f32.mrb[0].mxu0
      %v1349 = vadd.f32 0.0, %v1348
      %1350 = vmatprep.mubr.bf16.mxu0 0
      %1351 = vmatmul.mubr.bf16.gmra.mrb[0].mxu0 %v822
      %v1352 = vpop.f32.mrb[0].mxu0
      %v1353 = vadd.f32 0.0, %v1352
      %v1354 = vpop.f32.mrb[0].mxu0
      %v1355 = vadd.f32 0.0, %v1354
      %v1356 = vpop.f32.mrb[0].mxu0
      %v1357 = vadd.f32 0.0, %v1356
      %v1358 = vpop.f32.mrb[0].mxu0
      %v1359 = vadd.f32 0.0, %v1358
      %1360 = vmatprep.mubr.bf16.mxu0 0
      %1361 = vmatmul.mubr.bf16.gmra.mrb[0].mxu0 %v825
      %v1362 = vpop.f32.mrb[0].mxu0
      %v1363 = vadd.f32 0.0, %v1362
      %v1364 = vpop.f32.mrb[0].mxu0
      %v1365 = vadd.f32 0.0, %v1364
      %v1366 = vpop.f32.mrb[0].mxu0
      %v1367 = vadd.f32 0.0, %v1366
      %v1368 = vpop.f32.mrb[0].mxu0
      %v1369 = vadd.f32 0.0, %v1368
      %1370 = vmatprep.mubr.bf16.mxu0 0
      %1371 = vmatmul.mubr.bf16.gmra.mrb[0].mxu0 %v828
      %v1372 = vpop.f32.mrb[0].mxu0
      %v1373 = vadd.f32 0.0, %v1372
      %v1374 = vpop.f32.mrb[0].mxu0
      %v1375 = vadd.f32 0.0, %v1374
      %v1376 = vpop.f32.mrb[0].mxu0
      %v1377 = vadd.f32 0.0, %v1376
      %v1378 = vpop.f32.mrb[0].mxu0
      %v1379 = vadd.f32 0.0, %v1378
      %1380 = vmatprep.mubr.bf16.mxu0 0
      %1381 = vmatmul.mubr.bf16.gmra.mrb[0].mxu0 %v831
      %v1382 = vpop.f32.mrb[0].mxu0
      %v1383 = vadd.f32 0.0, %v1382
      %v1384 = vpop.f32.mrb[0].mxu0
      %v1385 = vadd.f32 0.0, %v1384
      %v1386 = vpop.f32.mrb[0].mxu0
      %v1387 = vadd.f32 0.0, %v1386
      %v1388 = vpop.f32.mrb[0].mxu0
      %v1389 = vadd.f32 0.0, %v1388
      %1390 = vdwg.mxu0
      %1391 = vmatprep.subr.bf16.mxu0 %v677
      %1392 = vmatpush1.bf16.msra.mxu0 %v676
      %1393 = vmatprep.subr.bf16.mxu0 %v702
      %1394 = vmatpush1.bf16.msra.mxu0 %v701
      %1395 = vmatprep.subr.bf16.mxu0 %v727
      %1396 = vmatpush1.bf16.msra.mxu0 %v726
      %1397 = vmatprep.subr.bf16.mxu0 0
      %1398 = vmatpush1.bf16.msra.mxu0 0
      %1399 = vmatprep.subr.bf16.mxu0 0
      %1400 = vmatpush1.bf16.msra.mxu0 0
      %1401 = vmatprep.subr.bf16.mxu0 0
      %1402 = vmatpush1.bf16.msra.mxu0 0
      %1403 = vmatprep.subr.bf16.mxu0 0
      %1404 = vmatpush1.bf16.msra.mxu0 0
      %1405 = vmatprep.subr.bf16.mxu0 0
      %1406 = vmatpush1.bf16.msra.mxu0 0
      %1407 = vmatprep.subr.bf16.mxu0 0
      %1408 = vmatpush1.bf16.msra.mxu0 0
      %1409 = vmatprep.subr.bf16.mxu0 0
      %1410 = vmatpush1.bf16.msra.mxu0 0
      %1411 = vmatprep.subr.bf16.mxu0 0
      %1412 = vmatpush1.bf16.msra.mxu0 0
      %1413 = vmatprep.subr.bf16.mxu0 0
      %1414 = vmatpush1.bf16.msra.mxu0 0
      %1415 = vmatprep.subr.bf16.mxu0 0
      %1416 = vmatpush1.bf16.msra.mxu0 0
      %1417 = vmatprep.subr.bf16.mxu0 0
      %1418 = vmatpush1.bf16.msra.mxu0 0
      %1419 = vmatprep.subr.bf16.mxu0 0
      %1420 = vmatpush1.bf16.msra.mxu0 0
      %1421 = vmatprep.subr.bf16.mxu0 0
      %1422 = vmatpush1.bf16.msra.mxu0 0
      %1423 = vmatprep.mubr.bf16.mxu0 0
      %1424 = vmatmul.mubr.bf16.gmra.mrb[0].mxu0 %v816
      %v1425 = vpop.f32.mrb[0].mxu0
      %v1426 = vadd.f32 0.0, %v1425
      %v1427 = vpop.f32.mrb[0].mxu0
      %v1428 = vadd.f32 0.0, %v1427
      %v1429 = vpop.f32.mrb[0].mxu0
      %v1430 = vadd.f32 0.0, %v1429
      %v1431 = vpop.f32.mrb[0].mxu0
      %v1432 = vadd.f32 0.0, %v1431
      %1433 = vmatprep.mubr.bf16.mxu0 0
      %1434 = vmatmul.mubr.bf16.gmra.mrb[0].mxu0 %v819
      %v1435 = vpop.f32.mrb[0].mxu0
      %v1436 = vadd.f32 0.0, %v1435
      %v1437 = vpop.f32.mrb[0].mxu0
      %v1438 = vadd.f32 0.0, %v1437
      %v1439 = vpop.f32.mrb[0].mxu0
      %v1440 = vadd.f32 0.0, %v1439
      %v1441 = vpop.f32.mrb[0].mxu0
      %v1442 = vadd.f32 0.0, %v1441
      %1443 = vmatprep.mubr.bf16.mxu0 0
      %1444 = vmatmul.mubr.bf16.gmra.mrb[0].mxu0 %v822
      %v1445 = vpop.f32.mrb[0].mxu0
      %v1446 = vadd.f32 0.0, %v1445
      %v1447 = vpop.f32.mrb[0].mxu0
      %v1448 = vadd.f32 0.0, %v1447
      %v1449 = vpop.f32.mrb[0].mxu0
      %v1450 = vadd.f32 0.0, %v1449
      %v1451 = vpop.f32.mrb[0].mxu0
      %v1452 = vadd.f32 0.0, %v1451
      %1453 = vmatprep.mubr.bf16.mxu0 0
      %1454 = vmatmul.mubr.bf16.gmra.mrb[0].mxu0 %v825
      %v1455 = vpop.f32.mrb[0].mxu0
      %v1456 = vadd.f32 0.0, %v1455
      %v1457 = vpop.f32.mrb[0].mxu0
      %v1458 = vadd.f32 0.0, %v1457
      %v1459 = vpop.f32.mrb[0].mxu0
      %v1460 = vadd.f32 0.0, %v1459
      %v1461 = vpop.f32.mrb[0].mxu0
      %v1462 = vadd.f32 0.0, %v1461
      %1463 = vmatprep.mubr.bf16.mxu0 0
      %1464 = vmatmul.mubr.bf16.gmra.mrb[0].mxu0 %v828
      %v1465 = vpop.f32.mrb[0].mxu0
      %v1466 = vadd.f32 0.0, %v1465
      %v1467 = vpop.f32.mrb[0].mxu0
      %v1468 = vadd.f32 0.0, %v1467
      %v1469 = vpop.f32.mrb[0].mxu0
      %v1470 = vadd.f32 0.0, %v1469
      %v1471 = vpop.f32.mrb[0].mxu0
      %v1472 = vadd.f32 0.0, %v1471
      %1473 = vmatprep.mubr.bf16.mxu0 0
      %1474 = vmatmul.mubr.bf16.gmra.mrb[0].mxu0 %v831
      %v1475 = vpop.f32.mrb[0].mxu0
      %v1476 = vadd.f32 0.0, %v1475
      %v1477 = vpop.f32.mrb[0].mxu0
      %v1478 = vadd.f32 0.0, %v1477
      %v1479 = vpop.f32.mrb[0].mxu0
      %v1480 = vadd.f32 0.0, %v1479
      %v1481 = vpop.f32.mrb[0].mxu0
      %v1482 = vadd.f32 0.0, %v1481
      %1483 = vdwg.mxu0
      %1484 = vmatprep.subr.bf16.mxu0 %v679
      %1485 = vmatpush1.bf16.msra.mxu0 %v678
      %1486 = vmatprep.subr.bf16.mxu0 %v704
      %1487 = vmatpush1.bf16.msra.mxu0 %v703
      %1488 = vmatprep.subr.bf16.mxu0 %v729
      %1489 = vmatpush1.bf16.msra.mxu0 %v728
      %1490 = vmatprep.subr.bf16.mxu0 0
      %1491 = vmatpush1.bf16.msra.mxu0 0
      %1492 = vmatprep.subr.bf16.mxu0 0
      %1493 = vmatpush1.bf16.msra.mxu0 0
      %1494 = vmatprep.subr.bf16.mxu0 0
      %1495 = vmatpush1.bf16.msra.mxu0 0
      %1496 = vmatprep.subr.bf16.mxu0 0
      %1497 = vmatpush1.bf16.msra.mxu0 0
      %1498 = vmatprep.subr.bf16.mxu0 0
      %1499 = vmatpush1.bf16.msra.mxu0 0
      %1500 = vmatprep.subr.bf16.mxu0 0
      %1501 = vmatpush1.bf16.msra.mxu0 0
      %1502 = vmatprep.subr.bf16.mxu0 0
      %1503 = vmatpush1.bf16.msra.mxu0 0
      %1504 = vmatprep.subr.bf16.mxu0 0
      %1505 = vmatpush1.bf16.msra.mxu0 0
      %1506 = vmatprep.subr.bf16.mxu0 0
      %1507 = vmatpush1.bf16.msra.mxu0 0
      %1508 = vmatprep.subr.bf16.mxu0 0
      %1509 = vmatpush1.bf16.msra.mxu0 0
      %1510 = vmatprep.subr.bf16.mxu0 0
      %1511 = vmatpush1.bf16.msra.mxu0 0
      %1512 = vmatprep.subr.bf16.mxu0 0
      %1513 = vmatpush1.bf16.msra.mxu0 0
      %1514 = vmatprep.subr.bf16.mxu0 0
      %1515 = vmatpush1.bf16.msra.mxu0 0
      %1516 = vmatprep.mubr.bf16.mxu0 0
      %1517 = vmatmul.mubr.bf16.gmra.mrb[0].mxu0 %v816
      %v1518 = vpop.f32.mrb[0].mxu0
      %v1519 = vadd.f32 0.0, %v1518
      %v1520 = vpop.f32.mrb[0].mxu0
      %v1521 = vadd.f32 0.0, %v1520
      %v1522 = vpop.f32.mrb[0].mxu0
      %v1523 = vadd.f32 0.0, %v1522
      %v1524 = vpop.f32.mrb[0].mxu0
      %v1525 = vadd.f32 0.0, %v1524
      %1526 = vmatprep.mubr.bf16.mxu0 0
      %1527 = vmatmul.mubr.bf16.gmra.mrb[0].mxu0 %v819
      %v1528 = vpop.f32.mrb[0].mxu0
      %v1529 = vadd.f32 0.0, %v1528
      %v1530 = vpop.f32.mrb[0].mxu0
      %v1531 = vadd.f32 0.0, %v1530
      %v1532 = vpop.f32.mrb[0].mxu0
      %v1533 = vadd.f32 0.0, %v1532
      %v1534 = vpop.f32.mrb[0].mxu0
      %v1535 = vadd.f32 0.0, %v1534
      %1536 = vmatprep.mubr.bf16.mxu0 0
      %1537 = vmatmul.mubr.bf16.gmra.mrb[0].mxu0 %v822
      %v1538 = vpop.f32.mrb[0].mxu0
      %v1539 = vadd.f32 0.0, %v1538
      %v1540 = vpop.f32.mrb[0].mxu0
      %v1541 = vadd.f32 0.0, %v1540
      %v1542 = vpop.f32.mrb[0].mxu0
      %v1543 = vadd.f32 0.0, %v1542
      %v1544 = vpop.f32.mrb[0].mxu0
      %v1545 = vadd.f32 0.0, %v1544
      %1546 = vmatprep.mubr.bf16.mxu0 0
      %1547 = vmatmul.mubr.bf16.gmra.mrb[0].mxu0 %v825
      %v1548 = vpop.f32.mrb[0].mxu0
      %v1549 = vadd.f32 0.0, %v1548
      %v1550 = vpop.f32.mrb[0].mxu0
      %v1551 = vadd.f32 0.0, %v1550
      %v1552 = vpop.f32.mrb[0].mxu0
      %v1553 = vadd.f32 0.0, %v1552
      %v1554 = vpop.f32.mrb[0].mxu0
      %v1555 = vadd.f32 0.0, %v1554
      %1556 = vmatprep.mubr.bf16.mxu0 0
      %1557 = vmatmul.mubr.bf16.gmra.mrb[0].mxu0 %v828
      %v1558 = vpop.f32.mrb[0].mxu0
      %v1559 = vadd.f32 0.0, %v1558
      %v1560 = vpop.f32.mrb[0].mxu0
      %v1561 = vadd.f32 0.0, %v1560
      %v1562 = vpop.f32.mrb[0].mxu0
      %v1563 = vadd.f32 0.0, %v1562
      %v1564 = vpop.f32.mrb[0].mxu0
      %v1565 = vadd.f32 0.0, %v1564
      %1566 = vmatprep.mubr.bf16.mxu0 0
      %1567 = vmatmul.mubr.bf16.gmra.mrb[0].mxu0 %v831
      %v1568 = vpop.f32.mrb[0].mxu0
      %v1569 = vadd.f32 0.0, %v1568
      %v1570 = vpop.f32.mrb[0].mxu0
      %v1571 = vadd.f32 0.0, %v1570
      %v1572 = vpop.f32.mrb[0].mxu0
      %v1573 = vadd.f32 0.0, %v1572
      %v1574 = vpop.f32.mrb[0].mxu0
      %v1575 = vadd.f32 0.0, %v1574
      %1576 = vdwg.mxu0
      %1577 = vmatprep.subr.bf16.mxu0 %v681
      %1578 = vmatpush1.bf16.msra.mxu0 %v680
      %1579 = vmatprep.subr.bf16.mxu0 %v706
      %1580 = vmatpush1.bf16.msra.mxu0 %v705
      %1581 = vmatprep.subr.bf16.mxu0 %v731
      %1582 = vmatpush1.bf16.msra.mxu0 %v730
      %1583 = vmatprep.subr.bf16.mxu0 0
      %1584 = vmatpush1.bf16.msra.mxu0 0
      %1585 = vmatprep.subr.bf16.mxu0 0
      %1586 = vmatpush1.bf16.msra.mxu0 0
      %1587 = vmatprep.subr.bf16.mxu0 0
      %1588 = vmatpush1.bf16.msra.mxu0 0
      %1589 = vmatprep.subr.bf16.mxu0 0
      %1590 = vmatpush1.bf16.msra.mxu0 0
      %1591 = vmatprep.subr.bf16.mxu0 0
      %1592 = vmatpush1.bf16.msra.mxu0 0
      %1593 = vmatprep.subr.bf16.mxu0 0
      %1594 = vmatpush1.bf16.msra.mxu0 0
      %1595 = vmatprep.subr.bf16.mxu0 0
      %1596 = vmatpush1.bf16.msra.mxu0 0
      %1597 = vmatprep.subr.bf16.mxu0 0
      %1598 = vmatpush1.bf16.msra.mxu0 0
      %1599 = vmatprep.subr.bf16.mxu0 0
      %1600 = vmatpush1.bf16.msra.mxu0 0
      %1601 = vmatprep.subr.bf16.mxu0 0
      %1602 = vmatpush1.bf16.msra.mxu0 0
      %1603 = vmatprep.subr.bf16.mxu0 0
      %1604 = vmatpush1.bf16.msra.mxu0 0
      %1605 = vmatprep.subr.bf16.mxu0 0
      %1606 = vmatpush1.bf16.msra.mxu0 0
      %1607 = vmatprep.subr.bf16.mxu0 0
      %1608 = vmatpush1.bf16.msra.mxu0 0
      %1609 = vmatprep.mubr.bf16.mxu0 0
      %1610 = vmatmul.mubr.bf16.gmra.mrb[0].mxu0 %v816
      %v1611 = vpop.f32.mrb[0].mxu0
      %v1612 = vadd.f32 0.0, %v1611
      %v1613 = vpop.f32.mrb[0].mxu0
      %v1614 = vadd.f32 0.0, %v1613
      %v1615 = vpop.f32.mrb[0].mxu0
      %v1616 = vadd.f32 0.0, %v1615
      %v1617 = vpop.f32.mrb[0].mxu0
      %v1618 = vadd.f32 0.0, %v1617
      %1619 = vmatprep.mubr.bf16.mxu0 0
      %1620 = vmatmul.mubr.bf16.gmra.mrb[0].mxu0 %v819
      %v1621 = vpop.f32.mrb[0].mxu0
      %v1622 = vadd.f32 0.0, %v1621
      %v1623 = vpop.f32.mrb[0].mxu0
      %v1624 = vadd.f32 0.0, %v1623
      %v1625 = vpop.f32.mrb[0].mxu0
      %v1626 = vadd.f32 0.0, %v1625
      %v1627 = vpop.f32.mrb[0].mxu0
      %v1628 = vadd.f32 0.0, %v1627
      %1629 = vmatprep.mubr.bf16.mxu0 0
      %1630 = vmatmul.mubr.bf16.gmra.mrb[0].mxu0 %v822
      %v1631 = vpop.f32.mrb[0].mxu0
      %v1632 = vadd.f32 0.0, %v1631
      %v1633 = vpop.f32.mrb[0].mxu0
      %v1634 = vadd.f32 0.0, %v1633
      %v1635 = vpop.f32.mrb[0].mxu0
      %v1636 = vadd.f32 0.0, %v1635
      %v1637 = vpop.f32.mrb[0].mxu0
      %v1638 = vadd.f32 0.0, %v1637
      %1639 = vmatprep.mubr.bf16.mxu0 0
      %1640 = vmatmul.mubr.bf16.gmra.mrb[0].mxu0 %v825
      %v1641 = vpop.f32.mrb[0].mxu0
      %v1642 = vadd.f32 0.0, %v1641
      %v1643 = vpop.f32.mrb[0].mxu0
      %v1644 = vadd.f32 0.0, %v1643
      %v1645 = vpop.f32.mrb[0].mxu0
      %v1646 = vadd.f32 0.0, %v1645
      %v1647 = vpop.f32.mrb[0].mxu0
      %v1648 = vadd.f32 0.0, %v1647
      %1649 = vmatprep.mubr.bf16.mxu0 0
      %1650 = vmatmul.mubr.bf16.gmra.mrb[0].mxu0 %v828
      %v1651 = vpop.f32.mrb[0].mxu0
      %v1652 = vadd.f32 0.0, %v1651
      %v1653 = vpop.f32.mrb[0].mxu0
      %v1654 = vadd.f32 0.0, %v1653
      %v1655 = vpop.f32.mrb[0].mxu0
      %v1656 = vadd.f32 0.0, %v1655
      %v1657 = vpop.f32.mrb[0].mxu0
      %v1658 = vadd.f32 0.0, %v1657
      %1659 = vmatprep.mubr.bf16.mxu0 0
      %1660 = vmatmul.mubr.bf16.gmra.mrb[0].mxu0 %v831
      %v1661 = vpop.f32.mrb[0].mxu0
      %v1662 = vadd.f32 0.0, %v1661
      %v1663 = vpop.f32.mrb[0].mxu0
      %v1664 = vadd.f32 0.0, %v1663
      %v1665 = vpop.f32.mrb[0].mxu0
      %v1666 = vadd.f32 0.0, %v1665
      %v1667 = vpop.f32.mrb[0].mxu0
      %v1668 = vadd.f32 0.0, %v1667
      %1669 = vdwg.mxu0
      %1670 = vmatprep.subr.bf16.mxu0 %v683
      %1671 = vmatpush1.bf16.msra.mxu0 %v682
      %1672 = vmatprep.subr.bf16.mxu0 %v708
      %1673 = vmatpush1.bf16.msra.mxu0 %v707
      %1674 = vmatprep.subr.bf16.mxu0 %v733
      %1675 = vmatpush1.bf16.msra.mxu0 %v732
      %1676 = vmatprep.subr.bf16.mxu0 0
      %1677 = vmatpush1.bf16.msra.mxu0 0
      %1678 = vmatprep.subr.bf16.mxu0 0
      %1679 = vmatpush1.bf16.msra.mxu0 0
      %1680 = vmatprep.subr.bf16.mxu0 0
      %1681 = vmatpush1.bf16.msra.mxu0 0
      %1682 = vmatprep.subr.bf16.mxu0 0
      %1683 = vmatpush1.bf16.msra.mxu0 0
      %1684 = vmatprep.subr.bf16.mxu0 0
      %1685 = vmatpush1.bf16.msra.mxu0 0
      %1686 = vmatprep.subr.bf16.mxu0 0
      %1687 = vmatpush1.bf16.msra.mxu0 0
      %1688 = vmatprep.subr.bf16.mxu0 0
      %1689 = vmatpush1.bf16.msra.mxu0 0
      %1690 = vmatprep.subr.bf16.mxu0 0
      %1691 = vmatpush1.bf16.msra.mxu0 0
      %1692 = vmatprep.subr.bf16.mxu0 0
      %1693 = vmatpush1.bf16.msra.mxu0 0
      %1694 = vmatprep.subr.bf16.mxu0 0
      %1695 = vmatpush1.bf16.msra.mxu0 0
      %1696 = vmatprep.subr.bf16.mxu0 0
      %1697 = vmatpush1.bf16.msra.mxu0 0
      %1698 = vmatprep.subr.bf16.mxu0 0
      %1699 = vmatpush1.bf16.msra.mxu0 0
      %1700 = vmatprep.subr.bf16.mxu0 0
      %1701 = vmatpush1.bf16.msra.mxu0 0
      %1702 = vmatprep.mubr.bf16.mxu0 0
      %1703 = vmatmul.mubr.bf16.gmra.mrb[0].mxu0 %v816
      %v1704 = vpop.f32.mrb[0].mxu0
      %v1705 = vadd.f32 0.0, %v1704
      %v1706 = vpop.f32.mrb[0].mxu0
      %v1707 = vadd.f32 0.0, %v1706
      %v1708 = vpop.f32.mrb[0].mxu0
      %v1709 = vadd.f32 0.0, %v1708
      %v1710 = vpop.f32.mrb[0].mxu0
      %v1711 = vadd.f32 0.0, %v1710
      %1712 = vmatprep.mubr.bf16.mxu0 0
      %1713 = vmatmul.mubr.bf16.gmra.mrb[0].mxu0 %v819
      %v1714 = vpop.f32.mrb[0].mxu0
      %v1715 = vadd.f32 0.0, %v1714
      %v1716 = vpop.f32.mrb[0].mxu0
      %v1717 = vadd.f32 0.0, %v1716
      %v1718 = vpop.f32.mrb[0].mxu0
      %v1719 = vadd.f32 0.0, %v1718
      %v1720 = vpop.f32.mrb[0].mxu0
      %v1721 = vadd.f32 0.0, %v1720
      %1722 = vmatprep.mubr.bf16.mxu0 0
      %1723 = vmatmul.mubr.bf16.gmra.mrb[0].mxu0 %v822
      %v1724 = vpop.f32.mrb[0].mxu0
      %v1725 = vadd.f32 0.0, %v1724
      %v1726 = vpop.f32.mrb[0].mxu0
      %v1727 = vadd.f32 0.0, %v1726
      %v1728 = vpop.f32.mrb[0].mxu0
      %v1729 = vadd.f32 0.0, %v1728
      %v1730 = vpop.f32.mrb[0].mxu0
      %v1731 = vadd.f32 0.0, %v1730
      %1732 = vmatprep.mubr.bf16.mxu0 0
      %1733 = vmatmul.mubr.bf16.gmra.mrb[0].mxu0 %v825
      %v1734 = vpop.f32.mrb[0].mxu0
      %v1735 = vadd.f32 0.0, %v1734
      %v1736 = vpop.f32.mrb[0].mxu0
      %v1737 = vadd.f32 0.0, %v1736
      %v1738 = vpop.f32.mrb[0].mxu0
      %v1739 = vadd.f32 0.0, %v1738
      %v1740 = vpop.f32.mrb[0].mxu0
      %v1741 = vadd.f32 0.0, %v1740
      %1742 = vmatprep.mubr.bf16.mxu0 0
      %1743 = vmatmul.mubr.bf16.gmra.mrb[0].mxu0 %v828
      %v1744 = vpop.f32.mrb[0].mxu0
      %v1745 = vadd.f32 0.0, %v1744
      %v1746 = vpop.f32.mrb[0].mxu0
      %v1747 = vadd.f32 0.0, %v1746
      %v1748 = vpop.f32.mrb[0].mxu0
      %v1749 = vadd.f32 0.0, %v1748
      %v1750 = vpop.f32.mrb[0].mxu0
      %v1751 = vadd.f32 0.0, %v1750
      %1752 = vmatprep.mubr.bf16.mxu0 0
      %1753 = vmatmul.mubr.bf16.gmra.mrb[0].mxu0 %v831
      %v1754 = vpop.f32.mrb[0].mxu0
      %v1755 = vadd.f32 0.0, %v1754
      %v1756 = vpop.f32.mrb[0].mxu0
      %v1757 = vadd.f32 0.0, %v1756
      %v1758 = vpop.f32.mrb[0].mxu0
      %v1759 = vadd.f32 0.0, %v1758
      %v1760 = vpop.f32.mrb[0].mxu0
      %v1761 = vadd.f32 0.0, %v1760
      %1762 = vdwg.mxu0
      %1763 = vmatprep.subr.bf16.mxu0 %v685
      %1764 = vmatpush1.bf16.msra.mxu0 %v684
      %1765 = vmatprep.subr.bf16.mxu0 %v710
      %1766 = vmatpush1.bf16.msra.mxu0 %v709
      %1767 = vmatprep.subr.bf16.mxu0 %v735
      %1768 = vmatpush1.bf16.msra.mxu0 %v734
      %1769 = vmatprep.subr.bf16.mxu0 0
      %1770 = vmatpush1.bf16.msra.mxu0 0
      %1771 = vmatprep.subr.bf16.mxu0 0
      %1772 = vmatpush1.bf16.msra.mxu0 0
      %1773 = vmatprep.subr.bf16.mxu0 0
      %1774 = vmatpush1.bf16.msra.mxu0 0
      %1775 = vmatprep.subr.bf16.mxu0 0
      %1776 = vmatpush1.bf16.msra.mxu0 0
      %1777 = vmatprep.subr.bf16.mxu0 0
      %1778 = vmatpush1.bf16.msra.mxu0 0
      %1779 = vmatprep.subr.bf16.mxu0 0
      %1780 = vmatpush1.bf16.msra.mxu0 0
      %1781 = vmatprep.subr.bf16.mxu0 0
      %1782 = vmatpush1.bf16.msra.mxu0 0
      %1783 = vmatprep.subr.bf16.mxu0 0
      %1784 = vmatpush1.bf16.msra.mxu0 0
      %1785 = vmatprep.subr.bf16.mxu0 0
      %1786 = vmatpush1.bf16.msra.mxu0 0
      %1787 = vmatprep.subr.bf16.mxu0 0
      %1788 = vmatpush1.bf16.msra.mxu0 0
      %1789 = vmatprep.subr.bf16.mxu0 0
      %1790 = vmatpush1.bf16.msra.mxu0 0
      %1791 = vmatprep.subr.bf16.mxu0 0
      %1792 = vmatpush1.bf16.msra.mxu0 0
      %1793 = vmatprep.subr.bf16.mxu0 0
      %1794 = vmatpush1.bf16.msra.mxu0 0
      %1795 = vmatprep.mubr.bf16.mxu0 0
      %1796 = vmatmul.mubr.bf16.gmra.mrb[0].mxu0 %v816
      %v1797 = vpop.f32.mrb[0].mxu0
      %v1798 = vadd.f32 0.0, %v1797
      %v1799 = vpop.f32.mrb[0].mxu0
      %v1800 = vadd.f32 0.0, %v1799
      %v1801 = vpop.f32.mrb[0].mxu0
      %v1802 = vadd.f32 0.0, %v1801
      %v1803 = vpop.f32.mrb[0].mxu0
      %v1804 = vadd.f32 0.0, %v1803
      %1805 = vmatprep.mubr.bf16.mxu0 0
      %1806 = vmatmul.mubr.bf16.gmra.mrb[0].mxu0 %v819
      %v1807 = vpop.f32.mrb[0].mxu0
      %v1808 = vadd.f32 0.0, %v1807
      %v1809 = vpop.f32.mrb[0].mxu0
      %v1810 = vadd.f32 0.0, %v1809
      %v1811 = vpop.f32.mrb[0].mxu0
      %v1812 = vadd.f32 0.0, %v1811
      %v1813 = vpop.f32.mrb[0].mxu0
      %v1814 = vadd.f32 0.0, %v1813
      %1815 = vmatprep.mubr.bf16.mxu0 0
      %1816 = vmatmul.mubr.bf16.gmra.mrb[0].mxu0 %v822
      %v1817 = vpop.f32.mrb[0].mxu0
      %v1818 = vadd.f32 0.0, %v1817
      %v1819 = vpop.f32.mrb[0].mxu0
      %v1820 = vadd.f32 0.0, %v1819
      %v1821 = vpop.f32.mrb[0].mxu0
      %v1822 = vadd.f32 0.0, %v1821
      %v1823 = vpop.f32.mrb[0].mxu0
      %v1824 = vadd.f32 0.0, %v1823
      %1825 = vmatprep.mubr.bf16.mxu0 0
      %1826 = vmatmul.mubr.bf16.gmra.mrb[0].mxu0 %v825
      %v1827 = vpop.f32.mrb[0].mxu0
      %v1828 = vadd.f32 0.0, %v1827
      %v1829 = vpop.f32.mrb[0].mxu0
      %v1830 = vadd.f32 0.0, %v1829
      %v1831 = vpop.f32.mrb[0].mxu0
      %v1832 = vadd.f32 0.0, %v1831
      %v1833 = vpop.f32.mrb[0].mxu0
      %v1834 = vadd.f32 0.0, %v1833
      %1835 = vmatprep.mubr.bf16.mxu0 0
      %1836 = vmatmul.mubr.bf16.gmra.mrb[0].mxu0 %v828
      %v1837 = vpop.f32.mrb[0].mxu0
      %v1838 = vadd.f32 0.0, %v1837
      %v1839 = vpop.f32.mrb[0].mxu0
      %v1840 = vadd.f32 0.0, %v1839
      %v1841 = vpop.f32.mrb[0].mxu0
      %v1842 = vadd.f32 0.0, %v1841
      %v1843 = vpop.f32.mrb[0].mxu0
      %v1844 = vadd.f32 0.0, %v1843
      %1845 = vmatprep.mubr.bf16.mxu0 0
      %1846 = vmatmul.mubr.bf16.gmra.mrb[0].mxu0 %v831
      %v1847 = vpop.f32.mrb[0].mxu0
      %v1848 = vadd.f32 0.0, %v1847
      %v1849 = vpop.f32.mrb[0].mxu0
      %v1850 = vadd.f32 0.0, %v1849
      %v1851 = vpop.f32.mrb[0].mxu0
      %v1852 = vadd.f32 0.0, %v1851
      %v1853 = vpop.f32.mrb[0].mxu0
      %v1854 = vadd.f32 0.0, %v1853
      %1855 = vdwg.mxu0
      %1856 = vmatprep.subr.bf16.mxu0 %v687
      %1857 = vmatpush1.bf16.msra.mxu0 %v686
      %1858 = vmatprep.subr.bf16.mxu0 %v712
      %1859 = vmatpush1.bf16.msra.mxu0 %v711
      %1860 = vmatprep.subr.bf16.mxu0 %v737
      %1861 = vmatpush1.bf16.msra.mxu0 %v736
      %1862 = vmatprep.subr.bf16.mxu0 0
      %1863 = vmatpush1.bf16.msra.mxu0 0
      %1864 = vmatprep.subr.bf16.mxu0 0
      %1865 = vmatpush1.bf16.msra.mxu0 0
      %1866 = vmatprep.subr.bf16.mxu0 0
      %1867 = vmatpush1.bf16.msra.mxu0 0
      %1868 = vmatprep.subr.bf16.mxu0 0
      %1869 = vmatpush1.bf16.msra.mxu0 0
      %1870 = vmatprep.subr.bf16.mxu0 0
      %1871 = vmatpush1.bf16.msra.mxu0 0
      %1872 = vmatprep.subr.bf16.mxu0 0
      %1873 = vmatpush1.bf16.msra.mxu0 0
      %1874 = vmatprep.subr.bf16.mxu0 0
      %1875 = vmatpush1.bf16.msra.mxu0 0
      %1876 = vmatprep.subr.bf16.mxu0 0
      %1877 = vmatpush1.bf16.msra.mxu0 0
      %1878 = vmatprep.subr.bf16.mxu0 0
      %1879 = vmatpush1.bf16.msra.mxu0 0
      %1880 = vmatprep.subr.bf16.mxu0 0
      %1881 = vmatpush1.bf16.msra.mxu0 0
      %1882 = vmatprep.subr.bf16.mxu0 0
      %1883 = vmatpush1.bf16.msra.mxu0 0
      %1884 = vmatprep.subr.bf16.mxu0 0
      %1885 = vmatpush1.bf16.msra.mxu0 0
      %1886 = vmatprep.subr.bf16.mxu0 0
      %1887 = vmatpush1.bf16.msra.mxu0 0
      %1888 = vmatprep.mubr.bf16.mxu0 0
      %1889 = vmatmul.mubr.bf16.gmra.mrb[0].mxu0 %v816
      %v1890 = vpop.f32.mrb[0].mxu0
      %v1891 = vadd.f32 0.0, %v1890
      %v1892 = vpop.f32.mrb[0].mxu0
      %v1893 = vadd.f32 0.0, %v1892
      %v1894 = vpop.f32.mrb[0].mxu0
      %v1895 = vadd.f32 0.0, %v1894
      %v1896 = vpop.f32.mrb[0].mxu0
      %v1897 = vadd.f32 0.0, %v1896
      %1898 = vmatprep.mubr.bf16.mxu0 0
      %1899 = vmatmul.mubr.bf16.gmra.mrb[0].mxu0 %v819
      %v1900 = vpop.f32.mrb[0].mxu0
      %v1901 = vadd.f32 0.0, %v1900
      %v1902 = vpop.f32.mrb[0].mxu0
      %v1903 = vadd.f32 0.0, %v1902
      %v1904 = vpop.f32.mrb[0].mxu0
      %v1905 = vadd.f32 0.0, %v1904
      %v1906 = vpop.f32.mrb[0].mxu0
      %v1907 = vadd.f32 0.0, %v1906
      %1908 = vmatprep.mubr.bf16.mxu0 0
      %1909 = vmatmul.mubr.bf16.gmra.mrb[0].mxu0 %v822
      %v1910 = vpop.f32.mrb[0].mxu0
      %v1911 = vadd.f32 0.0, %v1910
      %v1912 = vpop.f32.mrb[0].mxu0
      %v1913 = vadd.f32 0.0, %v1912
      %v1914 = vpop.f32.mrb[0].mxu0
      %v1915 = vadd.f32 0.0, %v1914
      %v1916 = vpop.f32.mrb[0].mxu0
      %v1917 = vadd.f32 0.0, %v1916
      %1918 = vmatprep.mubr.bf16.mxu0 0
      %1919 = vmatmul.mubr.bf16.gmra.mrb[0].mxu0 %v825
      %v1920 = vpop.f32.mrb[0].mxu0
      %v1921 = vadd.f32 0.0, %v1920
      %v1922 = vpop.f32.mrb[0].mxu0
      %v1923 = vadd.f32 0.0, %v1922
      %v1924 = vpop.f32.mrb[0].mxu0
      %v1925 = vadd.f32 0.0, %v1924
      %v1926 = vpop.f32.mrb[0].mxu0
      %v1927 = vadd.f32 0.0, %v1926
      %1928 = vmatprep.mubr.bf16.mxu0 0
      %1929 = vmatmul.mubr.bf16.gmra.mrb[0].mxu0 %v828
      %v1930 = vpop.f32.mrb[0].mxu0
      %v1931 = vadd.f32 0.0, %v1930
      %v1932 = vpop.f32.mrb[0].mxu0
      %v1933 = vadd.f32 0.0, %v1932
      %v1934 = vpop.f32.mrb[0].mxu0
      %v1935 = vadd.f32 0.0, %v1934
      %v1936 = vpop.f32.mrb[0].mxu0
      %v1937 = vadd.f32 0.0, %v1936
      %1938 = vmatprep.mubr.bf16.mxu0 0
      %1939 = vmatmul.mubr.bf16.gmra.mrb[0].mxu0 %v831
      %v1940 = vpop.f32.mrb[0].mxu0
      %v1941 = vadd.f32 0.0, %v1940
      %v1942 = vpop.f32.mrb[0].mxu0
      %v1943 = vadd.f32 0.0, %v1942
      %v1944 = vpop.f32.mrb[0].mxu0
      %v1945 = vadd.f32 0.0, %v1944
      %v1946 = vpop.f32.mrb[0].mxu0
      %v1947 = vadd.f32 0.0, %v1946
      %1948 = vdwg.mxu0
      %1949 = vmatprep.subr.bf16.mxu0 0
      %1950 = vmatpush1.bf16.msra.mxu0 %v688
      %1951 = vmatprep.subr.bf16.mxu0 0
      %1952 = vmatpush1.bf16.msra.mxu0 %v713
      %1953 = vmatprep.subr.bf16.mxu0 0
      %1954 = vmatpush1.bf16.msra.mxu0 %v738
      %1955 = vmatprep.subr.bf16.mxu0 0
      %1956 = vmatpush1.bf16.msra.mxu0 0
      %1957 = vmatprep.subr.bf16.mxu0 0
      %1958 = vmatpush1.bf16.msra.mxu0 0
      %1959 = vmatprep.subr.bf16.mxu0 0
      %1960 = vmatpush1.bf16.msra.mxu0 0
      %1961 = vmatprep.subr.bf16.mxu0 0
      %1962 = vmatpush1.bf16.msra.mxu0 0
      %1963 = vmatprep.subr.bf16.mxu0 0
      %1964 = vmatpush1.bf16.msra.mxu0 0
      %1965 = vmatprep.subr.bf16.mxu0 0
      %1966 = vmatpush1.bf16.msra.mxu0 0
      %1967 = vmatprep.subr.bf16.mxu0 0
      %1968 = vmatpush1.bf16.msra.mxu0 0
      %1969 = vmatprep.subr.bf16.mxu0 0
      %1970 = vmatpush1.bf16.msra.mxu0 0
      %1971 = vmatprep.subr.bf16.mxu0 0
      %1972 = vmatpush1.bf16.msra.mxu0 0
      %1973 = vmatprep.subr.bf16.mxu0 0
      %1974 = vmatpush1.bf16.msra.mxu0 0
      %1975 = vmatprep.subr.bf16.mxu0 0
      %1976 = vmatpush1.bf16.msra.mxu0 0
      %1977 = vmatprep.subr.bf16.mxu0 0
      %1978 = vmatpush1.bf16.msra.mxu0 0
      %1979 = vmatprep.subr.bf16.mxu0 0
      %1980 = vmatpush1.bf16.msra.mxu0 0
      %1981 = vmatprep.mubr.bf16.mxu0 0
      %1982 = vmatmul.mubr.bf16.gmra.mrb[0].mxu0 %v816
      %v1983 = vpop.f32.mrb[0].mxu0
      %v1984 = vadd.f32 0.0, %v1983
      %v1985 = vpop.f32.mrb[0].mxu0
      %v1986 = vpop.f32.mrb[0].mxu0
      %v1987 = vadd.f32 0.0, %v1986
      %v1988 = vpop.f32.mrb[0].mxu0
      %1989 = vmatprep.mubr.bf16.mxu0 0
      %1990 = vmatmul.mubr.bf16.gmra.mrb[0].mxu0 %v819
      %v1991 = vpop.f32.mrb[0].mxu0
      %v1992 = vadd.f32 0.0, %v1991
      %v1993 = vpop.f32.mrb[0].mxu0
      %v1994 = vpop.f32.mrb[0].mxu0
      %v1995 = vadd.f32 0.0, %v1994
      %v1996 = vpop.f32.mrb[0].mxu0
      %1997 = vmatprep.mubr.bf16.mxu0 0
      %1998 = vmatmul.mubr.bf16.gmra.mrb[0].mxu0 %v822
      %v1999 = vpop.f32.mrb[0].mxu0
      %v2000 = vadd.f32 0.0, %v1999
      %v2001 = vpop.f32.mrb[0].mxu0
      %v2002 = vpop.f32.mrb[0].mxu0
      %v2003 = vadd.f32 0.0, %v2002
      %v2004 = vpop.f32.mrb[0].mxu0
      %2005 = vmatprep.mubr.bf16.mxu0 0
      %2006 = vmatmul.mubr.bf16.gmra.mrb[0].mxu0 %v825
      %v2007 = vpop.f32.mrb[0].mxu0
      %v2008 = vadd.f32 0.0, %v2007
      %v2009 = vpop.f32.mrb[0].mxu0
      %v2010 = vpop.f32.mrb[0].mxu0
      %v2011 = vadd.f32 0.0, %v2010
      %v2012 = vpop.f32.mrb[0].mxu0
      %2013 = vmatprep.mubr.bf16.mxu0 0
      %2014 = vmatmul.mubr.bf16.gmra.mrb[0].mxu0 %v828
      %v2015 = vpop.f32.mrb[0].mxu0
      %v2016 = vadd.f32 0.0, %v2015
      %v2017 = vpop.f32.mrb[0].mxu0
      %v2018 = vpop.f32.mrb[0].mxu0
      %v2019 = vadd.f32 0.0, %v2018
      %v2020 = vpop.f32.mrb[0].mxu0
      %2021 = vmatprep.mubr.bf16.mxu0 0
      %2022 = vmatmul.mubr.bf16.gmra.mrb[0].mxu0 %v831
      %v2023 = vpop.f32.mrb[0].mxu0
      %v2024 = vadd.f32 0.0, %v2023
      %v2025 = vpop.f32.mrb[0].mxu0
      %v2026 = vpop.f32.mrb[0].mxu0
      %v2027 = vadd.f32 0.0, %v2026
      %v2028 = vpop.f32.mrb[0].mxu0
      %2029 = vdwg.mxu0
      %v2042 = vunpack.c.l.b16 %v226
      %v2043 = vunpack.c.l.b16 %v227
      %v2044 = vunpack.c.l.b16 %v228
      %v2045 = vunpack.c.l.b16 %v229
      %v2046 = vunpack.c.l.b16 %v230
      %v2047 = vunpack.c.l.b16 %v231
      %v2048 = vunpack.c.l.b16 %v232
      %v2049 = vunpack.c.l.b16 %v233
      %v2050 = vunpack.c.l.b16 %v234
      %v2051 = vunpack.c.l.b16 %v235
      %v2052 = vunpack.c.l.b16 %v236
      %v2053 = vunpack.c.l.b16 %v237
      %v2054 = vpack.c.b16 %v2043, %v2042
      %v2055 = vpack.c.b16 %v2045, %v2044
      %v2056 = vpack.c.b16 %v2047, %v2046
      %v2057 = vpack.c.b16 %v2049, %v2048
      %v2058 = vpack.c.b16 %v2051, %v2050
      %v2059 = vpack.c.b16 %v2053, %v2052
      %v2138 = vunpack.c.l.b16 %v238
      %v2139 = vunpack.c.h.b16 %v238
      %v2140 = vunpack.c.l.b16 %v239
      %v2141 = vunpack.c.h.b16 %v239
      %v2142 = vunpack.c.l.b16 %v240
      %v2143 = vunpack.c.h.b16 %v240
      %v2144 = vunpack.c.l.b16 %v241
      %v2145 = vunpack.c.h.b16 %v241
      %v2146 = vunpack.c.l.b16 %v242
      %v2147 = vunpack.c.h.b16 %v242
      %v2148 = vunpack.c.l.b16 %v243
      %v2149 = vunpack.c.h.b16 %v243
      %v2150 = vunpack.c.l.b16 %v244
      %v2151 = vunpack.c.h.b16 %v244
      %v2152 = vunpack.c.l.b16 %v245
      %v2153 = vunpack.c.h.b16 %v245
      %v2154 = vunpack.c.l.b16 %v246
      %v2155 = vunpack.c.h.b16 %v246
      %v2156 = vunpack.c.l.b16 %v247
      %v2157 = vunpack.c.h.b16 %v247
      %v2158 = vunpack.c.l.b16 %v248
      %v2159 = vunpack.c.h.b16 %v248
      %v2160 = vunpack.c.l.b16 %v249
      %v2161 = vunpack.c.h.b16 %v249
      %v2162 = vunpack.c.l.b16 %v250
      %v2163 = vunpack.c.l.b16 %v251
      %v2164 = vunpack.c.h.b16 %v251
      %v2165 = vunpack.c.l.b16 %v252
      %v2166 = vunpack.c.h.b16 %v252
      %v2167 = vunpack.c.l.b16 %v253
      %v2168 = vunpack.c.h.b16 %v253
      %v2169 = vunpack.c.l.b16 %v254
      %v2170 = vunpack.c.h.b16 %v254
      %v2171 = vunpack.c.l.b16 %v255
      %v2172 = vunpack.c.h.b16 %v255
      %v2173 = vunpack.c.l.b16 %v256
      %v2174 = vunpack.c.h.b16 %v256
      %v2175 = vunpack.c.l.b16 %v257
      %v2176 = vunpack.c.h.b16 %v257
      %v2177 = vunpack.c.l.b16 %v258
      %v2178 = vunpack.c.h.b16 %v258
      %v2179 = vunpack.c.l.b16 %v259
      %v2180 = vunpack.c.h.b16 %v259
      %v2181 = vunpack.c.l.b16 %v260
      %v2182 = vunpack.c.h.b16 %v260
      %v2183 = vunpack.c.l.b16 %v261
      %v2184 = vunpack.c.h.b16 %v261
      %v2185 = vunpack.c.l.b16 %v262
      %v2186 = vunpack.c.h.b16 %v262
      %v2187 = vunpack.c.l.b16 %v263
      %v2188 = vunpack.c.l.b16 %v264
      %v2189 = vunpack.c.h.b16 %v264
      %v2190 = vunpack.c.l.b16 %v265
      %v2191 = vunpack.c.h.b16 %v265
      %v2192 = vunpack.c.l.b16 %v266
      %v2193 = vunpack.c.h.b16 %v266
      %v2194 = vunpack.c.l.b16 %v267
      %v2195 = vunpack.c.h.b16 %v267
      %v2196 = vunpack.c.l.b16 %v268
      %v2197 = vunpack.c.h.b16 %v268
      %v2198 = vunpack.c.l.b16 %v269
      %v2199 = vunpack.c.h.b16 %v269
      %v2200 = vunpack.c.l.b16 %v270
      %v2201 = vunpack.c.h.b16 %v270
      %v2202 = vunpack.c.l.b16 %v271
      %v2203 = vunpack.c.h.b16 %v271
      %v2204 = vunpack.c.l.b16 %v272
      %v2205 = vunpack.c.h.b16 %v272
      %v2206 = vunpack.c.l.b16 %v273
      %v2207 = vunpack.c.h.b16 %v273
      %v2208 = vunpack.c.l.b16 %v274
      %v2209 = vunpack.c.h.b16 %v274
      %v2210 = vunpack.c.l.b16 %v275
      %v2211 = vunpack.c.h.b16 %v275
      %v2212 = vunpack.c.l.b16 %v276
      %v2213 = vunpack.c.l.b16 %v277
      %v2214 = vunpack.c.h.b16 %v277
      %v2215 = vunpack.c.l.b16 %v278
      %v2216 = vunpack.c.h.b16 %v278
      %v2217 = vunpack.c.l.b16 %v279
      %v2218 = vunpack.c.h.b16 %v279
      %v2219 = vunpack.c.l.b16 %v280
      %v2220 = vunpack.c.h.b16 %v280
      %v2221 = vunpack.c.l.b16 %v281
      %v2222 = vunpack.c.h.b16 %v281
      %v2223 = vunpack.c.l.b16 %v282
      %v2224 = vunpack.c.h.b16 %v282
      %v2225 = vunpack.c.l.b16 %v283
      %v2226 = vunpack.c.h.b16 %v283
      %v2227 = vunpack.c.l.b16 %v284
      %v2228 = vunpack.c.h.b16 %v284
      %v2229 = vunpack.c.l.b16 %v285
      %v2230 = vunpack.c.h.b16 %v285
      %v2231 = vunpack.c.l.b16 %v286
      %v2232 = vunpack.c.h.b16 %v286
      %v2233 = vunpack.c.l.b16 %v287
      %v2234 = vunpack.c.h.b16 %v287
      %v2235 = vunpack.c.l.b16 %v288
      %v2236 = vunpack.c.h.b16 %v288
      %v2237 = vunpack.c.l.b16 %v289
      %v2238 = vunpack.c.l.b16 %v290
      %v2239 = vunpack.c.h.b16 %v290
      %v2240 = vunpack.c.l.b16 %v291
      %v2241 = vunpack.c.h.b16 %v291
      %v2242 = vunpack.c.l.b16 %v292
      %v2243 = vunpack.c.h.b16 %v292
      %v2244 = vunpack.c.l.b16 %v293
      %v2245 = vunpack.c.h.b16 %v293
      %v2246 = vunpack.c.l.b16 %v294
      %v2247 = vunpack.c.h.b16 %v294
      %v2248 = vunpack.c.l.b16 %v295
      %v2249 = vunpack.c.h.b16 %v295
      %v2250 = vunpack.c.l.b16 %v296
      %v2251 = vunpack.c.h.b16 %v296
      %v2252 = vunpack.c.l.b16 %v297
      %v2253 = vunpack.c.h.b16 %v297
      %v2254 = vunpack.c.l.b16 %v298
      %v2255 = vunpack.c.h.b16 %v298
      %v2256 = vunpack.c.l.b16 %v299
      %v2257 = vunpack.c.h.b16 %v299
      %v2258 = vunpack.c.l.b16 %v300
      %v2259 = vunpack.c.h.b16 %v300
      %v2260 = vunpack.c.l.b16 %v301
      %v2261 = vunpack.c.h.b16 %v301
      %v2262 = vunpack.c.l.b16 %v302
      %v2263 = vunpack.c.l.b16 %v303
      %v2264 = vunpack.c.h.b16 %v303
      %v2265 = vunpack.c.l.b16 %v304
      %v2266 = vunpack.c.h.b16 %v304
      %v2267 = vunpack.c.l.b16 %v305
      %v2268 = vunpack.c.h.b16 %v305
      %v2269 = vunpack.c.l.b16 %v306
      %v2270 = vunpack.c.h.b16 %v306
      %v2271 = vunpack.c.l.b16 %v307
      %v2272 = vunpack.c.h.b16 %v307
      %v2273 = vunpack.c.l.b16 %v308
      %v2274 = vunpack.c.h.b16 %v308
      %v2275 = vunpack.c.l.b16 %v309
      %v2276 = vunpack.c.h.b16 %v309
      %v2277 = vunpack.c.l.b16 %v310
      %v2278 = vunpack.c.h.b16 %v310
      %v2279 = vunpack.c.l.b16 %v311
      %v2280 = vunpack.c.h.b16 %v311
      %v2281 = vunpack.c.l.b16 %v312
      %v2282 = vunpack.c.h.b16 %v312
      %v2283 = vunpack.c.l.b16 %v313
      %v2284 = vunpack.c.h.b16 %v313
      %v2285 = vunpack.c.l.b16 %v314
      %v2286 = vunpack.c.h.b16 %v314
      %v2287 = vunpack.c.l.b16 %v315
      %v2288 = vpack.c.b16 %v2163, %v2138
      %v2289 = vpack.c.b16 %v2164, %v2139
      %v2290 = vpack.c.b16 %v2165, %v2140
      %v2291 = vpack.c.b16 %v2166, %v2141
      %v2292 = vpack.c.b16 %v2167, %v2142
      %v2293 = vpack.c.b16 %v2168, %v2143
      %v2294 = vpack.c.b16 %v2169, %v2144
      %v2295 = vpack.c.b16 %v2170, %v2145
      %v2296 = vpack.c.b16 %v2171, %v2146
      %v2297 = vpack.c.b16 %v2172, %v2147
      %v2298 = vpack.c.b16 %v2173, %v2148
      %v2299 = vpack.c.b16 %v2174, %v2149
      %v2300 = vpack.c.b16 %v2175, %v2150
      %v2301 = vpack.c.b16 %v2176, %v2151
      %v2302 = vpack.c.b16 %v2177, %v2152
      %v2303 = vpack.c.b16 %v2178, %v2153
      %v2304 = vpack.c.b16 %v2179, %v2154
      %v2305 = vpack.c.b16 %v2180, %v2155
      %v2306 = vpack.c.b16 %v2181, %v2156
      %v2307 = vpack.c.b16 %v2182, %v2157
      %v2308 = vpack.c.b16 %v2183, %v2158
      %v2309 = vpack.c.b16 %v2184, %v2159
      %v2310 = vpack.c.b16 %v2185, %v2160
      %v2311 = vpack.c.b16 %v2186, %v2161
      %v2312 = vpack.c.b16 %v2187, %v2162
      %v2313 = vpack.c.b16 %v2213, %v2188
      %v2314 = vpack.c.b16 %v2214, %v2189
      %v2315 = vpack.c.b16 %v2215, %v2190
      %v2316 = vpack.c.b16 %v2216, %v2191
      %v2317 = vpack.c.b16 %v2217, %v2192
      %v2318 = vpack.c.b16 %v2218, %v2193
      %v2319 = vpack.c.b16 %v2219, %v2194
      %v2320 = vpack.c.b16 %v2220, %v2195
      %v2321 = vpack.c.b16 %v2221, %v2196
      %v2322 = vpack.c.b16 %v2222, %v2197
      %v2323 = vpack.c.b16 %v2223, %v2198
      %v2324 = vpack.c.b16 %v2224, %v2199
      %v2325 = vpack.c.b16 %v2225, %v2200
      %v2326 = vpack.c.b16 %v2226, %v2201
      %v2327 = vpack.c.b16 %v2227, %v2202
      %v2328 = vpack.c.b16 %v2228, %v2203
      %v2329 = vpack.c.b16 %v2229, %v2204
      %v2330 = vpack.c.b16 %v2230, %v2205
      %v2331 = vpack.c.b16 %v2231, %v2206
      %v2332 = vpack.c.b16 %v2232, %v2207
      %v2333 = vpack.c.b16 %v2233, %v2208
      %v2334 = vpack.c.b16 %v2234, %v2209
      %v2335 = vpack.c.b16 %v2235, %v2210
      %v2336 = vpack.c.b16 %v2236, %v2211
      %v2337 = vpack.c.b16 %v2237, %v2212
      %v2338 = vpack.c.b16 %v2263, %v2238
      %v2339 = vpack.c.b16 %v2264, %v2239
      %v2340 = vpack.c.b16 %v2265, %v2240
      %v2341 = vpack.c.b16 %v2266, %v2241
      %v2342 = vpack.c.b16 %v2267, %v2242
      %v2343 = vpack.c.b16 %v2268, %v2243
      %v2344 = vpack.c.b16 %v2269, %v2244
      %v2345 = vpack.c.b16 %v2270, %v2245
      %v2346 = vpack.c.b16 %v2271, %v2246
      %v2347 = vpack.c.b16 %v2272, %v2247
      %v2348 = vpack.c.b16 %v2273, %v2248
      %v2349 = vpack.c.b16 %v2274, %v2249
      %v2350 = vpack.c.b16 %v2275, %v2250
      %v2351 = vpack.c.b16 %v2276, %v2251
      %v2352 = vpack.c.b16 %v2277, %v2252
      %v2353 = vpack.c.b16 %v2278, %v2253
      %v2354 = vpack.c.b16 %v2279, %v2254
      %v2355 = vpack.c.b16 %v2280, %v2255
      %v2356 = vpack.c.b16 %v2281, %v2256
      %v2357 = vpack.c.b16 %v2282, %v2257
      %v2358 = vpack.c.b16 %v2283, %v2258
      %v2359 = vpack.c.b16 %v2284, %v2259
      %v2360 = vpack.c.b16 %v2285, %v2260
      %v2361 = vpack.c.b16 %v2286, %v2261
      %v2362 = vpack.c.b16 %v2287, %v2262
      %v2439 = vsel %vm814, %v2054, 0
      %v2442 = vsel %vm814, %v2055, 0
      %v2445 = vsel %vm814, %v2056, 0
      %v2448 = vsel %vm814, %v2057, 0
      %v2451 = vsel %vm814, %v2058, 0
      %v2454 = vsel %vm814, %v2059, 0
      %2456 = vmatprep.subr.bf16.mxu0 %v2289
      %2457 = vmatpush1.bf16.msra.mxu0 %v2288
      %2458 = vmatprep.subr.bf16.mxu0 %v2314
      %2459 = vmatpush1.bf16.msra.mxu0 %v2313
      %2460 = vmatprep.subr.bf16.mxu0 %v2339
      %2461 = vmatpush1.bf16.msra.mxu0 %v2338
      %2462 = vmatprep.subr.bf16.mxu0 0
      %2463 = vmatpush1.bf16.msra.mxu0 0
      %2464 = vmatprep.subr.bf16.mxu0 0
      %2465 = vmatpush1.bf16.msra.mxu0 0
      %2466 = vmatprep.subr.bf16.mxu0 0
      %2467 = vmatpush1.bf16.msra.mxu0 0
      %2468 = vmatprep.subr.bf16.mxu0 0
      %2469 = vmatpush1.bf16.msra.mxu0 0
      %2470 = vmatprep.subr.bf16.mxu0 0
      %2471 = vmatpush1.bf16.msra.mxu0 0
      %2472 = vmatprep.subr.bf16.mxu0 0
      %2473 = vmatpush1.bf16.msra.mxu0 0
      %2474 = vmatprep.subr.bf16.mxu0 0
      %2475 = vmatpush1.bf16.msra.mxu0 0
      %2476 = vmatprep.subr.bf16.mxu0 0
      %2477 = vmatpush1.bf16.msra.mxu0 0
      %2478 = vmatprep.subr.bf16.mxu0 0
      %2479 = vmatpush1.bf16.msra.mxu0 0
      %2480 = vmatprep.subr.bf16.mxu0 0
      %2481 = vmatpush1.bf16.msra.mxu0 0
      %2482 = vmatprep.subr.bf16.mxu0 0
      %2483 = vmatpush1.bf16.msra.mxu0 0
      %2484 = vmatprep.subr.bf16.mxu0 0
      %2485 = vmatpush1.bf16.msra.mxu0 0
      %2486 = vmatprep.subr.bf16.mxu0 0
      %2487 = vmatpush1.bf16.msra.mxu0 0
      %2488 = vmatprep.mubr.bf16.mxu0 0
      %2489 = vmatmul.mubr.bf16.gmra.mrb[0].mxu0 %v2439
      %v2490 = vpop.f32.mrb[0].mxu0
      %v2491 = vadd.f32 %v868, %v2490
      %v2492 = vpop.f32.mrb[0].mxu0
      %v2493 = vadd.f32 %v870, %v2492
      %v2494 = vpop.f32.mrb[0].mxu0
      %v2495 = vadd.f32 %v872, %v2494
      %v2496 = vpop.f32.mrb[0].mxu0
      %v2497 = vadd.f32 %v874, %v2496
      %2498 = vmatprep.mubr.bf16.mxu0 0
      %2499 = vmatmul.mubr.bf16.gmra.mrb[0].mxu0 %v2442
      %v2500 = vpop.f32.mrb[0].mxu0
      %v2501 = vadd.f32 %v878, %v2500
      %v2502 = vpop.f32.mrb[0].mxu0
      %v2503 = vadd.f32 %v880, %v2502
      %v2504 = vpop.f32.mrb[0].mxu0
      %v2505 = vadd.f32 %v882, %v2504
      %v2506 = vpop.f32.mrb[0].mxu0
      %v2507 = vadd.f32 %v884, %v2506
      %2508 = vmatprep.mubr.bf16.mxu0 0
      %2509 = vmatmul.mubr.bf16.gmra.mrb[0].mxu0 %v2445
      %v2510 = vpop.f32.mrb[0].mxu0
      %v2511 = vadd.f32 %v888, %v2510
      %v2512 = vpop.f32.mrb[0].mxu0
      %v2513 = vadd.f32 %v890, %v2512
      %v2514 = vpop.f32.mrb[0].mxu0
      %v2515 = vadd.f32 %v892, %v2514
      %v2516 = vpop.f32.mrb[0].mxu0
      %v2517 = vadd.f32 %v894, %v2516
      %2518 = vmatprep.mubr.bf16.mxu0 0
      %2519 = vmatmul.mubr.bf16.gmra.mrb[0].mxu0 %v2448
      %v2520 = vpop.f32.mrb[0].mxu0
      %v2521 = vadd.f32 %v898, %v2520
      %v2522 = vpop.f32.mrb[0].mxu0
      %v2523 = vadd.f32 %v900, %v2522
      %v2524 = vpop.f32.mrb[0].mxu0
      %v2525 = vadd.f32 %v902, %v2524
      %v2526 = vpop.f32.mrb[0].mxu0
      %v2527 = vadd.f32 %v904, %v2526
      %2528 = vmatprep.mubr.bf16.mxu0 0
      %2529 = vmatmul.mubr.bf16.gmra.mrb[0].mxu0 %v2451
      %v2530 = vpop.f32.mrb[0].mxu0
      %v2531 = vadd.f32 %v908, %v2530
      %v2532 = vpop.f32.mrb[0].mxu0
      %v2533 = vadd.f32 %v910, %v2532
      %v2534 = vpop.f32.mrb[0].mxu0
      %v2535 = vadd.f32 %v912, %v2534
      %v2536 = vpop.f32.mrb[0].mxu0
      %v2537 = vadd.f32 %v914, %v2536
      %2538 = vmatprep.mubr.bf16.mxu0 0
      %2539 = vmatmul.mubr.bf16.gmra.mrb[0].mxu0 %v2454
      %v2540 = vpop.f32.mrb[0].mxu0
      %v2541 = vadd.f32 %v918, %v2540
      %v2542 = vpop.f32.mrb[0].mxu0
      %v2543 = vadd.f32 %v920, %v2542
      %v2544 = vpop.f32.mrb[0].mxu0
      %v2545 = vadd.f32 %v922, %v2544
      %v2546 = vpop.f32.mrb[0].mxu0
      %v2547 = vadd.f32 %v924, %v2546
      %2548 = vdwg.mxu0
      %2549 = vmatprep.subr.bf16.mxu0 %v2291
      %2550 = vmatpush1.bf16.msra.mxu0 %v2290
      %2551 = vmatprep.subr.bf16.mxu0 %v2316
      %2552 = vmatpush1.bf16.msra.mxu0 %v2315
      %2553 = vmatprep.subr.bf16.mxu0 %v2341
      %2554 = vmatpush1.bf16.msra.mxu0 %v2340
      %2555 = vmatprep.subr.bf16.mxu0 0
      %2556 = vmatpush1.bf16.msra.mxu0 0
      %2557 = vmatprep.subr.bf16.mxu0 0
      %2558 = vmatpush1.bf16.msra.mxu0 0
      %2559 = vmatprep.subr.bf16.mxu0 0
      %2560 = vmatpush1.bf16.msra.mxu0 0
      %2561 = vmatprep.subr.bf16.mxu0 0
      %2562 = vmatpush1.bf16.msra.mxu0 0
      %2563 = vmatprep.subr.bf16.mxu0 0
      %2564 = vmatpush1.bf16.msra.mxu0 0
      %2565 = vmatprep.subr.bf16.mxu0 0
      %2566 = vmatpush1.bf16.msra.mxu0 0
      %2567 = vmatprep.subr.bf16.mxu0 0
      %2568 = vmatpush1.bf16.msra.mxu0 0
      %2569 = vmatprep.subr.bf16.mxu0 0
      %2570 = vmatpush1.bf16.msra.mxu0 0
      %2571 = vmatprep.subr.bf16.mxu0 0
      %2572 = vmatpush1.bf16.msra.mxu0 0
      %2573 = vmatprep.subr.bf16.mxu0 0
      %2574 = vmatpush1.bf16.msra.mxu0 0
      %2575 = vmatprep.subr.bf16.mxu0 0
      %2576 = vmatpush1.bf16.msra.mxu0 0
      %2577 = vmatprep.subr.bf16.mxu0 0
      %2578 = vmatpush1.bf16.msra.mxu0 0
      %2579 = vmatprep.subr.bf16.mxu0 0
      %2580 = vmatpush1.bf16.msra.mxu0 0
      %2581 = vmatprep.mubr.bf16.mxu0 0
      %2582 = vmatmul.mubr.bf16.gmra.mrb[0].mxu0 %v2439
      %v2583 = vpop.f32.mrb[0].mxu0
      %v2584 = vadd.f32 %v961, %v2583
      %v2585 = vpop.f32.mrb[0].mxu0
      %v2586 = vadd.f32 %v963, %v2585
      %v2587 = vpop.f32.mrb[0].mxu0
      %v2588 = vadd.f32 %v965, %v2587
      %v2589 = vpop.f32.mrb[0].mxu0
      %v2590 = vadd.f32 %v967, %v2589
      %2591 = vmatprep.mubr.bf16.mxu0 0
      %2592 = vmatmul.mubr.bf16.gmra.mrb[0].mxu0 %v2442
      %v2593 = vpop.f32.mrb[0].mxu0
      %v2594 = vadd.f32 %v971, %v2593
      %v2595 = vpop.f32.mrb[0].mxu0
      %v2596 = vadd.f32 %v973, %v2595
      %v2597 = vpop.f32.mrb[0].mxu0
      %v2598 = vadd.f32 %v975, %v2597
      %v2599 = vpop.f32.mrb[0].mxu0
      %v2600 = vadd.f32 %v977, %v2599
      %2601 = vmatprep.mubr.bf16.mxu0 0
      %2602 = vmatmul.mubr.bf16.gmra.mrb[0].mxu0 %v2445
      %v2603 = vpop.f32.mrb[0].mxu0
      %v2604 = vadd.f32 %v981, %v2603
      %v2605 = vpop.f32.mrb[0].mxu0
      %v2606 = vadd.f32 %v983, %v2605
      %v2607 = vpop.f32.mrb[0].mxu0
      %v2608 = vadd.f32 %v985, %v2607
      %v2609 = vpop.f32.mrb[0].mxu0
      %v2610 = vadd.f32 %v987, %v2609
      %2611 = vmatprep.mubr.bf16.mxu0 0
      %2612 = vmatmul.mubr.bf16.gmra.mrb[0].mxu0 %v2448
      %v2613 = vpop.f32.mrb[0].mxu0
      %v2614 = vadd.f32 %v991, %v2613
      %v2615 = vpop.f32.mrb[0].mxu0
      %v2616 = vadd.f32 %v993, %v2615
      %v2617 = vpop.f32.mrb[0].mxu0
      %v2618 = vadd.f32 %v995, %v2617
      %v2619 = vpop.f32.mrb[0].mxu0
      %v2620 = vadd.f32 %v997, %v2619
      %2621 = vmatprep.mubr.bf16.mxu0 0
      %2622 = vmatmul.mubr.bf16.gmra.mrb[0].mxu0 %v2451
      %v2623 = vpop.f32.mrb[0].mxu0
      %v2624 = vadd.f32 %v1001, %v2623
      %v2625 = vpop.f32.mrb[0].mxu0
      %v2626 = vadd.f32 %v1003, %v2625
      %v2627 = vpop.f32.mrb[0].mxu0
      %v2628 = vadd.f32 %v1005, %v2627
      %v2629 = vpop.f32.mrb[0].mxu0
      %v2630 = vadd.f32 %v1007, %v2629
      %2631 = vmatprep.mubr.bf16.mxu0 0
      %2632 = vmatmul.mubr.bf16.gmra.mrb[0].mxu0 %v2454
      %v2633 = vpop.f32.mrb[0].mxu0
      %v2634 = vadd.f32 %v1011, %v2633
      %v2635 = vpop.f32.mrb[0].mxu0
      %v2636 = vadd.f32 %v1013, %v2635
      %v2637 = vpop.f32.mrb[0].mxu0
      %v2638 = vadd.f32 %v1015, %v2637
      %v2639 = vpop.f32.mrb[0].mxu0
      %v2640 = vadd.f32 %v1017, %v2639
      %2641 = vdwg.mxu0
      %2642 = vmatprep.subr.bf16.mxu0 %v2293
      %2643 = vmatpush1.bf16.msra.mxu0 %v2292
      %2644 = vmatprep.subr.bf16.mxu0 %v2318
      %2645 = vmatpush1.bf16.msra.mxu0 %v2317
      %2646 = vmatprep.subr.bf16.mxu0 %v2343
      %2647 = vmatpush1.bf16.msra.mxu0 %v2342
      %2648 = vmatprep.subr.bf16.mxu0 0
      %2649 = vmatpush1.bf16.msra.mxu0 0
      %2650 = vmatprep.subr.bf16.mxu0 0
      %2651 = vmatpush1.bf16.msra.mxu0 0
      %2652 = vmatprep.subr.bf16.mxu0 0
      %2653 = vmatpush1.bf16.msra.mxu0 0
      %2654 = vmatprep.subr.bf16.mxu0 0
      %2655 = vmatpush1.bf16.msra.mxu0 0
      %2656 = vmatprep.subr.bf16.mxu0 0
      %2657 = vmatpush1.bf16.msra.mxu0 0
      %2658 = vmatprep.subr.bf16.mxu0 0
      %2659 = vmatpush1.bf16.msra.mxu0 0
      %2660 = vmatprep.subr.bf16.mxu0 0
      %2661 = vmatpush1.bf16.msra.mxu0 0
      %2662 = vmatprep.subr.bf16.mxu0 0
      %2663 = vmatpush1.bf16.msra.mxu0 0
      %2664 = vmatprep.subr.bf16.mxu0 0
      %2665 = vmatpush1.bf16.msra.mxu0 0
      %2666 = vmatprep.subr.bf16.mxu0 0
      %2667 = vmatpush1.bf16.msra.mxu0 0
      %2668 = vmatprep.subr.bf16.mxu0 0
      %2669 = vmatpush1.bf16.msra.mxu0 0
      %2670 = vmatprep.subr.bf16.mxu0 0
      %2671 = vmatpush1.bf16.msra.mxu0 0
      %2672 = vmatprep.subr.bf16.mxu0 0
      %2673 = vmatpush1.bf16.msra.mxu0 0
      %2674 = vmatprep.mubr.bf16.mxu0 0
      %2675 = vmatmul.mubr.bf16.gmra.mrb[0].mxu0 %v2439
      %v2676 = vpop.f32.mrb[0].mxu0
      %v2677 = vadd.f32 %v1054, %v2676
      %v2678 = vpop.f32.mrb[0].mxu0
      %v2679 = vadd.f32 %v1056, %v2678
      %v2680 = vpop.f32.mrb[0].mxu0
      %v2681 = vadd.f32 %v1058, %v2680
      %v2682 = vpop.f32.mrb[0].mxu0
      %v2683 = vadd.f32 %v1060, %v2682
      %2684 = vmatprep.mubr.bf16.mxu0 0
      %2685 = vmatmul.mubr.bf16.gmra.mrb[0].mxu0 %v2442
      %v2686 = vpop.f32.mrb[0].mxu0
      %v2687 = vadd.f32 %v1064, %v2686
      %v2688 = vpop.f32.mrb[0].mxu0
      %v2689 = vadd.f32 %v1066, %v2688
      %v2690 = vpop.f32.mrb[0].mxu0
      %v2691 = vadd.f32 %v1068, %v2690
      %v2692 = vpop.f32.mrb[0].mxu0
      %v2693 = vadd.f32 %v1070, %v2692
      %2694 = vmatprep.mubr.bf16.mxu0 0
      %2695 = vmatmul.mubr.bf16.gmra.mrb[0].mxu0 %v2445
      %v2696 = vpop.f32.mrb[0].mxu0
      %v2697 = vadd.f32 %v1074, %v2696
      %v2698 = vpop.f32.mrb[0].mxu0
      %v2699 = vadd.f32 %v1076, %v2698
      %v2700 = vpop.f32.mrb[0].mxu0
      %v2701 = vadd.f32 %v1078, %v2700
      %v2702 = vpop.f32.mrb[0].mxu0
      %v2703 = vadd.f32 %v1080, %v2702
      %2704 = vmatprep.mubr.bf16.mxu0 0
      %2705 = vmatmul.mubr.bf16.gmra.mrb[0].mxu0 %v2448
      %v2706 = vpop.f32.mrb[0].mxu0
      %v2707 = vadd.f32 %v1084, %v2706
      %v2708 = vpop.f32.mrb[0].mxu0
      %v2709 = vadd.f32 %v1086, %v2708
      %v2710 = vpop.f32.mrb[0].mxu0
      %v2711 = vadd.f32 %v1088, %v2710
      %v2712 = vpop.f32.mrb[0].mxu0
      %v2713 = vadd.f32 %v1090, %v2712
      %2714 = vmatprep.mubr.bf16.mxu0 0
      %2715 = vmatmul.mubr.bf16.gmra.mrb[0].mxu0 %v2451
      %v2716 = vpop.f32.mrb[0].mxu0
      %v2717 = vadd.f32 %v1094, %v2716
      %v2718 = vpop.f32.mrb[0].mxu0
      %v2719 = vadd.f32 %v1096, %v2718
      %v2720 = vpop.f32.mrb[0].mxu0
      %v2721 = vadd.f32 %v1098, %v2720
      %v2722 = vpop.f32.mrb[0].mxu0
      %v2723 = vadd.f32 %v1100, %v2722
      %2724 = vmatprep.mubr.bf16.mxu0 0
      %2725 = vmatmul.mubr.bf16.gmra.mrb[0].mxu0 %v2454
      %v2726 = vpop.f32.mrb[0].mxu0
      %v2727 = vadd.f32 %v1104, %v2726
      %v2728 = vpop.f32.mrb[0].mxu0
      %v2729 = vadd.f32 %v1106, %v2728
      %v2730 = vpop.f32.mrb[0].mxu0
      %v2731 = vadd.f32 %v1108, %v2730
      %v2732 = vpop.f32.mrb[0].mxu0
      %v2733 = vadd.f32 %v1110, %v2732
      %2734 = vdwg.mxu0
      %2735 = vmatprep.subr.bf16.mxu0 %v2295
      %2736 = vmatpush1.bf16.msra.mxu0 %v2294
      %2737 = vmatprep.subr.bf16.mxu0 %v2320
      %2738 = vmatpush1.bf16.msra.mxu0 %v2319
      %2739 = vmatprep.subr.bf16.mxu0 %v2345
      %2740 = vmatpush1.bf16.msra.mxu0 %v2344
      %2741 = vmatprep.subr.bf16.mxu0 0
      %2742 = vmatpush1.bf16.msra.mxu0 0
      %2743 = vmatprep.subr.bf16.mxu0 0
      %2744 = vmatpush1.bf16.msra.mxu0 0
      %2745 = vmatprep.subr.bf16.mxu0 0
      %2746 = vmatpush1.bf16.msra.mxu0 0
      %2747 = vmatprep.subr.bf16.mxu0 0
      %2748 = vmatpush1.bf16.msra.mxu0 0
      %2749 = vmatprep.subr.bf16.mxu0 0
      %2750 = vmatpush1.bf16.msra.mxu0 0
      %2751 = vmatprep.subr.bf16.mxu0 0
      %2752 = vmatpush1.bf16.msra.mxu0 0
      %2753 = vmatprep.subr.bf16.mxu0 0
      %2754 = vmatpush1.bf16.msra.mxu0 0
      %2755 = vmatprep.subr.bf16.mxu0 0
      %2756 = vmatpush1.bf16.msra.mxu0 0
      %2757 = vmatprep.subr.bf16.mxu0 0
      %2758 = vmatpush1.bf16.msra.mxu0 0
      %2759 = vmatprep.subr.bf16.mxu0 0
      %2760 = vmatpush1.bf16.msra.mxu0 0
      %2761 = vmatprep.subr.bf16.mxu0 0
      %2762 = vmatpush1.bf16.msra.mxu0 0
      %2763 = vmatprep.subr.bf16.mxu0 0
      %2764 = vmatpush1.bf16.msra.mxu0 0
      %2765 = vmatprep.subr.bf16.mxu0 0
      %2766 = vmatpush1.bf16.msra.mxu0 0
      %2767 = vmatprep.mubr.bf16.mxu0 0
      %2768 = vmatmul.mubr.bf16.gmra.mrb[0].mxu0 %v2439
      %v2769 = vpop.f32.mrb[0].mxu0
      %v2770 = vadd.f32 %v1147, %v2769
      %v2771 = vpop.f32.mrb[0].mxu0
      %v2772 = vadd.f32 %v1149, %v2771
      %v2773 = vpop.f32.mrb[0].mxu0
      %v2774 = vadd.f32 %v1151, %v2773
      %v2775 = vpop.f32.mrb[0].mxu0
      %v2776 = vadd.f32 %v1153, %v2775
      %2777 = vmatprep.mubr.bf16.mxu0 0
      %2778 = vmatmul.mubr.bf16.gmra.mrb[0].mxu0 %v2442
      %v2779 = vpop.f32.mrb[0].mxu0
      %v2780 = vadd.f32 %v1157, %v2779
      %v2781 = vpop.f32.mrb[0].mxu0
      %v2782 = vadd.f32 %v1159, %v2781
      %v2783 = vpop.f32.mrb[0].mxu0
      %v2784 = vadd.f32 %v1161, %v2783
      %v2785 = vpop.f32.mrb[0].mxu0
      %v2786 = vadd.f32 %v1163, %v2785
      %2787 = vmatprep.mubr.bf16.mxu0 0
      %2788 = vmatmul.mubr.bf16.gmra.mrb[0].mxu0 %v2445
      %v2789 = vpop.f32.mrb[0].mxu0
      %v2790 = vadd.f32 %v1167, %v2789
      %v2791 = vpop.f32.mrb[0].mxu0
      %v2792 = vadd.f32 %v1169, %v2791
      %v2793 = vpop.f32.mrb[0].mxu0
      %v2794 = vadd.f32 %v1171, %v2793
      %v2795 = vpop.f32.mrb[0].mxu0
      %v2796 = vadd.f32 %v1173, %v2795
      %2797 = vmatprep.mubr.bf16.mxu0 0
      %2798 = vmatmul.mubr.bf16.gmra.mrb[0].mxu0 %v2448
      %v2799 = vpop.f32.mrb[0].mxu0
      %v2800 = vadd.f32 %v1177, %v2799
      %v2801 = vpop.f32.mrb[0].mxu0
      %v2802 = vadd.f32 %v1179, %v2801
      %v2803 = vpop.f32.mrb[0].mxu0
      %v2804 = vadd.f32 %v1181, %v2803
      %v2805 = vpop.f32.mrb[0].mxu0
      %v2806 = vadd.f32 %v1183, %v2805
      %2807 = vmatprep.mubr.bf16.mxu0 0
      %2808 = vmatmul.mubr.bf16.gmra.mrb[0].mxu0 %v2451
      %v2809 = vpop.f32.mrb[0].mxu0
      %v2810 = vadd.f32 %v1187, %v2809
      %v2811 = vpop.f32.mrb[0].mxu0
      %v2812 = vadd.f32 %v1189, %v2811
      %v2813 = vpop.f32.mrb[0].mxu0
      %v2814 = vadd.f32 %v1191, %v2813
      %v2815 = vpop.f32.mrb[0].mxu0
      %v2816 = vadd.f32 %v1193, %v2815
      %2817 = vmatprep.mubr.bf16.mxu0 0
      %2818 = vmatmul.mubr.bf16.gmra.mrb[0].mxu0 %v2454
      %v2819 = vpop.f32.mrb[0].mxu0
      %v2820 = vadd.f32 %v1197, %v2819
      %v2821 = vpop.f32.mrb[0].mxu0
      %v2822 = vadd.f32 %v1199, %v2821
      %v2823 = vpop.f32.mrb[0].mxu0
      %v2824 = vadd.f32 %v1201, %v2823
      %v2825 = vpop.f32.mrb[0].mxu0
      %v2826 = vadd.f32 %v1203, %v2825
      %2827 = vdwg.mxu0
      %2828 = vmatprep.subr.bf16.mxu0 %v2297
      %2829 = vmatpush1.bf16.msra.mxu0 %v2296
      %2830 = vmatprep.subr.bf16.mxu0 %v2322
      %2831 = vmatpush1.bf16.msra.mxu0 %v2321
      %2832 = vmatprep.subr.bf16.mxu0 %v2347
      %2833 = vmatpush1.bf16.msra.mxu0 %v2346
      %2834 = vmatprep.subr.bf16.mxu0 0
      %2835 = vmatpush1.bf16.msra.mxu0 0
      %2836 = vmatprep.subr.bf16.mxu0 0
      %2837 = vmatpush1.bf16.msra.mxu0 0
      %2838 = vmatprep.subr.bf16.mxu0 0
      %2839 = vmatpush1.bf16.msra.mxu0 0
      %2840 = vmatprep.subr.bf16.mxu0 0
      %2841 = vmatpush1.bf16.msra.mxu0 0
      %2842 = vmatprep.subr.bf16.mxu0 0
      %2843 = vmatpush1.bf16.msra.mxu0 0
      %2844 = vmatprep.subr.bf16.mxu0 0
      %2845 = vmatpush1.bf16.msra.mxu0 0
      %2846 = vmatprep.subr.bf16.mxu0 0
      %2847 = vmatpush1.bf16.msra.mxu0 0
      %2848 = vmatprep.subr.bf16.mxu0 0
      %2849 = vmatpush1.bf16.msra.mxu0 0
      %2850 = vmatprep.subr.bf16.mxu0 0
      %2851 = vmatpush1.bf16.msra.mxu0 0
      %2852 = vmatprep.subr.bf16.mxu0 0
      %2853 = vmatpush1.bf16.msra.mxu0 0
      %2854 = vmatprep.subr.bf16.mxu0 0
      %2855 = vmatpush1.bf16.msra.mxu0 0
      %2856 = vmatprep.subr.bf16.mxu0 0
      %2857 = vmatpush1.bf16.msra.mxu0 0
      %2858 = vmatprep.subr.bf16.mxu0 0
      %2859 = vmatpush1.bf16.msra.mxu0 0
      %2860 = vmatprep.mubr.bf16.mxu0 0
      %2861 = vmatmul.mubr.bf16.gmra.mrb[0].mxu0 %v2439
      %v2862 = vpop.f32.mrb[0].mxu0
      %v2863 = vadd.f32 %v1240, %v2862
      %v2864 = vpop.f32.mrb[0].mxu0
      %v2865 = vadd.f32 %v1242, %v2864
      %v2866 = vpop.f32.mrb[0].mxu0
      %v2867 = vadd.f32 %v1244, %v2866
      %v2868 = vpop.f32.mrb[0].mxu0
      %v2869 = vadd.f32 %v1246, %v2868
      %2870 = vmatprep.mubr.bf16.mxu0 0
      %2871 = vmatmul.mubr.bf16.gmra.mrb[0].mxu0 %v2442
      %v2872 = vpop.f32.mrb[0].mxu0
      %v2873 = vadd.f32 %v1250, %v2872
      %v2874 = vpop.f32.mrb[0].mxu0
      %v2875 = vadd.f32 %v1252, %v2874
      %v2876 = vpop.f32.mrb[0].mxu0
      %v2877 = vadd.f32 %v1254, %v2876
      %v2878 = vpop.f32.mrb[0].mxu0
      %v2879 = vadd.f32 %v1256, %v2878
      %2880 = vmatprep.mubr.bf16.mxu0 0
      %2881 = vmatmul.mubr.bf16.gmra.mrb[0].mxu0 %v2445
      %v2882 = vpop.f32.mrb[0].mxu0
      %v2883 = vadd.f32 %v1260, %v2882
      %v2884 = vpop.f32.mrb[0].mxu0
      %v2885 = vadd.f32 %v1262, %v2884
      %v2886 = vpop.f32.mrb[0].mxu0
      %v2887 = vadd.f32 %v1264, %v2886
      %v2888 = vpop.f32.mrb[0].mxu0
      %v2889 = vadd.f32 %v1266, %v2888
      %2890 = vmatprep.mubr.bf16.mxu0 0
      %2891 = vmatmul.mubr.bf16.gmra.mrb[0].mxu0 %v2448
      %v2892 = vpop.f32.mrb[0].mxu0
      %v2893 = vadd.f32 %v1270, %v2892
      %v2894 = vpop.f32.mrb[0].mxu0
      %v2895 = vadd.f32 %v1272, %v2894
      %v2896 = vpop.f32.mrb[0].mxu0
      %v2897 = vadd.f32 %v1274, %v2896
      %v2898 = vpop.f32.mrb[0].mxu0
      %v2899 = vadd.f32 %v1276, %v2898
      %2900 = vmatprep.mubr.bf16.mxu0 0
      %2901 = vmatmul.mubr.bf16.gmra.mrb[0].mxu0 %v2451
      %v2902 = vpop.f32.mrb[0].mxu0
      %v2903 = vadd.f32 %v1280, %v2902
      %v2904 = vpop.f32.mrb[0].mxu0
      %v2905 = vadd.f32 %v1282, %v2904
      %v2906 = vpop.f32.mrb[0].mxu0
      %v2907 = vadd.f32 %v1284, %v2906
      %v2908 = vpop.f32.mrb[0].mxu0
      %v2909 = vadd.f32 %v1286, %v2908
      %2910 = vmatprep.mubr.bf16.mxu0 0
      %2911 = vmatmul.mubr.bf16.gmra.mrb[0].mxu0 %v2454
      %v2912 = vpop.f32.mrb[0].mxu0
      %v2913 = vadd.f32 %v1290, %v2912
      %v2914 = vpop.f32.mrb[0].mxu0
      %v2915 = vadd.f32 %v1292, %v2914
      %v2916 = vpop.f32.mrb[0].mxu0
      %v2917 = vadd.f32 %v1294, %v2916
      %v2918 = vpop.f32.mrb[0].mxu0
      %v2919 = vadd.f32 %v1296, %v2918
      %2920 = vdwg.mxu0
      %2921 = vmatprep.subr.bf16.mxu0 %v2299
      %2922 = vmatpush1.bf16.msra.mxu0 %v2298
      %2923 = vmatprep.subr.bf16.mxu0 %v2324
      %2924 = vmatpush1.bf16.msra.mxu0 %v2323
      %2925 = vmatprep.subr.bf16.mxu0 %v2349
      %2926 = vmatpush1.bf16.msra.mxu0 %v2348
      %2927 = vmatprep.subr.bf16.mxu0 0
      %2928 = vmatpush1.bf16.msra.mxu0 0
      %2929 = vmatprep.subr.bf16.mxu0 0
      %2930 = vmatpush1.bf16.msra.mxu0 0
      %2931 = vmatprep.subr.bf16.mxu0 0
      %2932 = vmatpush1.bf16.msra.mxu0 0
      %2933 = vmatprep.subr.bf16.mxu0 0
      %2934 = vmatpush1.bf16.msra.mxu0 0
      %2935 = vmatprep.subr.bf16.mxu0 0
      %2936 = vmatpush1.bf16.msra.mxu0 0
      %2937 = vmatprep.subr.bf16.mxu0 0
      %2938 = vmatpush1.bf16.msra.mxu0 0
      %2939 = vmatprep.subr.bf16.mxu0 0
      %2940 = vmatpush1.bf16.msra.mxu0 0
      %2941 = vmatprep.subr.bf16.mxu0 0
      %2942 = vmatpush1.bf16.msra.mxu0 0
      %2943 = vmatprep.subr.bf16.mxu0 0
      %2944 = vmatpush1.bf16.msra.mxu0 0
      %2945 = vmatprep.subr.bf16.mxu0 0
      %2946 = vmatpush1.bf16.msra.mxu0 0
      %2947 = vmatprep.subr.bf16.mxu0 0
      %2948 = vmatpush1.bf16.msra.mxu0 0
      %2949 = vmatprep.subr.bf16.mxu0 0
      %2950 = vmatpush1.bf16.msra.mxu0 0
      %2951 = vmatprep.subr.bf16.mxu0 0
      %2952 = vmatpush1.bf16.msra.mxu0 0
      %2953 = vmatprep.mubr.bf16.mxu0 0
      %2954 = vmatmul.mubr.bf16.gmra.mrb[0].mxu0 %v2439
      %v2955 = vpop.f32.mrb[0].mxu0
      %v2956 = vadd.f32 %v1333, %v2955
      %v2957 = vpop.f32.mrb[0].mxu0
      %v2958 = vadd.f32 %v1335, %v2957
      %v2959 = vpop.f32.mrb[0].mxu0
      %v2960 = vadd.f32 %v1337, %v2959
      %v2961 = vpop.f32.mrb[0].mxu0
      %v2962 = vadd.f32 %v1339, %v2961
      %2963 = vmatprep.mubr.bf16.mxu0 0
      %2964 = vmatmul.mubr.bf16.gmra.mrb[0].mxu0 %v2442
      %v2965 = vpop.f32.mrb[0].mxu0
      %v2966 = vadd.f32 %v1343, %v2965
      %v2967 = vpop.f32.mrb[0].mxu0
      %v2968 = vadd.f32 %v1345, %v2967
      %v2969 = vpop.f32.mrb[0].mxu0
      %v2970 = vadd.f32 %v1347, %v2969
      %v2971 = vpop.f32.mrb[0].mxu0
      %v2972 = vadd.f32 %v1349, %v2971
      %2973 = vmatprep.mubr.bf16.mxu0 0
      %2974 = vmatmul.mubr.bf16.gmra.mrb[0].mxu0 %v2445
      %v2975 = vpop.f32.mrb[0].mxu0
      %v2976 = vadd.f32 %v1353, %v2975
      %v2977 = vpop.f32.mrb[0].mxu0
      %v2978 = vadd.f32 %v1355, %v2977
      %v2979 = vpop.f32.mrb[0].mxu0
      %v2980 = vadd.f32 %v1357, %v2979
      %v2981 = vpop.f32.mrb[0].mxu0
      %v2982 = vadd.f32 %v1359, %v2981
      %2983 = vmatprep.mubr.bf16.mxu0 0
      %2984 = vmatmul.mubr.bf16.gmra.mrb[0].mxu0 %v2448
      %v2985 = vpop.f32.mrb[0].mxu0
      %v2986 = vadd.f32 %v1363, %v2985
      %v2987 = vpop.f32.mrb[0].mxu0
      %v2988 = vadd.f32 %v1365, %v2987
      %v2989 = vpop.f32.mrb[0].mxu0
      %v2990 = vadd.f32 %v1367, %v2989
      %v2991 = vpop.f32.mrb[0].mxu0
      %v2992 = vadd.f32 %v1369, %v2991
      %2993 = vmatprep.mubr.bf16.mxu0 0
      %2994 = vmatmul.mubr.bf16.gmra.mrb[0].mxu0 %v2451
      %v2995 = vpop.f32.mrb[0].mxu0
      %v2996 = vadd.f32 %v1373, %v2995
      %v2997 = vpop.f32.mrb[0].mxu0
      %v2998 = vadd.f32 %v1375, %v2997
      %v2999 = vpop.f32.mrb[0].mxu0
      %v3000 = vadd.f32 %v1377, %v2999
      %v3001 = vpop.f32.mrb[0].mxu0
      %v3002 = vadd.f32 %v1379, %v3001
      %3003 = vmatprep.mubr.bf16.mxu0 0
      %3004 = vmatmul.mubr.bf16.gmra.mrb[0].mxu0 %v2454
      %v3005 = vpop.f32.mrb[0].mxu0
      %v3006 = vadd.f32 %v1383, %v3005
      %v3007 = vpop.f32.mrb[0].mxu0
      %v3008 = vadd.f32 %v1385, %v3007
      %v3009 = vpop.f32.mrb[0].mxu0
      %v3010 = vadd.f32 %v1387, %v3009
      %v3011 = vpop.f32.mrb[0].mxu0
      %v3012 = vadd.f32 %v1389, %v3011
      %3013 = vdwg.mxu0
      %3014 = vmatprep.subr.bf16.mxu0 %v2301
      %3015 = vmatpush1.bf16.msra.mxu0 %v2300
      %3016 = vmatprep.subr.bf16.mxu0 %v2326
      %3017 = vmatpush1.bf16.msra.mxu0 %v2325
      %3018 = vmatprep.subr.bf16.mxu0 %v2351
      %3019 = vmatpush1.bf16.msra.mxu0 %v2350
      %3020 = vmatprep.subr.bf16.mxu0 0
      %3021 = vmatpush1.bf16.msra.mxu0 0
      %3022 = vmatprep.subr.bf16.mxu0 0
      %3023 = vmatpush1.bf16.msra.mxu0 0
      %3024 = vmatprep.subr.bf16.mxu0 0
      %3025 = vmatpush1.bf16.msra.mxu0 0
      %3026 = vmatprep.subr.bf16.mxu0 0
      %3027 = vmatpush1.bf16.msra.mxu0 0
      %3028 = vmatprep.subr.bf16.mxu0 0
      %3029 = vmatpush1.bf16.msra.mxu0 0
      %3030 = vmatprep.subr.bf16.mxu0 0
      %3031 = vmatpush1.bf16.msra.mxu0 0
      %3032 = vmatprep.subr.bf16.mxu0 0
      %3033 = vmatpush1.bf16.msra.mxu0 0
      %3034 = vmatprep.subr.bf16.mxu0 0
      %3035 = vmatpush1.bf16.msra.mxu0 0
      %3036 = vmatprep.subr.bf16.mxu0 0
      %3037 = vmatpush1.bf16.msra.mxu0 0
      %3038 = vmatprep.subr.bf16.mxu0 0
      %3039 = vmatpush1.bf16.msra.mxu0 0
      %3040 = vmatprep.subr.bf16.mxu0 0
      %3041 = vmatpush1.bf16.msra.mxu0 0
      %3042 = vmatprep.subr.bf16.mxu0 0
      %3043 = vmatpush1.bf16.msra.mxu0 0
      %3044 = vmatprep.subr.bf16.mxu0 0
      %3045 = vmatpush1.bf16.msra.mxu0 0
      %3046 = vmatprep.mubr.bf16.mxu0 0
      %3047 = vmatmul.mubr.bf16.gmra.mrb[0].mxu0 %v2439
      %v3048 = vpop.f32.mrb[0].mxu0
      %v3049 = vadd.f32 %v1426, %v3048
      %v3050 = vpop.f32.mrb[0].mxu0
      %v3051 = vadd.f32 %v1428, %v3050
      %v3052 = vpop.f32.mrb[0].mxu0
      %v3053 = vadd.f32 %v1430, %v3052
      %v3054 = vpop.f32.mrb[0].mxu0
      %v3055 = vadd.f32 %v1432, %v3054
      %3056 = vmatprep.mubr.bf16.mxu0 0
      %3057 = vmatmul.mubr.bf16.gmra.mrb[0].mxu0 %v2442
      %v3058 = vpop.f32.mrb[0].mxu0
      %v3059 = vadd.f32 %v1436, %v3058
      %v3060 = vpop.f32.mrb[0].mxu0
      %v3061 = vadd.f32 %v1438, %v3060
      %v3062 = vpop.f32.mrb[0].mxu0
      %v3063 = vadd.f32 %v1440, %v3062
      %v3064 = vpop.f32.mrb[0].mxu0
      %v3065 = vadd.f32 %v1442, %v3064
      %3066 = vmatprep.mubr.bf16.mxu0 0
      %3067 = vmatmul.mubr.bf16.gmra.mrb[0].mxu0 %v2445
      %v3068 = vpop.f32.mrb[0].mxu0
      %v3069 = vadd.f32 %v1446, %v3068
      %v3070 = vpop.f32.mrb[0].mxu0
      %v3071 = vadd.f32 %v1448, %v3070
      %v3072 = vpop.f32.mrb[0].mxu0
      %v3073 = vadd.f32 %v1450, %v3072
      %v3074 = vpop.f32.mrb[0].mxu0
      %v3075 = vadd.f32 %v1452, %v3074
      %3076 = vmatprep.mubr.bf16.mxu0 0
      %3077 = vmatmul.mubr.bf16.gmra.mrb[0].mxu0 %v2448
      %v3078 = vpop.f32.mrb[0].mxu0
      %v3079 = vadd.f32 %v1456, %v3078
      %v3080 = vpop.f32.mrb[0].mxu0
      %v3081 = vadd.f32 %v1458, %v3080
      %v3082 = vpop.f32.mrb[0].mxu0
      %v3083 = vadd.f32 %v1460, %v3082
      %v3084 = vpop.f32.mrb[0].mxu0
      %v3085 = vadd.f32 %v1462, %v3084
      %3086 = vmatprep.mubr.bf16.mxu0 0
      %3087 = vmatmul.mubr.bf16.gmra.mrb[0].mxu0 %v2451
      %v3088 = vpop.f32.mrb[0].mxu0
      %v3089 = vadd.f32 %v1466, %v3088
      %v3090 = vpop.f32.mrb[0].mxu0
      %v3091 = vadd.f32 %v1468, %v3090
      %v3092 = vpop.f32.mrb[0].mxu0
      %v3093 = vadd.f32 %v1470, %v3092
      %v3094 = vpop.f32.mrb[0].mxu0
      %v3095 = vadd.f32 %v1472, %v3094
      %3096 = vmatprep.mubr.bf16.mxu0 0
      %3097 = vmatmul.mubr.bf16.gmra.mrb[0].mxu0 %v2454
      %v3098 = vpop.f32.mrb[0].mxu0
      %v3099 = vadd.f32 %v1476, %v3098
      %v3100 = vpop.f32.mrb[0].mxu0
      %v3101 = vadd.f32 %v1478, %v3100
      %v3102 = vpop.f32.mrb[0].mxu0
      %v3103 = vadd.f32 %v1480, %v3102
      %v3104 = vpop.f32.mrb[0].mxu0
      %v3105 = vadd.f32 %v1482, %v3104
      %3106 = vdwg.mxu0
      %3107 = vmatprep.subr.bf16.mxu0 %v2303
      %3108 = vmatpush1.bf16.msra.mxu0 %v2302
      %3109 = vmatprep.subr.bf16.mxu0 %v2328
      %3110 = vmatpush1.bf16.msra.mxu0 %v2327
      %3111 = vmatprep.subr.bf16.mxu0 %v2353
      %3112 = vmatpush1.bf16.msra.mxu0 %v2352
      %3113 = vmatprep.subr.bf16.mxu0 0
      %3114 = vmatpush1.bf16.msra.mxu0 0
      %3115 = vmatprep.subr.bf16.mxu0 0
      %3116 = vmatpush1.bf16.msra.mxu0 0
      %3117 = vmatprep.subr.bf16.mxu0 0
      %3118 = vmatpush1.bf16.msra.mxu0 0
      %3119 = vmatprep.subr.bf16.mxu0 0
      %3120 = vmatpush1.bf16.msra.mxu0 0
      %3121 = vmatprep.subr.bf16.mxu0 0
      %3122 = vmatpush1.bf16.msra.mxu0 0
      %3123 = vmatprep.subr.bf16.mxu0 0
      %3124 = vmatpush1.bf16.msra.mxu0 0
      %3125 = vmatprep.subr.bf16.mxu0 0
      %3126 = vmatpush1.bf16.msra.mxu0 0
      %3127 = vmatprep.subr.bf16.mxu0 0
      %3128 = vmatpush1.bf16.msra.mxu0 0
      %3129 = vmatprep.subr.bf16.mxu0 0
      %3130 = vmatpush1.bf16.msra.mxu0 0
      %3131 = vmatprep.subr.bf16.mxu0 0
      %3132 = vmatpush1.bf16.msra.mxu0 0
      %3133 = vmatprep.subr.bf16.mxu0 0
      %3134 = vmatpush1.bf16.msra.mxu0 0
      %3135 = vmatprep.subr.bf16.mxu0 0
      %3136 = vmatpush1.bf16.msra.mxu0 0
      %3137 = vmatprep.subr.bf16.mxu0 0
      %3138 = vmatpush1.bf16.msra.mxu0 0
      %3139 = vmatprep.mubr.bf16.mxu0 0
      %3140 = vmatmul.mubr.bf16.gmra.mrb[0].mxu0 %v2439
      %v3141 = vpop.f32.mrb[0].mxu0
      %v3142 = vadd.f32 %v1519, %v3141
      %v3143 = vpop.f32.mrb[0].mxu0
      %v3144 = vadd.f32 %v1521, %v3143
      %v3145 = vpop.f32.mrb[0].mxu0
      %v3146 = vadd.f32 %v1523, %v3145
      %v3147 = vpop.f32.mrb[0].mxu0
      %v3148 = vadd.f32 %v1525, %v3147
      %3149 = vmatprep.mubr.bf16.mxu0 0
      %3150 = vmatmul.mubr.bf16.gmra.mrb[0].mxu0 %v2442
      %v3151 = vpop.f32.mrb[0].mxu0
      %v3152 = vadd.f32 %v1529, %v3151
      %v3153 = vpop.f32.mrb[0].mxu0
      %v3154 = vadd.f32 %v1531, %v3153
      %v3155 = vpop.f32.mrb[0].mxu0
      %v3156 = vadd.f32 %v1533, %v3155
      %v3157 = vpop.f32.mrb[0].mxu0
      %v3158 = vadd.f32 %v1535, %v3157
      %3159 = vmatprep.mubr.bf16.mxu0 0
      %3160 = vmatmul.mubr.bf16.gmra.mrb[0].mxu0 %v2445
      %v3161 = vpop.f32.mrb[0].mxu0
      %v3162 = vadd.f32 %v1539, %v3161
      %v3163 = vpop.f32.mrb[0].mxu0
      %v3164 = vadd.f32 %v1541, %v3163
      %v3165 = vpop.f32.mrb[0].mxu0
      %v3166 = vadd.f32 %v1543, %v3165
      %v3167 = vpop.f32.mrb[0].mxu0
      %v3168 = vadd.f32 %v1545, %v3167
      %3169 = vmatprep.mubr.bf16.mxu0 0
      %3170 = vmatmul.mubr.bf16.gmra.mrb[0].mxu0 %v2448
      %v3171 = vpop.f32.mrb[0].mxu0
      %v3172 = vadd.f32 %v1549, %v3171
      %v3173 = vpop.f32.mrb[0].mxu0
      %v3174 = vadd.f32 %v1551, %v3173
      %v3175 = vpop.f32.mrb[0].mxu0
      %v3176 = vadd.f32 %v1553, %v3175
      %v3177 = vpop.f32.mrb[0].mxu0
      %v3178 = vadd.f32 %v1555, %v3177
      %3179 = vmatprep.mubr.bf16.mxu0 0
      %3180 = vmatmul.mubr.bf16.gmra.mrb[0].mxu0 %v2451
      %v3181 = vpop.f32.mrb[0].mxu0
      %v3182 = vadd.f32 %v1559, %v3181
      %v3183 = vpop.f32.mrb[0].mxu0
      %v3184 = vadd.f32 %v1561, %v3183
      %v3185 = vpop.f32.mrb[0].mxu0
      %v3186 = vadd.f32 %v1563, %v3185
      %v3187 = vpop.f32.mrb[0].mxu0
      %v3188 = vadd.f32 %v1565, %v3187
      %3189 = vmatprep.mubr.bf16.mxu0 0
      %3190 = vmatmul.mubr.bf16.gmra.mrb[0].mxu0 %v2454
      %v3191 = vpop.f32.mrb[0].mxu0
      %v3192 = vadd.f32 %v1569, %v3191
      %v3193 = vpop.f32.mrb[0].mxu0
      %v3194 = vadd.f32 %v1571, %v3193
      %v3195 = vpop.f32.mrb[0].mxu0
      %v3196 = vadd.f32 %v1573, %v3195
      %v3197 = vpop.f32.mrb[0].mxu0
      %v3198 = vadd.f32 %v1575, %v3197
      %3199 = vdwg.mxu0
      %3200 = vmatprep.subr.bf16.mxu0 %v2305
      %3201 = vmatpush1.bf16.msra.mxu0 %v2304
      %3202 = vmatprep.subr.bf16.mxu0 %v2330
      %3203 = vmatpush1.bf16.msra.mxu0 %v2329
      %3204 = vmatprep.subr.bf16.mxu0 %v2355
      %3205 = vmatpush1.bf16.msra.mxu0 %v2354
      %3206 = vmatprep.subr.bf16.mxu0 0
      %3207 = vmatpush1.bf16.msra.mxu0 0
      %3208 = vmatprep.subr.bf16.mxu0 0
      %3209 = vmatpush1.bf16.msra.mxu0 0
      %3210 = vmatprep.subr.bf16.mxu0 0
      %3211 = vmatpush1.bf16.msra.mxu0 0
      %3212 = vmatprep.subr.bf16.mxu0 0
      %3213 = vmatpush1.bf16.msra.mxu0 0
      %3214 = vmatprep.subr.bf16.mxu0 0
      %3215 = vmatpush1.bf16.msra.mxu0 0
      %3216 = vmatprep.subr.bf16.mxu0 0
      %3217 = vmatpush1.bf16.msra.mxu0 0
      %3218 = vmatprep.subr.bf16.mxu0 0
      %3219 = vmatpush1.bf16.msra.mxu0 0
      %3220 = vmatprep.subr.bf16.mxu0 0
      %3221 = vmatpush1.bf16.msra.mxu0 0
      %3222 = vmatprep.subr.bf16.mxu0 0
      %3223 = vmatpush1.bf16.msra.mxu0 0
      %3224 = vmatprep.subr.bf16.mxu0 0
      %3225 = vmatpush1.bf16.msra.mxu0 0
      %3226 = vmatprep.subr.bf16.mxu0 0
      %3227 = vmatpush1.bf16.msra.mxu0 0
      %3228 = vmatprep.subr.bf16.mxu0 0
      %3229 = vmatpush1.bf16.msra.mxu0 0
      %3230 = vmatprep.subr.bf16.mxu0 0
      %3231 = vmatpush1.bf16.msra.mxu0 0
      %3232 = vmatprep.mubr.bf16.mxu0 0
      %3233 = vmatmul.mubr.bf16.gmra.mrb[0].mxu0 %v2439
      %v3234 = vpop.f32.mrb[0].mxu0
      %v3235 = vadd.f32 %v1612, %v3234
      %v3236 = vpop.f32.mrb[0].mxu0
      %v3237 = vadd.f32 %v1614, %v3236
      %v3238 = vpop.f32.mrb[0].mxu0
      %v3239 = vadd.f32 %v1616, %v3238
      %v3240 = vpop.f32.mrb[0].mxu0
      %v3241 = vadd.f32 %v1618, %v3240
      %3242 = vmatprep.mubr.bf16.mxu0 0
      %3243 = vmatmul.mubr.bf16.gmra.mrb[0].mxu0 %v2442
      %v3244 = vpop.f32.mrb[0].mxu0
      %v3245 = vadd.f32 %v1622, %v3244
      %v3246 = vpop.f32.mrb[0].mxu0
      %v3247 = vadd.f32 %v1624, %v3246
      %v3248 = vpop.f32.mrb[0].mxu0
      %v3249 = vadd.f32 %v1626, %v3248
      %v3250 = vpop.f32.mrb[0].mxu0
      %v3251 = vadd.f32 %v1628, %v3250
      %3252 = vmatprep.mubr.bf16.mxu0 0
      %3253 = vmatmul.mubr.bf16.gmra.mrb[0].mxu0 %v2445
      %v3254 = vpop.f32.mrb[0].mxu0
      %v3255 = vadd.f32 %v1632, %v3254
      %v3256 = vpop.f32.mrb[0].mxu0
      %v3257 = vadd.f32 %v1634, %v3256
      %v3258 = vpop.f32.mrb[0].mxu0
      %v3259 = vadd.f32 %v1636, %v3258
      %v3260 = vpop.f32.mrb[0].mxu0
      %v3261 = vadd.f32 %v1638, %v3260
      %3262 = vmatprep.mubr.bf16.mxu0 0
      %3263 = vmatmul.mubr.bf16.gmra.mrb[0].mxu0 %v2448
      %v3264 = vpop.f32.mrb[0].mxu0
      %v3265 = vadd.f32 %v1642, %v3264
      %v3266 = vpop.f32.mrb[0].mxu0
      %v3267 = vadd.f32 %v1644, %v3266
      %v3268 = vpop.f32.mrb[0].mxu0
      %v3269 = vadd.f32 %v1646, %v3268
      %v3270 = vpop.f32.mrb[0].mxu0
      %v3271 = vadd.f32 %v1648, %v3270
      %3272 = vmatprep.mubr.bf16.mxu0 0
      %3273 = vmatmul.mubr.bf16.gmra.mrb[0].mxu0 %v2451
      %v3274 = vpop.f32.mrb[0].mxu0
      %v3275 = vadd.f32 %v1652, %v3274
      %v3276 = vpop.f32.mrb[0].mxu0
      %v3277 = vadd.f32 %v1654, %v3276
      %v3278 = vpop.f32.mrb[0].mxu0
      %v3279 = vadd.f32 %v1656, %v3278
      %v3280 = vpop.f32.mrb[0].mxu0
      %v3281 = vadd.f32 %v1658, %v3280
      %3282 = vmatprep.mubr.bf16.mxu0 0
      %3283 = vmatmul.mubr.bf16.gmra.mrb[0].mxu0 %v2454
      %v3284 = vpop.f32.mrb[0].mxu0
      %v3285 = vadd.f32 %v1662, %v3284
      %v3286 = vpop.f32.mrb[0].mxu0
      %v3287 = vadd.f32 %v1664, %v3286
      %v3288 = vpop.f32.mrb[0].mxu0
      %v3289 = vadd.f32 %v1666, %v3288
      %v3290 = vpop.f32.mrb[0].mxu0
      %v3291 = vadd.f32 %v1668, %v3290
      %3292 = vdwg.mxu0
      %3293 = vmatprep.subr.bf16.mxu0 %v2307
      %3294 = vmatpush1.bf16.msra.mxu0 %v2306
      %3295 = vmatprep.subr.bf16.mxu0 %v2332
      %3296 = vmatpush1.bf16.msra.mxu0 %v2331
      %3297 = vmatprep.subr.bf16.mxu0 %v2357
      %3298 = vmatpush1.bf16.msra.mxu0 %v2356
      %3299 = vmatprep.subr.bf16.mxu0 0
      %3300 = vmatpush1.bf16.msra.mxu0 0
      %3301 = vmatprep.subr.bf16.mxu0 0
      %3302 = vmatpush1.bf16.msra.mxu0 0
      %3303 = vmatprep.subr.bf16.mxu0 0
      %3304 = vmatpush1.bf16.msra.mxu0 0
      %3305 = vmatprep.subr.bf16.mxu0 0
      %3306 = vmatpush1.bf16.msra.mxu0 0
      %3307 = vmatprep.subr.bf16.mxu0 0
      %3308 = vmatpush1.bf16.msra.mxu0 0
      %3309 = vmatprep.subr.bf16.mxu0 0
      %3310 = vmatpush1.bf16.msra.mxu0 0
      %3311 = vmatprep.subr.bf16.mxu0 0
      %3312 = vmatpush1.bf16.msra.mxu0 0
      %3313 = vmatprep.subr.bf16.mxu0 0
      %3314 = vmatpush1.bf16.msra.mxu0 0
      %3315 = vmatprep.subr.bf16.mxu0 0
      %3316 = vmatpush1.bf16.msra.mxu0 0
      %3317 = vmatprep.subr.bf16.mxu0 0
      %3318 = vmatpush1.bf16.msra.mxu0 0
      %3319 = vmatprep.subr.bf16.mxu0 0
      %3320 = vmatpush1.bf16.msra.mxu0 0
      %3321 = vmatprep.subr.bf16.mxu0 0
      %3322 = vmatpush1.bf16.msra.mxu0 0
      %3323 = vmatprep.subr.bf16.mxu0 0
      %3324 = vmatpush1.bf16.msra.mxu0 0
      %3325 = vmatprep.mubr.bf16.mxu0 0
      %3326 = vmatmul.mubr.bf16.gmra.mrb[0].mxu0 %v2439
      %v3327 = vpop.f32.mrb[0].mxu0
      %v3328 = vadd.f32 %v1705, %v3327
      %v3329 = vpop.f32.mrb[0].mxu0
      %v3330 = vadd.f32 %v1707, %v3329
      %v3331 = vpop.f32.mrb[0].mxu0
      %v3332 = vadd.f32 %v1709, %v3331
      %v3333 = vpop.f32.mrb[0].mxu0
      %v3334 = vadd.f32 %v1711, %v3333
      %3335 = vmatprep.mubr.bf16.mxu0 0
      %3336 = vmatmul.mubr.bf16.gmra.mrb[0].mxu0 %v2442
      %v3337 = vpop.f32.mrb[0].mxu0
      %v3338 = vadd.f32 %v1715, %v3337
      %v3339 = vpop.f32.mrb[0].mxu0
      %v3340 = vadd.f32 %v1717, %v3339
      %v3341 = vpop.f32.mrb[0].mxu0
      %v3342 = vadd.f32 %v1719, %v3341
      %v3343 = vpop.f32.mrb[0].mxu0
      %v3344 = vadd.f32 %v1721, %v3343
      %3345 = vmatprep.mubr.bf16.mxu0 0
      %3346 = vmatmul.mubr.bf16.gmra.mrb[0].mxu0 %v2445
      %v3347 = vpop.f32.mrb[0].mxu0
      %v3348 = vadd.f32 %v1725, %v3347
      %v3349 = vpop.f32.mrb[0].mxu0
      %v3350 = vadd.f32 %v1727, %v3349
      %v3351 = vpop.f32.mrb[0].mxu0
      %v3352 = vadd.f32 %v1729, %v3351
      %v3353 = vpop.f32.mrb[0].mxu0
      %v3354 = vadd.f32 %v1731, %v3353
      %3355 = vmatprep.mubr.bf16.mxu0 0
      %3356 = vmatmul.mubr.bf16.gmra.mrb[0].mxu0 %v2448
      %v3357 = vpop.f32.mrb[0].mxu0
      %v3358 = vadd.f32 %v1735, %v3357
      %v3359 = vpop.f32.mrb[0].mxu0
      %v3360 = vadd.f32 %v1737, %v3359
      %v3361 = vpop.f32.mrb[0].mxu0
      %v3362 = vadd.f32 %v1739, %v3361
      %v3363 = vpop.f32.mrb[0].mxu0
      %v3364 = vadd.f32 %v1741, %v3363
      %3365 = vmatprep.mubr.bf16.mxu0 0
      %3366 = vmatmul.mubr.bf16.gmra.mrb[0].mxu0 %v2451
      %v3367 = vpop.f32.mrb[0].mxu0
      %v3368 = vadd.f32 %v1745, %v3367
      %v3369 = vpop.f32.mrb[0].mxu0
      %v3370 = vadd.f32 %v1747, %v3369
      %v3371 = vpop.f32.mrb[0].mxu0
      %v3372 = vadd.f32 %v1749, %v3371
      %v3373 = vpop.f32.mrb[0].mxu0
      %v3374 = vadd.f32 %v1751, %v3373
      %3375 = vmatprep.mubr.bf16.mxu0 0
      %3376 = vmatmul.mubr.bf16.gmra.mrb[0].mxu0 %v2454
      %v3377 = vpop.f32.mrb[0].mxu0
      %v3378 = vadd.f32 %v1755, %v3377
      %v3379 = vpop.f32.mrb[0].mxu0
      %v3380 = vadd.f32 %v1757, %v3379
      %v3381 = vpop.f32.mrb[0].mxu0
      %v3382 = vadd.f32 %v1759, %v3381
      %v3383 = vpop.f32.mrb[0].mxu0
      %v3384 = vadd.f32 %v1761, %v3383
      %3385 = vdwg.mxu0
      %3386 = vmatprep.subr.bf16.mxu0 %v2309
      %3387 = vmatpush1.bf16.msra.mxu0 %v2308
      %3388 = vmatprep.subr.bf16.mxu0 %v2334
      %3389 = vmatpush1.bf16.msra.mxu0 %v2333
      %3390 = vmatprep.subr.bf16.mxu0 %v2359
      %3391 = vmatpush1.bf16.msra.mxu0 %v2358
      %3392 = vmatprep.subr.bf16.mxu0 0
      %3393 = vmatpush1.bf16.msra.mxu0 0
      %3394 = vmatprep.subr.bf16.mxu0 0
      %3395 = vmatpush1.bf16.msra.mxu0 0
      %3396 = vmatprep.subr.bf16.mxu0 0
      %3397 = vmatpush1.bf16.msra.mxu0 0
      %3398 = vmatprep.subr.bf16.mxu0 0
      %3399 = vmatpush1.bf16.msra.mxu0 0
      %3400 = vmatprep.subr.bf16.mxu0 0
      %3401 = vmatpush1.bf16.msra.mxu0 0
      %3402 = vmatprep.subr.bf16.mxu0 0
      %3403 = vmatpush1.bf16.msra.mxu0 0
      %3404 = vmatprep.subr.bf16.mxu0 0
      %3405 = vmatpush1.bf16.msra.mxu0 0
      %3406 = vmatprep.subr.bf16.mxu0 0
      %3407 = vmatpush1.bf16.msra.mxu0 0
      %3408 = vmatprep.subr.bf16.mxu0 0
      %3409 = vmatpush1.bf16.msra.mxu0 0
      %3410 = vmatprep.subr.bf16.mxu0 0
      %3411 = vmatpush1.bf16.msra.mxu0 0
      %3412 = vmatprep.subr.bf16.mxu0 0
      %3413 = vmatpush1.bf16.msra.mxu0 0
      %3414 = vmatprep.subr.bf16.mxu0 0
      %3415 = vmatpush1.bf16.msra.mxu0 0
      %3416 = vmatprep.subr.bf16.mxu0 0
      %3417 = vmatpush1.bf16.msra.mxu0 0
      %3418 = vmatprep.mubr.bf16.mxu0 0
      %3419 = vmatmul.mubr.bf16.gmra.mrb[0].mxu0 %v2439
      %v3420 = vpop.f32.mrb[0].mxu0
      %v3421 = vadd.f32 %v1798, %v3420
      %v3422 = vpop.f32.mrb[0].mxu0
      %v3423 = vadd.f32 %v1800, %v3422
      %v3424 = vpop.f32.mrb[0].mxu0
      %v3425 = vadd.f32 %v1802, %v3424
      %v3426 = vpop.f32.mrb[0].mxu0
      %v3427 = vadd.f32 %v1804, %v3426
      %3428 = vmatprep.mubr.bf16.mxu0 0
      %3429 = vmatmul.mubr.bf16.gmra.mrb[0].mxu0 %v2442
      %v3430 = vpop.f32.mrb[0].mxu0
      %v3431 = vadd.f32 %v1808, %v3430
      %v3432 = vpop.f32.mrb[0].mxu0
      %v3433 = vadd.f32 %v1810, %v3432
      %v3434 = vpop.f32.mrb[0].mxu0
      %v3435 = vadd.f32 %v1812, %v3434
      %v3436 = vpop.f32.mrb[0].mxu0
      %v3437 = vadd.f32 %v1814, %v3436
      %3438 = vmatprep.mubr.bf16.mxu0 0
      %3439 = vmatmul.mubr.bf16.gmra.mrb[0].mxu0 %v2445
      %v3440 = vpop.f32.mrb[0].mxu0
      %v3441 = vadd.f32 %v1818, %v3440
      %v3442 = vpop.f32.mrb[0].mxu0
      %v3443 = vadd.f32 %v1820, %v3442
      %v3444 = vpop.f32.mrb[0].mxu0
      %v3445 = vadd.f32 %v1822, %v3444
      %v3446 = vpop.f32.mrb[0].mxu0
      %v3447 = vadd.f32 %v1824, %v3446
      %3448 = vmatprep.mubr.bf16.mxu0 0
      %3449 = vmatmul.mubr.bf16.gmra.mrb[0].mxu0 %v2448
      %v3450 = vpop.f32.mrb[0].mxu0
      %v3451 = vadd.f32 %v1828, %v3450
      %v3452 = vpop.f32.mrb[0].mxu0
      %v3453 = vadd.f32 %v1830, %v3452
      %v3454 = vpop.f32.mrb[0].mxu0
      %v3455 = vadd.f32 %v1832, %v3454
      %v3456 = vpop.f32.mrb[0].mxu0
      %v3457 = vadd.f32 %v1834, %v3456
      %3458 = vmatprep.mubr.bf16.mxu0 0
      %3459 = vmatmul.mubr.bf16.gmra.mrb[0].mxu0 %v2451
      %v3460 = vpop.f32.mrb[0].mxu0
      %v3461 = vadd.f32 %v1838, %v3460
      %v3462 = vpop.f32.mrb[0].mxu0
      %v3463 = vadd.f32 %v1840, %v3462
      %v3464 = vpop.f32.mrb[0].mxu0
      %v3465 = vadd.f32 %v1842, %v3464
      %v3466 = vpop.f32.mrb[0].mxu0
      %v3467 = vadd.f32 %v1844, %v3466
      %3468 = vmatprep.mubr.bf16.mxu0 0
      %3469 = vmatmul.mubr.bf16.gmra.mrb[0].mxu0 %v2454
      %v3470 = vpop.f32.mrb[0].mxu0
      %v3471 = vadd.f32 %v1848, %v3470
      %v3472 = vpop.f32.mrb[0].mxu0
      %v3473 = vadd.f32 %v1850, %v3472
      %v3474 = vpop.f32.mrb[0].mxu0
      %v3475 = vadd.f32 %v1852, %v3474
      %v3476 = vpop.f32.mrb[0].mxu0
      %v3477 = vadd.f32 %v1854, %v3476
      %3478 = vdwg.mxu0
      %3479 = vmatprep.subr.bf16.mxu0 %v2311
      %3480 = vmatpush1.bf16.msra.mxu0 %v2310
      %3481 = vmatprep.subr.bf16.mxu0 %v2336
      %3482 = vmatpush1.bf16.msra.mxu0 %v2335
      %3483 = vmatprep.subr.bf16.mxu0 %v2361
      %3484 = vmatpush1.bf16.msra.mxu0 %v2360
      %3485 = vmatprep.subr.bf16.mxu0 0
      %3486 = vmatpush1.bf16.msra.mxu0 0
      %3487 = vmatprep.subr.bf16.mxu0 0
      %3488 = vmatpush1.bf16.msra.mxu0 0
      %3489 = vmatprep.subr.bf16.mxu0 0
      %3490 = vmatpush1.bf16.msra.mxu0 0
      %3491 = vmatprep.subr.bf16.mxu0 0
      %3492 = vmatpush1.bf16.msra.mxu0 0
      %3493 = vmatprep.subr.bf16.mxu0 0
      %3494 = vmatpush1.bf16.msra.mxu0 0
      %3495 = vmatprep.subr.bf16.mxu0 0
      %3496 = vmatpush1.bf16.msra.mxu0 0
      %3497 = vmatprep.subr.bf16.mxu0 0
      %3498 = vmatpush1.bf16.msra.mxu0 0
      %3499 = vmatprep.subr.bf16.mxu0 0
      %3500 = vmatpush1.bf16.msra.mxu0 0
      %3501 = vmatprep.subr.bf16.mxu0 0
      %3502 = vmatpush1.bf16.msra.mxu0 0
      %3503 = vmatprep.subr.bf16.mxu0 0
      %3504 = vmatpush1.bf16.msra.mxu0 0
      %3505 = vmatprep.subr.bf16.mxu0 0
      %3506 = vmatpush1.bf16.msra.mxu0 0
      %3507 = vmatprep.subr.bf16.mxu0 0
      %3508 = vmatpush1.bf16.msra.mxu0 0
      %3509 = vmatprep.subr.bf16.mxu0 0
      %3510 = vmatpush1.bf16.msra.mxu0 0
      %3511 = vmatprep.mubr.bf16.mxu0 0
      %3512 = vmatmul.mubr.bf16.gmra.mrb[0].mxu0 %v2439
      %v3513 = vpop.f32.mrb[0].mxu0
      %v3514 = vadd.f32 %v1891, %v3513
      %v3515 = vpop.f32.mrb[0].mxu0
      %v3516 = vadd.f32 %v1893, %v3515
      %v3517 = vpop.f32.mrb[0].mxu0
      %v3518 = vadd.f32 %v1895, %v3517
      %v3519 = vpop.f32.mrb[0].mxu0
      %v3520 = vadd.f32 %v1897, %v3519
      %3521 = vmatprep.mubr.bf16.mxu0 0
      %3522 = vmatmul.mubr.bf16.gmra.mrb[0].mxu0 %v2442
      %v3523 = vpop.f32.mrb[0].mxu0
      %v3524 = vadd.f32 %v1901, %v3523
      %v3525 = vpop.f32.mrb[0].mxu0
      %v3526 = vadd.f32 %v1903, %v3525
      %v3527 = vpop.f32.mrb[0].mxu0
      %v3528 = vadd.f32 %v1905, %v3527
      %v3529 = vpop.f32.mrb[0].mxu0
      %v3530 = vadd.f32 %v1907, %v3529
      %3531 = vmatprep.mubr.bf16.mxu0 0
      %3532 = vmatmul.mubr.bf16.gmra.mrb[0].mxu0 %v2445
      %v3533 = vpop.f32.mrb[0].mxu0
      %v3534 = vadd.f32 %v1911, %v3533
      %v3535 = vpop.f32.mrb[0].mxu0
      %v3536 = vadd.f32 %v1913, %v3535
      %v3537 = vpop.f32.mrb[0].mxu0
      %v3538 = vadd.f32 %v1915, %v3537
      %v3539 = vpop.f32.mrb[0].mxu0
      %v3540 = vadd.f32 %v1917, %v3539
      %3541 = vmatprep.mubr.bf16.mxu0 0
      %3542 = vmatmul.mubr.bf16.gmra.mrb[0].mxu0 %v2448
      %v3543 = vpop.f32.mrb[0].mxu0
      %v3544 = vadd.f32 %v1921, %v3543
      %v3545 = vpop.f32.mrb[0].mxu0
      %v3546 = vadd.f32 %v1923, %v3545
      %v3547 = vpop.f32.mrb[0].mxu0
      %v3548 = vadd.f32 %v1925, %v3547
      %v3549 = vpop.f32.mrb[0].mxu0
      %v3550 = vadd.f32 %v1927, %v3549
      %3551 = vmatprep.mubr.bf16.mxu0 0
      %3552 = vmatmul.mubr.bf16.gmra.mrb[0].mxu0 %v2451
      %v3553 = vpop.f32.mrb[0].mxu0
      %v3554 = vadd.f32 %v1931, %v3553
      %v3555 = vpop.f32.mrb[0].mxu0
      %v3556 = vadd.f32 %v1933, %v3555
      %v3557 = vpop.f32.mrb[0].mxu0
      %v3558 = vadd.f32 %v1935, %v3557
      %v3559 = vpop.f32.mrb[0].mxu0
      %v3560 = vadd.f32 %v1937, %v3559
      %3561 = vmatprep.mubr.bf16.mxu0 0
      %3562 = vmatmul.mubr.bf16.gmra.mrb[0].mxu0 %v2454
      %v3563 = vpop.f32.mrb[0].mxu0
      %v3564 = vadd.f32 %v1941, %v3563
      %v3565 = vpop.f32.mrb[0].mxu0
      %v3566 = vadd.f32 %v1943, %v3565
      %v3567 = vpop.f32.mrb[0].mxu0
      %v3568 = vadd.f32 %v1945, %v3567
      %v3569 = vpop.f32.mrb[0].mxu0
      %v3570 = vadd.f32 %v1947, %v3569
      %3571 = vdwg.mxu0
      %3572 = vmatprep.subr.bf16.mxu0 0
      %3573 = vmatpush1.bf16.msra.mxu0 %v2312
      %3574 = vmatprep.subr.bf16.mxu0 0
      %3575 = vmatpush1.bf16.msra.mxu0 %v2337
      %3576 = vmatprep.subr.bf16.mxu0 0
      %3577 = vmatpush1.bf16.msra.mxu0 %v2362
      %3578 = vmatprep.subr.bf16.mxu0 0
      %3579 = vmatpush1.bf16.msra.mxu0 0
      %3580 = vmatprep.subr.bf16.mxu0 0
      %3581 = vmatpush1.bf16.msra.mxu0 0
      %3582 = vmatprep.subr.bf16.mxu0 0
      %3583 = vmatpush1.bf16.msra.mxu0 0
      %3584 = vmatprep.subr.bf16.mxu0 0
      %3585 = vmatpush1.bf16.msra.mxu0 0
      %3586 = vmatprep.subr.bf16.mxu0 0
      %3587 = vmatpush1.bf16.msra.mxu0 0
      %3588 = vmatprep.subr.bf16.mxu0 0
      %3589 = vmatpush1.bf16.msra.mxu0 0
      %3590 = vmatprep.subr.bf16.mxu0 0
      %3591 = vmatpush1.bf16.msra.mxu0 0
      %3592 = vmatprep.subr.bf16.mxu0 0
      %3593 = vmatpush1.bf16.msra.mxu0 0
      %3594 = vmatprep.subr.bf16.mxu0 0
      %3595 = vmatpush1.bf16.msra.mxu0 0
      %3596 = vmatprep.subr.bf16.mxu0 0
      %3597 = vmatpush1.bf16.msra.mxu0 0
      %3598 = vmatprep.subr.bf16.mxu0 0
      %3599 = vmatpush1.bf16.msra.mxu0 0
      %3600 = vmatprep.subr.bf16.mxu0 0
      %3601 = vmatpush1.bf16.msra.mxu0 0
      %3602 = vmatprep.subr.bf16.mxu0 0
      %3603 = vmatpush1.bf16.msra.mxu0 0
      %3604 = vmatprep.mubr.bf16.mxu0 0
      %3605 = vmatmul.mubr.bf16.gmra.mrb[0].mxu0 %v2439
      %v3606 = vpop.f32.mrb[0].mxu0
      %v3607 = vadd.f32 %v1984, %v3606
      %v3608 = vpop.f32.mrb[0].mxu0
      %v3609 = vpop.f32.mrb[0].mxu0
      %v3610 = vadd.f32 %v1987, %v3609
      %v3611 = vpop.f32.mrb[0].mxu0
      %3612 = vmatprep.mubr.bf16.mxu0 0
      %3613 = vmatmul.mubr.bf16.gmra.mrb[0].mxu0 %v2442
      %v3614 = vpop.f32.mrb[0].mxu0
      %v3615 = vadd.f32 %v1992, %v3614
      %v3616 = vpop.f32.mrb[0].mxu0
      %v3617 = vpop.f32.mrb[0].mxu0
      %v3618 = vadd.f32 %v1995, %v3617
      %v3619 = vpop.f32.mrb[0].mxu0
      %3620 = vmatprep.mubr.bf16.mxu0 0
      %3621 = vmatmul.mubr.bf16.gmra.mrb[0].mxu0 %v2445
      %v3622 = vpop.f32.mrb[0].mxu0
      %v3623 = vadd.f32 %v2000, %v3622
      %v3624 = vpop.f32.mrb[0].mxu0
      %v3625 = vpop.f32.mrb[0].mxu0
      %v3626 = vadd.f32 %v2003, %v3625
      %v3627 = vpop.f32.mrb[0].mxu0
      %3628 = vmatprep.mubr.bf16.mxu0 0
      %3629 = vmatmul.mubr.bf16.gmra.mrb[0].mxu0 %v2448
      %v3630 = vpop.f32.mrb[0].mxu0
      %v3631 = vadd.f32 %v2008, %v3630
      %v3632 = vpop.f32.mrb[0].mxu0
      %v3633 = vpop.f32.mrb[0].mxu0
      %v3634 = vadd.f32 %v2011, %v3633
      %v3635 = vpop.f32.mrb[0].mxu0
      %3636 = vmatprep.mubr.bf16.mxu0 0
      %3637 = vmatmul.mubr.bf16.gmra.mrb[0].mxu0 %v2451
      %v3638 = vpop.f32.mrb[0].mxu0
      %v3639 = vadd.f32 %v2016, %v3638
      %v3640 = vpop.f32.mrb[0].mxu0
      %v3641 = vpop.f32.mrb[0].mxu0
      %v3642 = vadd.f32 %v2019, %v3641
      %v3643 = vpop.f32.mrb[0].mxu0
      %3644 = vmatprep.mubr.bf16.mxu0 0
      %3645 = vmatmul.mubr.bf16.gmra.mrb[0].mxu0 %v2454
      %v3646 = vpop.f32.mrb[0].mxu0
      %v3647 = vadd.f32 %v2024, %v3646
      %v3648 = vpop.f32.mrb[0].mxu0
      %v3649 = vpop.f32.mrb[0].mxu0
      %v3650 = vadd.f32 %v2027, %v3649
      %v3651 = vpop.f32.mrb[0].mxu0
      %3652 = vdwg.mxu0
      %3653 = vst [vmem:[%s223] sm:$0xff] %v2491
      %3654 = vst [vmem:[%s223 + $0x8] sm:$0xff] %v2493
      %3655 = vst [vmem:[%s223 + $0x10] sm:$0xff] %v2584
      %3656 = vst [vmem:[%s223 + $0x18] sm:$0xff] %v2586
      %3657 = vst [vmem:[%s223 + $0x20] sm:$0xff] %v2677
      %3658 = vst [vmem:[%s223 + $0x28] sm:$0xff] %v2679
      %3659 = vst [vmem:[%s223 + $0x30] sm:$0xff] %v2770
      %3660 = vst [vmem:[%s223 + $0x38] sm:$0xff] %v2772
      %3661 = vst [vmem:[%s223 + $0x40] sm:$0xff] %v2863
      %3662 = vst [vmem:[%s223 + $0x48] sm:$0xff] %v2865
      %3663 = vst [vmem:[%s223 + $0x50] sm:$0xff] %v2956
      %3664 = vst [vmem:[%s223 + $0x58] sm:$0xff] %v2958
      %3665 = vst [vmem:[%s223 + $0x60] sm:$0xff] %v3049
      %3666 = vst [vmem:[%s223 + $0x68] sm:$0xff] %v3051
      %3667 = vst [vmem:[%s223 + $0x70] sm:$0xff] %v3142
      %3668 = vst [vmem:[%s223 + $0x78] sm:$0xff] %v3144
      %3669 = vst [vmem:[%s223 + $0x80] sm:$0xff] %v3235
      %3670 = vst [vmem:[%s223 + $0x88] sm:$0xff] %v3237
      %3671 = vst [vmem:[%s223 + $0x90] sm:$0xff] %v3328
      %3672 = vst [vmem:[%s223 + $0x98] sm:$0xff] %v3330
      %3673 = vst [vmem:[%s223 + $0xa0] sm:$0xff] %v3421
      %3674 = vst [vmem:[%s223 + $0xa8] sm:$0xff] %v3423
      %3675 = vst [vmem:[%s223 + $0xb0] sm:$0xff] %v3514
      %3676 = vst [vmem:[%s223 + $0xb8] sm:$0xff] %v3516
      %vm3677 = vcmask 523264
      %3678 = vst.msk [vmem:[%s223 + $0xc0] sm:$0xff] %vm3677, %v3607
      %3679 = vst [vmem:[%s223 + $0xc8] sm:$0xff] %v2495
      %3680 = vst [vmem:[%s223 + $0xd0] sm:$0xff] %v2497
      %3681 = vst [vmem:[%s223 + $0xd8] sm:$0xff] %v2588
      %3682 = vst [vmem:[%s223 + $0xe0] sm:$0xff] %v2590
      %3683 = vst [vmem:[%s223 + $0xe8] sm:$0xff] %v2681
      %3684 = vst [vmem:[%s223 + $0xf0] sm:$0xff] %v2683
      %3685 = vst [vmem:[%s223 + $0xf8] sm:$0xff] %v2774
      %3686 = vst [vmem:[%s223 + $0x100] sm:$0xff] %v2776
      %3687 = vst [vmem:[%s223 + $0x108] sm:$0xff] %v2867
      %3688 = vst [vmem:[%s223 + $0x110] sm:$0xff] %v2869
      %3689 = vst [vmem:[%s223 + $0x118] sm:$0xff] %v2960
      %3690 = vst [vmem:[%s223 + $0x120] sm:$0xff] %v2962
      %3691 = vst [vmem:[%s223 + $0x128] sm:$0xff] %v3053
      %3692 = vst [vmem:[%s223 + $0x130] sm:$0xff] %v3055
      %3693 = vst [vmem:[%s223 + $0x138] sm:$0xff] %v3146
      %3694 = vst [vmem:[%s223 + $0x140] sm:$0xff] %v3148
      %3695 = vst [vmem:[%s223 + $0x148] sm:$0xff] %v3239
      %3696 = vst [vmem:[%s223 + $0x150] sm:$0xff] %v3241
      %3697 = vst [vmem:[%s223 + $0x158] sm:$0xff] %v3332
      %3698 = vst [vmem:[%s223 + $0x160] sm:$0xff] %v3334
      %3699 = vst [vmem:[%s223 + $0x168] sm:$0xff] %v3425
      %3700 = vst [vmem:[%s223 + $0x170] sm:$0xff] %v3427
      %3701 = vst [vmem:[%s223 + $0x178] sm:$0xff] %v3518
      %3702 = vst [vmem:[%s223 + $0x180] sm:$0xff] %v3520
      %3703 = vst.msk [vmem:[%s223 + $0x188] sm:$0xff] %vm3677, %v3610
      %3704 = vst [vmem:[%s223 + $0x190] sm:$0xff] %v2501
      %3705 = vst [vmem:[%s223 + $0x198] sm:$0xff] %v2503
      %3706 = vst [vmem:[%s223 + $0x1a0] sm:$0xff] %v2594
      %3707 = vst [vmem:[%s223 + $0x1a8] sm:$0xff] %v2596
      %3708 = vst [vmem:[%s223 + $0x1b0] sm:$0xff] %v2687
      %3709 = vst [vmem:[%s223 + $0x1b8] sm:$0xff] %v2689
      %3710 = vst [vmem:[%s223 + $0x1c0] sm:$0xff] %v2780
      %3711 = vst [vmem:[%s223 + $0x1c8] sm:$0xff] %v2782
      %3712 = vst [vmem:[%s223 + $0x1d0] sm:$0xff] %v2873
      %3713 = vst [vmem:[%s223 + $0x1d8] sm:$0xff] %v2875
      %3714 = vst [vmem:[%s223 + $0x1e0] sm:$0xff] %v2966
      %3715 = vst [vmem:[%s223 + $0x1e8] sm:$0xff] %v2968
      %3716 = vst [vmem:[%s223 + $0x1f0] sm:$0xff] %v3059
      %3717 = vst [vmem:[%s223 + $0x1f8] sm:$0xff] %v3061
      %3718 = vst [vmem:[%s223 + $0x200] sm:$0xff] %v3152
      %3719 = vst [vmem:[%s223 + $0x208] sm:$0xff] %v3154
      %3720 = vst [vmem:[%s223 + $0x210] sm:$0xff] %v3245
      %3721 = vst [vmem:[%s223 + $0x218] sm:$0xff] %v3247
      %3722 = vst [vmem:[%s223 + $0x220] sm:$0xff] %v3338
      %3723 = vst [vmem:[%s223 + $0x228] sm:$0xff] %v3340
      %3724 = vst [vmem:[%s223 + $0x230] sm:$0xff] %v3431
      %3725 = vst [vmem:[%s223 + $0x238] sm:$0xff] %v3433
      %3726 = vst [vmem:[%s223 + $0x240] sm:$0xff] %v3524
      %3727 = vst [vmem:[%s223 + $0x248] sm:$0xff] %v3526
      %3728 = vst.msk [vmem:[%s223 + $0x250] sm:$0xff] %vm3677, %v3615
      %3729 = vst [vmem:[%s223 + $0x258] sm:$0xff] %v2505
      %3730 = vst [vmem:[%s223 + $0x260] sm:$0xff] %v2507
      %3731 = vst [vmem:[%s223 + $0x268] sm:$0xff] %v2598
      %3732 = vst [vmem:[%s223 + $0x270] sm:$0xff] %v2600
      %3733 = vst [vmem:[%s223 + $0x278] sm:$0xff] %v2691
      %3734 = vst [vmem:[%s223 + $0x280] sm:$0xff] %v2693
      %3735 = vst [vmem:[%s223 + $0x288] sm:$0xff] %v2784
      %3736 = vst [vmem:[%s223 + $0x290] sm:$0xff] %v2786
      %3737 = vst [vmem:[%s223 + $0x298] sm:$0xff] %v2877
      %3738 = vst [vmem:[%s223 + $0x2a0] sm:$0xff] %v2879
      %3739 = vst [vmem:[%s223 + $0x2a8] sm:$0xff] %v2970
      %3740 = vst [vmem:[%s223 + $0x2b0] sm:$0xff] %v2972
      %3741 = vst [vmem:[%s223 + $0x2b8] sm:$0xff] %v3063
      %3742 = vst [vmem:[%s223 + $0x2c0] sm:$0xff] %v3065
      %3743 = vst [vmem:[%s223 + $0x2c8] sm:$0xff] %v3156
      %3744 = vst [vmem:[%s223 + $0x2d0] sm:$0xff] %v3158
      %3745 = vst [vmem:[%s223 + $0x2d8] sm:$0xff] %v3249
      %3746 = vst [vmem:[%s223 + $0x2e0] sm:$0xff] %v3251
      %3747 = vst [vmem:[%s223 + $0x2e8] sm:$0xff] %v3342
      %3748 = vst [vmem:[%s223 + $0x2f0] sm:$0xff] %v3344
      %3749 = vst [vmem:[%s223 + $0x2f8] sm:$0xff] %v3435
      %3750 = vst [vmem:[%s223 + $0x300] sm:$0xff] %v3437
      %3751 = vst [vmem:[%s223 + $0x308] sm:$0xff] %v3528
      %3752 = vst [vmem:[%s223 + $0x310] sm:$0xff] %v3530
      %3753 = vst.msk [vmem:[%s223 + $0x318] sm:$0xff] %vm3677, %v3618
      %3754 = vst [vmem:[%s223 + $0x320] sm:$0xff] %v2511
      %3755 = vst [vmem:[%s223 + $0x328] sm:$0xff] %v2513
      %3756 = vst [vmem:[%s223 + $0x330] sm:$0xff] %v2604
      %3757 = vst [vmem:[%s223 + $0x338] sm:$0xff] %v2606
      %3758 = vst [vmem:[%s223 + $0x340] sm:$0xff] %v2697
      %3759 = vst [vmem:[%s223 + $0x348] sm:$0xff] %v2699
      %3760 = vst [vmem:[%s223 + $0x350] sm:$0xff] %v2790
      %3761 = vst [vmem:[%s223 + $0x358] sm:$0xff] %v2792
      %3762 = vst [vmem:[%s223 + $0x360] sm:$0xff] %v2883
      %3763 = vst [vmem:[%s223 + $0x368] sm:$0xff] %v2885
      %3764 = vst [vmem:[%s223 + $0x370] sm:$0xff] %v2976
      %3765 = vst [vmem:[%s223 + $0x378] sm:$0xff] %v2978
      %3766 = vst [vmem:[%s223 + $0x380] sm:$0xff] %v3069
      %3767 = vst [vmem:[%s223 + $0x388] sm:$0xff] %v3071
      %3768 = vst [vmem:[%s223 + $0x390] sm:$0xff] %v3162
      %3769 = vst [vmem:[%s223 + $0x398] sm:$0xff] %v3164
      %3770 = vst [vmem:[%s223 + $0x3a0] sm:$0xff] %v3255
      %3771 = vst [vmem:[%s223 + $0x3a8] sm:$0xff] %v3257
      %3772 = vst [vmem:[%s223 + $0x3b0] sm:$0xff] %v3348
      %3773 = vst [vmem:[%s223 + $0x3b8] sm:$0xff] %v3350
      %3774 = vst [vmem:[%s223 + $0x3c0] sm:$0xff] %v3441
      %3775 = vst [vmem:[%s223 + $0x3c8] sm:$0xff] %v3443
      %3776 = vst [vmem:[%s223 + $0x3d0] sm:$0xff] %v3534
      %3777 = vst [vmem:[%s223 + $0x3d8] sm:$0xff] %v3536
      %3778 = vst.msk [vmem:[%s223 + $0x3e0] sm:$0xff] %vm3677, %v3623
      %3779 = vst [vmem:[%s223 + $0x3e8] sm:$0xff] %v2515
      %3780 = vst [vmem:[%s223 + $0x3f0] sm:$0xff] %v2517
      %3781 = vst [vmem:[%s223 + $0x3f8] sm:$0xff] %v2608
      %3782 = vst [vmem:[%s223 + $0x400] sm:$0xff] %v2610
      %3783 = vst [vmem:[%s223 + $0x408] sm:$0xff] %v2701
      %3784 = vst [vmem:[%s223 + $0x410] sm:$0xff] %v2703
      %3785 = vst [vmem:[%s223 + $0x418] sm:$0xff] %v2794
      %3786 = vst [vmem:[%s223 + $0x420] sm:$0xff] %v2796
      %3787 = vst [vmem:[%s223 + $0x428] sm:$0xff] %v2887
      %3788 = vst [vmem:[%s223 + $0x430] sm:$0xff] %v2889
      %3789 = vst [vmem:[%s223 + $0x438] sm:$0xff] %v2980
      %3790 = vst [vmem:[%s223 + $0x440] sm:$0xff] %v2982
      %3791 = vst [vmem:[%s223 + $0x448] sm:$0xff] %v3073
      %3792 = vst [vmem:[%s223 + $0x450] sm:$0xff] %v3075
      %3793 = vst [vmem:[%s223 + $0x458] sm:$0xff] %v3166
      %3794 = vst [vmem:[%s223 + $0x460] sm:$0xff] %v3168
      %3795 = vst [vmem:[%s223 + $0x468] sm:$0xff] %v3259
      %3796 = vst [vmem:[%s223 + $0x470] sm:$0xff] %v3261
      %3797 = vst [vmem:[%s223 + $0x478] sm:$0xff] %v3352
      %3798 = vst [vmem:[%s223 + $0x480] sm:$0xff] %v3354
      %3799 = vst [vmem:[%s223 + $0x488] sm:$0xff] %v3445
      %3800 = vst [vmem:[%s223 + $0x490] sm:$0xff] %v3447
      %3801 = vst [vmem:[%s223 + $0x498] sm:$0xff] %v3538
      %3802 = vst [vmem:[%s223 + $0x4a0] sm:$0xff] %v3540
      %3803 = vst.msk [vmem:[%s223 + $0x4a8] sm:$0xff] %vm3677, %v3626
      %3804 = vst [vmem:[%s223 + $0x4b0] sm:$0xff] %v2521
      %3805 = vst [vmem:[%s223 + $0x4b8] sm:$0xff] %v2523
      %3806 = vst [vmem:[%s223 + $0x4c0] sm:$0xff] %v2614
      %3807 = vst [vmem:[%s223 + $0x4c8] sm:$0xff] %v2616
      %3808 = vst [vmem:[%s223 + $0x4d0] sm:$0xff] %v2707
      %3809 = vst [vmem:[%s223 + $0x4d8] sm:$0xff] %v2709
      %3810 = vst [vmem:[%s223 + $0x4e0] sm:$0xff] %v2800
      %3811 = vst [vmem:[%s223 + $0x4e8] sm:$0xff] %v2802
      %3812 = vst [vmem:[%s223 + $0x4f0] sm:$0xff] %v2893
      %3813 = vst [vmem:[%s223 + $0x4f8] sm:$0xff] %v2895
      %3814 = vst [vmem:[%s223 + $0x500] sm:$0xff] %v2986
      %3815 = vst [vmem:[%s223 + $0x508] sm:$0xff] %v2988
      %3816 = vst [vmem:[%s223 + $0x510] sm:$0xff] %v3079
      %3817 = vst [vmem:[%s223 + $0x518] sm:$0xff] %v3081
      %3818 = vst [vmem:[%s223 + $0x520] sm:$0xff] %v3172
      %3819 = vst [vmem:[%s223 + $0x528] sm:$0xff] %v3174
      %3820 = vst [vmem:[%s223 + $0x530] sm:$0xff] %v3265
      %3821 = vst [vmem:[%s223 + $0x538] sm:$0xff] %v3267
      %3822 = vst [vmem:[%s223 + $0x540] sm:$0xff] %v3358
      %3823 = vst [vmem:[%s223 + $0x548] sm:$0xff] %v3360
      %3824 = vst [vmem:[%s223 + $0x550] sm:$0xff] %v3451
      %3825 = vst [vmem:[%s223 + $0x558] sm:$0xff] %v3453
      %3826 = vst [vmem:[%s223 + $0x560] sm:$0xff] %v3544
      %3827 = vst [vmem:[%s223 + $0x568] sm:$0xff] %v3546
      %3828 = vst.msk [vmem:[%s223 + $0x570] sm:$0xff] %vm3677, %v3631
      %3829 = vst [vmem:[%s223 + $0x578] sm:$0xff] %v2525
      %3830 = vst [vmem:[%s223 + $0x580] sm:$0xff] %v2527
      %3831 = vst [vmem:[%s223 + $0x588] sm:$0xff] %v2618
      %3832 = vst [vmem:[%s223 + $0x590] sm:$0xff] %v2620
      %3833 = vst [vmem:[%s223 + $0x598] sm:$0xff] %v2711
      %3834 = vst [vmem:[%s223 + $0x5a0] sm:$0xff] %v2713
      %3835 = vst [vmem:[%s223 + $0x5a8] sm:$0xff] %v2804
      %3836 = vst [vmem:[%s223 + $0x5b0] sm:$0xff] %v2806
      %3837 = vst [vmem:[%s223 + $0x5b8] sm:$0xff] %v2897
      %3838 = vst [vmem:[%s223 + $0x5c0] sm:$0xff] %v2899
      %3839 = vst [vmem:[%s223 + $0x5c8] sm:$0xff] %v2990
      %3840 = vst [vmem:[%s223 + $0x5d0] sm:$0xff] %v2992
      %3841 = vst [vmem:[%s223 + $0x5d8] sm:$0xff] %v3083
      %3842 = vst [vmem:[%s223 + $0x5e0] sm:$0xff] %v3085
      %3843 = vst [vmem:[%s223 + $0x5e8] sm:$0xff] %v3176
      %3844 = vst [vmem:[%s223 + $0x5f0] sm:$0xff] %v3178
      %3845 = vst [vmem:[%s223 + $0x5f8] sm:$0xff] %v3269
      %3846 = vst [vmem:[%s223 + $0x600] sm:$0xff] %v3271
      %3847 = vst [vmem:[%s223 + $0x608] sm:$0xff] %v3362
      %3848 = vst [vmem:[%s223 + $0x610] sm:$0xff] %v3364
      %3849 = vst [vmem:[%s223 + $0x618] sm:$0xff] %v3455
      %3850 = vst [vmem:[%s223 + $0x620] sm:$0xff] %v3457
      %3851 = vst [vmem:[%s223 + $0x628] sm:$0xff] %v3548
      %3852 = vst [vmem:[%s223 + $0x630] sm:$0xff] %v3550
      %3853 = vst.msk [vmem:[%s223 + $0x638] sm:$0xff] %vm3677, %v3634
      %3854 = vst [vmem:[%s223 + $0x640] sm:$0xff] %v2531
      %3855 = vst [vmem:[%s223 + $0x648] sm:$0xff] %v2533
      %3856 = vst [vmem:[%s223 + $0x650] sm:$0xff] %v2624
      %3857 = vst [vmem:[%s223 + $0x658] sm:$0xff] %v2626
      %3858 = vst [vmem:[%s223 + $0x660] sm:$0xff] %v2717
      %3859 = vst [vmem:[%s223 + $0x668] sm:$0xff] %v2719
      %3860 = vst [vmem:[%s223 + $0x670] sm:$0xff] %v2810
      %3861 = vst [vmem:[%s223 + $0x678] sm:$0xff] %v2812
      %3862 = vst [vmem:[%s223 + $0x680] sm:$0xff] %v2903
      %3863 = vst [vmem:[%s223 + $0x688] sm:$0xff] %v2905
      %3864 = vst [vmem:[%s223 + $0x690] sm:$0xff] %v2996
      %3865 = vst [vmem:[%s223 + $0x698] sm:$0xff] %v2998
      %3866 = vst [vmem:[%s223 + $0x6a0] sm:$0xff] %v3089
      %3867 = vst [vmem:[%s223 + $0x6a8] sm:$0xff] %v3091
      %3868 = vst [vmem:[%s223 + $0x6b0] sm:$0xff] %v3182
      %3869 = vst [vmem:[%s223 + $0x6b8] sm:$0xff] %v3184
      %3870 = vst [vmem:[%s223 + $0x6c0] sm:$0xff] %v3275
      %3871 = vst [vmem:[%s223 + $0x6c8] sm:$0xff] %v3277
      %3872 = vst [vmem:[%s223 + $0x6d0] sm:$0xff] %v3368
      %3873 = vst [vmem:[%s223 + $0x6d8] sm:$0xff] %v3370
      %3874 = vst [vmem:[%s223 + $0x6e0] sm:$0xff] %v3461
      %3875 = vst [vmem:[%s223 + $0x6e8] sm:$0xff] %v3463
      %3876 = vst [vmem:[%s223 + $0x6f0] sm:$0xff] %v3554
      %3877 = vst [vmem:[%s223 + $0x6f8] sm:$0xff] %v3556
      %3878 = vst.msk [vmem:[%s223 + $0x700] sm:$0xff] %vm3677, %v3639
      %3879 = vst [vmem:[%s223 + $0x708] sm:$0xff] %v2535
      %3880 = vst [vmem:[%s223 + $0x710] sm:$0xff] %v2537
      %3881 = vst [vmem:[%s223 + $0x718] sm:$0xff] %v2628
      %3882 = vst [vmem:[%s223 + $0x720] sm:$0xff] %v2630
      %3883 = vst [vmem:[%s223 + $0x728] sm:$0xff] %v2721
      %3884 = vst [vmem:[%s223 + $0x730] sm:$0xff] %v2723
      %3885 = vst [vmem:[%s223 + $0x738] sm:$0xff] %v2814
      %3886 = vst [vmem:[%s223 + $0x740] sm:$0xff] %v2816
      %3887 = vst [vmem:[%s223 + $0x748] sm:$0xff] %v2907
      %3888 = vst [vmem:[%s223 + $0x750] sm:$0xff] %v2909
      %3889 = vst [vmem:[%s223 + $0x758] sm:$0xff] %v3000
      %3890 = vst [vmem:[%s223 + $0x760] sm:$0xff] %v3002
      %3891 = vst [vmem:[%s223 + $0x768] sm:$0xff] %v3093
      %3892 = vst [vmem:[%s223 + $0x770] sm:$0xff] %v3095
      %3893 = vst [vmem:[%s223 + $0x778] sm:$0xff] %v3186
      %3894 = vst [vmem:[%s223 + $0x780] sm:$0xff] %v3188
      %3895 = vst [vmem:[%s223 + $0x788] sm:$0xff] %v3279
      %3896 = vst [vmem:[%s223 + $0x790] sm:$0xff] %v3281
      %3897 = vst [vmem:[%s223 + $0x798] sm:$0xff] %v3372
      %3898 = vst [vmem:[%s223 + $0x7a0] sm:$0xff] %v3374
      %3899 = vst [vmem:[%s223 + $0x7a8] sm:$0xff] %v3465
      %3900 = vst [vmem:[%s223 + $0x7b0] sm:$0xff] %v3467
      %3901 = vst [vmem:[%s223 + $0x7b8] sm:$0xff] %v3558
      %3902 = vst [vmem:[%s223 + $0x7c0] sm:$0xff] %v3560
      %3903 = vst.msk [vmem:[%s223 + $0x7c8] sm:$0xff] %vm3677, %v3642
      %3904 = vst [vmem:[%s223 + $0x7d0] sm:$0xff] %v2541
      %3905 = vst [vmem:[%s223 + $0x7d8] sm:$0xff] %v2543
      %3906 = vst [vmem:[%s223 + $0x7e0] sm:$0xff] %v2634
      %3907 = vst [vmem:[%s223 + $0x7e8] sm:$0xff] %v2636
      %3908 = vst [vmem:[%s223 + $0x7f0] sm:$0xff] %v2727
      %3909 = vst [vmem:[%s223 + $0x7f8] sm:$0xff] %v2729
      %3910 = vst [vmem:[%s223 + $0x800] sm:$0xff] %v2820
      %3911 = vst [vmem:[%s223 + $0x808] sm:$0xff] %v2822
      %3912 = vst [vmem:[%s223 + $0x810] sm:$0xff] %v2913
      %3913 = vst [vmem:[%s223 + $0x818] sm:$0xff] %v2915
      %3914 = vst [vmem:[%s223 + $0x820] sm:$0xff] %v3006
      %3915 = vst [vmem:[%s223 + $0x828] sm:$0xff] %v3008
      %3916 = vst [vmem:[%s223 + $0x830] sm:$0xff] %v3099
      %3917 = vst [vmem:[%s223 + $0x838] sm:$0xff] %v3101
      %3918 = vst [vmem:[%s223 + $0x840] sm:$0xff] %v3192
      %3919 = vst [vmem:[%s223 + $0x848] sm:$0xff] %v3194
      %3920 = vst [vmem:[%s223 + $0x850] sm:$0xff] %v3285
      %3921 = vst [vmem:[%s223 + $0x858] sm:$0xff] %v3287
      %3922 = vst [vmem:[%s223 + $0x860] sm:$0xff] %v3378
      %3923 = vst [vmem:[%s223 + $0x868] sm:$0xff] %v3380
      %3924 = vst [vmem:[%s223 + $0x870] sm:$0xff] %v3471
      %3925 = vst [vmem:[%s223 + $0x878] sm:$0xff] %v3473
      %3926 = vst [vmem:[%s223 + $0x880] sm:$0xff] %v3564
      %3927 = vst [vmem:[%s223 + $0x888] sm:$0xff] %v3566
      %3928 = vst.msk [vmem:[%s223 + $0x890] sm:$0xff] %vm3677, %v3647
      %3929 = vst [vmem:[%s223 + $0x898] sm:$0xff] %v2545
      %3930 = vst [vmem:[%s223 + $0x8a0] sm:$0xff] %v2547
      %3931 = vst [vmem:[%s223 + $0x8a8] sm:$0xff] %v2638
      %3932 = vst [vmem:[%s223 + $0x8b0] sm:$0xff] %v2640
      %3933 = vst [vmem:[%s223 + $0x8b8] sm:$0xff] %v2731
      %3934 = vst [vmem:[%s223 + $0x8c0] sm:$0xff] %v2733
      %3935 = vst [vmem:[%s223 + $0x8c8] sm:$0xff] %v2824
      %3936 = vst [vmem:[%s223 + $0x8d0] sm:$0xff] %v2826
      %3937 = vst [vmem:[%s223 + $0x8d8] sm:$0xff] %v2917
      %3938 = vst [vmem:[%s223 + $0x8e0] sm:$0xff] %v2919
      %3939 = vst [vmem:[%s223 + $0x8e8] sm:$0xff] %v3010
      %3940 = vst [vmem:[%s223 + $0x8f0] sm:$0xff] %v3012
      %3941 = vst [vmem:[%s223 + $0x8f8] sm:$0xff] %v3103
      %3942 = vst [vmem:[%s223 + $0x900] sm:$0xff] %v3105
      %3943 = vst [vmem:[%s223 + $0x908] sm:$0xff] %v3196
      %3944 = vst [vmem:[%s223 + $0x910] sm:$0xff] %v3198
      %3945 = vst [vmem:[%s223 + $0x918] sm:$0xff] %v3289
      %3946 = vst [vmem:[%s223 + $0x920] sm:$0xff] %v3291
      %3947 = vst [vmem:[%s223 + $0x928] sm:$0xff] %v3382
      %3948 = vst [vmem:[%s223 + $0x930] sm:$0xff] %v3384
      %3949 = vst [vmem:[%s223 + $0x938] sm:$0xff] %v3475
      %3950 = vst [vmem:[%s223 + $0x940] sm:$0xff] %v3477
      %3951 = vst [vmem:[%s223 + $0x948] sm:$0xff] %v3568
      %3952 = vst [vmem:[%s223 + $0x950] sm:$0xff] %v3570
      %3953 = vst.msk [vmem:[%s223 + $0x958] sm:$0xff] %vm3677, %v3650
      %s3954 = smul.u32 12, %s15
      %p3955 = scmp.lt.s32.totalorder %s3954, 23
      %s3956 = scalar_select %p3955, %s3954, 23
      %s3957 = smul.addr %s3956, 25
      %s3958 = smul.addr %s3957, 8
      %s3959 = scalar_lea.vmem %s4, %s3958
      // Predicated region
      $region37: #{kernel_generated_2_forward.1} parent=35 // pred_check
        %p3960 = pneg %p127
      $region38: #{kernel_generated_2_forward.1} parent=35 // pred_check_branch
        %3962 = sbr.rel (%p3960) target = $region40
      $region39: #{kernel_generated_2_forward.1} parent=35 // pred_region
        %s3963 = smul.u32 12, %s15
      $region40: #{kernel_generated_2_forward.1} parent=35 // pred_fallthru
        _
    $region36: #{kernel_generated_2_forward.1} parent=5 // pred_fallthru
      _
    %p3964 = scmp.le.s32.totalorder 2, %s10
    // Predicated region
    $region41: #{kernel_generated_2_forward.1} parent=5 // pred_check
      %p3965 = pneg %p3964
    $region42: #{kernel_generated_2_forward.1} parent=5 // pred_check_branch
      %3967 = sbr.rel (%p3965) target = $region44
    $region43: #{kernel_generated_2_forward.1} parent=5 // pred_region
      %s3968 = ssub.s32 %s10, 2
      // Predicated region
      $region45: #{kernel_generated_2_forward.1} parent=43 // pred_check
        %p3969 = pneg %p133
      $region46: #{kernel_generated_2_forward.1} parent=43 // pred_check_branch
        %3971 = sbr.rel (%p3969) target = $region48
      $region47: #{kernel_generated_2_forward.1} parent=43 // pred_region
        %s3972 = smul.u32 12, %s16
        %p3973 = scmp.lt.s32.totalorder %s3972, 23
        %s3974 = scalar_select %p3973, %s3972, 23
        %s3975 = smul.addr %s3974, 25
        %s3976 = smul.addr %s3975, 8
        %s3977 = scalar_lea.vmem %s4, %s3976
      $region48: #{kernel_generated_2_forward.1} parent=43 // pred_fallthru
        _
    $region44: #{kernel_generated_2_forward.1} parent=5 // pred_fallthru
      _
  $region6: #{kernel_generated_2_forward.1} parent=0 // loop_footer
    %s14 = sadd.s32 1, %s10
  $region7: #{kernel_generated_2_forward.1} parent=0 // loop_footer_branch
    %9 = sbr.rel target = $region3
  $region8: #{kernel_generated_2_forward.1} parent=0 // loop_exit
    _

</llo_original>
